<compile_context>
chip_gen: v7x
topology: tpu7x:2x2x1
jax: 0.10.0
libtpu: 0.0.40
codegen_flags: <defaults>
</compile_context>

<pallas_src>
import jax
import jax.numpy as jnp
from jax import lax
from jax.experimental import pallas as pl
from jax.experimental.pallas import tpu as pltpu


_SQRT_2_OVER_PI = 0.7978845608028654
_GELU_C = 0.044715


def _gelu_tanh(x):
    # tanh-approximation GELU; the transcendental goes to the (otherwise idle)
    # EUP slot.  Differs from PyTorch's exact erf GELU by < ~1e-3.
    return 0.5 * x * (1.0 + jnp.tanh(_SQRT_2_OVER_PI * (x + _GELU_C * x * x * x)))


def _im2col_3x3(xpad, H, W):
    """xpad: (H+2, W+2, C) -> (H*W, 9*C), tap-major (ky, kx, cin) column order.

    Matches w_hwio.reshape(9*Cin, Cout), i.e. PyTorch cross-correlation."""
    C = xpad.shape[-1]
    cols = []
    for dy in range(3):
        for dx in range(3):
            cols.append(xpad[dy:dy + H, dx:dx + W, :].reshape(H * W, C))
    return jnp.concatenate(cols, axis=-1)


# ----------------------------------------------------------------------------
# Fused Basicmodule kernel (one batch element per grid step)
# ----------------------------------------------------------------------------
def _basic_kernel(xp_ref, w1_ref, sb1_ref, w2_ref, sb2_ref, o_ref, hpad_ref):
    # xp_ref  : (1, H+2, W+2, C) f32   spatially zero-padded input
    # w1_ref  : (9*C, C)         bf16  conv1 weight, im2col layout
    # sb1_ref : (2, C)           f32   folded BN1 scale (row 0) / bias (row 1)
    # w2_ref  : (9*C, C)         bf16  conv2 weight, im2col layout
    # sb2_ref : (2, C)           f32   folded BN2 scale / bias
    # o_ref   : (1, H, W, C)     f32   output
    # hpad_ref: (H+2, W+2, C)    f32   VMEM scratch (padded intermediate)
    _, Hp, Wp, C = xp_ref.shape
    H, W = Hp - 2, Wp - 2
    M = H * W

    xpad = xp_ref[0]                                       # (Hp, Wp, C) f32

    # ---- conv1 + BN1 + GELU : one im2col matmul with K = 9*C ----
    a1 = _im2col_3x3(xpad, H, W).astype(jnp.bfloat16)      # (M, 9C)
    y1 = jnp.dot(a1, w1_ref[...], preferred_element_type=jnp.float32)
    y1 = y1 * sb1_ref[0:1, :] + sb1_ref[1:2, :]
    h = _gelu_tanh(y1)                                     # (M, C) f32

    # ---- re-pad the intermediate in VMEM (no HBM round trip) ----
    hpad_ref[...] = jnp.zeros((Hp, Wp, C), jnp.float32)
    hpad_ref[1:H + 1, 1:W + 1, :] = h.reshape(H, W, C)

    # ---- conv2 + BN2 + residual add + GELU ----
    a2 = _im2col_3x3(hpad_ref[...], H, W).astype(jnp.bfloat16)
    y2 = jnp.dot(a2, w2_ref[...], preferred_element_type=jnp.float32)
    y2 = y2 * sb2_ref[0:1, :] + sb2_ref[1:2, :]
    res = xpad[1:H + 1, 1:W + 1, :].reshape(M, C)          # residual (f32)
    o_ref[...] = _gelu_tanh(y2 + res).reshape(1, H, W, C)


def basicmodule_apply(params, x_nchw):
    """Basicmodule forward.  x_nchw: (N, C, H, W) f32 -> (N, C, H, W) f32."""
    w1, sb1, w2, sb2 = params["w1"], params["sb1"], params["w2"], params["sb2"]
    N, C, H, W = x_nchw.shape
    Hp, Wp = H + 2, W + 2

    x = jnp.transpose(x_nchw, (0, 2, 3, 1)).astype(jnp.float32)   # NCHW -> NHWC
    xp = jnp.pad(x, ((0, 0), (1, 1), (1, 1), (0, 0)))             # one pad per forward

    out = pl.pallas_call(
        _basic_kernel,
        out_shape=jax.ShapeDtypeStruct((N, H, W, C), jnp.float32),
        grid=(N,),
        in_specs=[
            pl.BlockSpec((1, Hp, Wp, C), lambda n: (n, 0, 0, 0)),
            pl.BlockSpec((9 * C, C), lambda n: (0, 0)),
            pl.BlockSpec((2, C), lambda n: (0, 0)),
            pl.BlockSpec((9 * C, C), lambda n: (0, 0)),
            pl.BlockSpec((2, C), lambda n: (0, 0)),
        ],
        out_specs=pl.BlockSpec((1, H, W, C), lambda n: (n, 0, 0, 0)),
        scratch_shapes=[pltpu.VMEM((Hp, Wp, C), jnp.float32)],
        compiler_params=pltpu.CompilerParams(
            dimension_semantics=("parallel",)),   # batch axis -> v7x megacore
    )(xp, w1, sb1, w2, sb2)

    return jnp.transpose(out, (0, 3, 1, 2))                       # NHWC -> NCHW


# ----------------------------------------------------------------------------
# Deterministic parameter construction (conv bias + eval-mode BN folded into a
# per-channel scale/bias), plus f32 HWIO weights for the pure-JAX reference.
# ----------------------------------------------------------------------------
def init_params(key, in_chan, mid_chan):
    assert in_chan == mid_chan, "residual add requires in_chan == mid_chan"
    ks = jax.random.split(key, 12)

    def conv_bn(kw, kb, kg, kbe, km, kv, cin, cout):
        std = (2.0 / (9.0 * cin)) ** 0.5
        w = jax.random.normal(kw, (3, 3, cin, cout), jnp.float32) * std   # HWIO
        b = 0.05 * jax.random.normal(kb, (cout,), jnp.float32)
        gamma = 1.0 + 0.1 * jax.random.normal(kg, (cout,), jnp.float32)
        beta = 0.1 * jax.random.normal(kbe, (cout,), jnp.float32)
        mean = 0.1 * jax.random.normal(km, (cout,), jnp.float32)
        var = 1.0 + 0.1 * jax.random.uniform(kv, (cout,), jnp.float32)
        scale = gamma / jnp.sqrt(var + 1e-5)
        bias = beta + (b - mean) * scale
        w_im2col = w.reshape(9 * cin, cout).astype(jnp.bfloat16)
        sb = jnp.stack([scale, bias], axis=0).astype(jnp.float32)
        return w_im2col, sb, w

    w1, sb1, w1_hwio = conv_bn(*ks[0:6], in_chan, mid_chan)
    w2, sb2, w2_hwio = conv_bn(*ks[6:12], mid_chan, mid_chan)
    params = {"w1": w1, "sb1": sb1, "w2": w2, "sb2": sb2}
    ref_params = {"w1": w1_hwio, "w2": w2_hwio, "sb1": sb1, "sb2": sb2}
    return params, ref_params


# ----------------------------------------------------------------------------
# Pure-JAX reference (same bf16 operand precision / tanh GELU as the kernel)
# ----------------------------------------------------------------------------
def ref_forward(ref_params, x_nchw):
    x = jnp.transpose(x_nchw, (0, 2, 3, 1)).astype(jnp.float32)

    def conv(h, w):
        return lax.conv_general_dilated(
            h.astype(jnp.bfloat16), w.astype(jnp.bfloat16),
            window_strides=(1, 1), padding="SAME",
            dimension_numbers=("NHWC", "HWIO", "NHWC"),
            preferred_element_type=jnp.float32)

    sb1, sb2 = ref_params["sb1"], ref_params["sb2"]
    h = conv(x, ref_params["w1"]) * sb1[0] + sb1[1]
    h = jax.nn.gelu(h, approximate=True)
    y = conv(h, ref_params["w2"]) * sb2[0] + sb2[1]
    y = jax.nn.gelu(y + x, approximate=True)
    return jnp.transpose(y, (0, 3, 1, 2))


# ----------------------------------------------------------------------------
if __name__ == "__main__":
    key = jax.random.PRNGKey(0)
    kx, kp = jax.random.split(key)

    N, C, H, W = 2, 128, 16, 16            # Basicmodule(in_chan=128, mid_chan=128)
    x = jax.random.normal(kx, (N, C, H, W), jnp.float32)
    params, ref_params = init_params(kp, C, C)

    fwd = jax.jit(basicmodule_apply)
    out = jax.block_until_ready(fwd(params, x))

    assert out.shape == (N, C, H, W), out.shape
    assert bool(jnp.all(jnp.isfinite(out)))

    expect = jax.block_until_ready(jax.jit(ref_forward)(ref_params, x))
    max_err = float(jnp.max(jnp.abs(out - expect)))
    assert max_err < 5e-2, f"max abs err vs reference: {max_err}"

    print("KERNEL_OK")
</pallas_src>

<mosaic_0001>
module attributes {stable_mosaic.version = 11 : i64} {
  func.func @_basic_kernel(%arg0: i32, %arg1: memref<1x18x18x128xf32, #tpu.memory_space<vmem>>, %arg2: memref<1152x128xbf16, #tpu.memory_space<vmem>>, %arg3: memref<2x128xf32, #tpu.memory_space<vmem>>, %arg4: memref<1152x128xbf16, #tpu.memory_space<vmem>>, %arg5: memref<2x128xf32, #tpu.memory_space<vmem>>, %arg6: memref<1x16x16x128xf32, #tpu.memory_space<vmem>>, %arg7: memref<18x18x128xf32, #tpu.memory_space<vmem>>) attributes {dimension_semantics = [#tpu.dimension_semantics<parallel>], iteration_bounds = array<i64: 2>, scalar_prefetch = 0 : i64, scratch_operands = 1 : i64, tpu.core_type = #tpu.core_type<tc>, window_params = [{transform_indices = @transform_0, window_bounds = array<i64: 1, 18, 18, 128>}, {pipeline_mode = #tpu.pipeline_mode<synchronous>, transform_indices = @transform_1, window_bounds = array<i64: 1152, 128>}, {pipeline_mode = #tpu.pipeline_mode<synchronous>, transform_indices = @transform_2, window_bounds = array<i64: 2, 128>}, {pipeline_mode = #tpu.pipeline_mode<synchronous>, transform_indices = @transform_3, window_bounds = array<i64: 1152, 128>}, {pipeline_mode = #tpu.pipeline_mode<synchronous>, transform_indices = @transform_4, window_bounds = array<i64: 2, 128>}, {transform_indices = @transform_5, window_bounds = array<i64: 1, 16, 16, 128>}]} {
    %c0 = arith.constant 0 : index
    %c0_0 = arith.constant 0 : index
    %c0_1 = arith.constant 0 : index
    %c0_2 = arith.constant 0 : index
    %0 = vector.load %arg1[%c0, %c0_0, %c0_1, %c0_2] : memref<1x18x18x128xf32, #tpu.memory_space<vmem>>, vector<1x18x18x128xf32>
    %1 = vector.shape_cast %0 : vector<1x18x18x128xf32> to vector<18x18x128xf32>
    %2 = vector.extract_strided_slice %1 {offsets = [0, 0, 0], sizes = [16, 16, 128], strides = [1, 1, 1]} : vector<18x18x128xf32> to vector<16x16x128xf32>
    %3 = vector.shape_cast %2 : vector<16x16x128xf32> to vector<256x128xf32>
    %4 = vector.extract_strided_slice %1 {offsets = [0, 1, 0], sizes = [16, 16, 128], strides = [1, 1, 1]} : vector<18x18x128xf32> to vector<16x16x128xf32>
    %5 = vector.shape_cast %4 : vector<16x16x128xf32> to vector<256x128xf32>
    %6 = vector.extract_strided_slice %1 {offsets = [0, 2, 0], sizes = [16, 16, 128], strides = [1, 1, 1]} : vector<18x18x128xf32> to vector<16x16x128xf32>
    %7 = vector.shape_cast %6 : vector<16x16x128xf32> to vector<256x128xf32>
    %8 = vector.extract_strided_slice %1 {offsets = [1, 0, 0], sizes = [16, 16, 128], strides = [1, 1, 1]} : vector<18x18x128xf32> to vector<16x16x128xf32>
    %9 = vector.shape_cast %8 : vector<16x16x128xf32> to vector<256x128xf32>
    %10 = vector.extract_strided_slice %1 {offsets = [1, 1, 0], sizes = [16, 16, 128], strides = [1, 1, 1]} : vector<18x18x128xf32> to vector<16x16x128xf32>
    %11 = vector.shape_cast %10 : vector<16x16x128xf32> to vector<256x128xf32>
    %12 = vector.extract_strided_slice %1 {offsets = [1, 2, 0], sizes = [16, 16, 128], strides = [1, 1, 1]} : vector<18x18x128xf32> to vector<16x16x128xf32>
    %13 = vector.shape_cast %12 : vector<16x16x128xf32> to vector<256x128xf32>
    %14 = vector.extract_strided_slice %1 {offsets = [2, 0, 0], sizes = [16, 16, 128], strides = [1, 1, 1]} : vector<18x18x128xf32> to vector<16x16x128xf32>
    %15 = vector.shape_cast %14 : vector<16x16x128xf32> to vector<256x128xf32>
    %16 = vector.extract_strided_slice %1 {offsets = [2, 1, 0], sizes = [16, 16, 128], strides = [1, 1, 1]} : vector<18x18x128xf32> to vector<16x16x128xf32>
    %17 = vector.shape_cast %16 : vector<16x16x128xf32> to vector<256x128xf32>
    %18 = vector.extract_strided_slice %1 {offsets = [2, 2, 0], sizes = [16, 16, 128], strides = [1, 1, 1]} : vector<18x18x128xf32> to vector<16x16x128xf32>
    %19 = vector.shape_cast %18 : vector<16x16x128xf32> to vector<256x128xf32>
    %20 = tpu.concatenate %3, %5, %7, %9, %11, %13, %15, %17, %19 in 1 : vector<256x128xf32>, vector<256x128xf32>, vector<256x128xf32>, vector<256x128xf32>, vector<256x128xf32>, vector<256x128xf32>, vector<256x128xf32>, vector<256x128xf32>, vector<256x128xf32> -> vector<256x1152xf32>
    %21 = arith.truncf %20 : vector<256x1152xf32> to vector<256x1152xbf16>
    %c0_3 = arith.constant 0 : index
    %c0_4 = arith.constant 0 : index
    %22 = vector.load %arg2[%c0_3, %c0_4] : memref<1152x128xbf16, #tpu.memory_space<vmem>>, vector<1152x128xbf16>
    %cst = arith.constant dense<0.000000e+00> : vector<256x128xf32>
    %23 = tpu.matmul %21, %22, %cst {dimension_numbers = #tpu.dot_dimension_numbers<[1], [0], [0], [1], [0, 0, 1, 1], [], []>} : vector<256x1152xbf16>, vector<1152x128xbf16>, vector<256x128xf32> -> vector<256x128xf32>
    %c0_5 = arith.constant 0 : index
    %c0_6 = arith.constant 0 : index
    %24 = vector.load %arg3[%c0_5, %c0_6] : memref<2x128xf32, #tpu.memory_space<vmem>>, vector<1x128xf32>
    %25 = vector.broadcast %24 : vector<1x128xf32> to vector<256x128xf32>
    %26 = arith.mulf %23, %25 : vector<256x128xf32>
    %c1 = arith.constant 1 : index
    %c0_7 = arith.constant 0 : index
    %27 = vector.load %arg3[%c1, %c0_7] : memref<2x128xf32, #tpu.memory_space<vmem>>, vector<1x128xf32>
    %28 = vector.broadcast %27 : vector<1x128xf32> to vector<256x128xf32>
    %29 = arith.addf %26, %28 : vector<256x128xf32>
    %cst_8 = arith.constant 5.000000e-01 : f32
    %30 = vector.broadcast %cst_8 : f32 to vector<256x128xf32>
    %31 = arith.mulf %30, %29 : vector<256x128xf32>
    %cst_9 = arith.constant 4.471500e-02 : f32
    %32 = vector.broadcast %cst_9 : f32 to vector<256x128xf32>
    %33 = arith.mulf %32, %29 : vector<256x128xf32>
    %34 = arith.mulf %33, %29 : vector<256x128xf32>
    %35 = arith.mulf %34, %29 : vector<256x128xf32>
    %36 = arith.addf %29, %35 : vector<256x128xf32>
    %cst_10 = arith.constant 0.797884583 : f32
    %37 = vector.broadcast %cst_10 : f32 to vector<256x128xf32>
    %38 = arith.mulf %37, %36 : vector<256x128xf32>
    %39 = math.tanh %38 : vector<256x128xf32>
    %cst_11 = arith.constant 1.000000e+00 : f32
    %40 = vector.broadcast %cst_11 : f32 to vector<256x128xf32>
    %41 = arith.addf %40, %39 : vector<256x128xf32>
    %42 = arith.mulf %31, %41 : vector<256x128xf32>
    %cst_12 = arith.constant 0.000000e+00 : f32
    %43 = vector.broadcast %cst_12 : f32 to vector<18x18x128xf32>
    %c0_13 = arith.constant 0 : index
    %c0_14 = arith.constant 0 : index
    %c0_15 = arith.constant 0 : index
    %44 = vector.load %arg7[%c0_13, %c0_14, %c0_15] : memref<18x18x128xf32, #tpu.memory_space<vmem>>, vector<18x18x128xf32>
    tpu.vector_store %arg7[%c0_13, %c0_14, %c0_15], %43 {strides = array<i32>} : memref<18x18x128xf32, #tpu.memory_space<vmem>>, vector<18x18x128xf32>,
    %45 = vector.shape_cast %42 : vector<256x128xf32> to vector<16x16x128xf32>
    %c1_16 = arith.constant 1 : index
    %c1_17 = arith.constant 1 : index
    %c0_18 = arith.constant 0 : index
    %46 = vector.load %arg7[%c1_16, %c1_17, %c0_18] : memref<18x18x128xf32, #tpu.memory_space<vmem>>, vector<16x16x128xf32>
    tpu.vector_store %arg7[%c1_16, %c1_17, %c0_18], %45 {strides = array<i32>} : memref<18x18x128xf32, #tpu.memory_space<vmem>>, vector<16x16x128xf32>,
    %c0_19 = arith.constant 0 : index
    %c0_20 = arith.constant 0 : index
    %c0_21 = arith.constant 0 : index
    %47 = vector.load %arg7[%c0_19, %c0_20, %c0_21] : memref<18x18x128xf32, #tpu.memory_space<vmem>>, vector<18x18x128xf32>
    %48 = vector.extract_strided_slice %47 {offsets = [0, 0, 0], sizes = [16, 16, 128], strides = [1, 1, 1]} : vector<18x18x128xf32> to vector<16x16x128xf32>
    %49 = vector.shape_cast %48 : vector<16x16x128xf32> to vector<256x128xf32>
    %50 = vector.extract_strided_slice %47 {offsets = [0, 1, 0], sizes = [16, 16, 128], strides = [1, 1, 1]} : vector<18x18x128xf32> to vector<16x16x128xf32>
    %51 = vector.shape_cast %50 : vector<16x16x128xf32> to vector<256x128xf32>
    %52 = vector.extract_strided_slice %47 {offsets = [0, 2, 0], sizes = [16, 16, 128], strides = [1, 1, 1]} : vector<18x18x128xf32> to vector<16x16x128xf32>
    %53 = vector.shape_cast %52 : vector<16x16x128xf32> to vector<256x128xf32>
    %54 = vector.extract_strided_slice %47 {offsets = [1, 0, 0], sizes = [16, 16, 128], strides = [1, 1, 1]} : vector<18x18x128xf32> to vector<16x16x128xf32>
    %55 = vector.shape_cast %54 : vector<16x16x128xf32> to vector<256x128xf32>
    %56 = vector.extract_strided_slice %47 {offsets = [1, 1, 0], sizes = [16, 16, 128], strides = [1, 1, 1]} : vector<18x18x128xf32> to vector<16x16x128xf32>
    %57 = vector.shape_cast %56 : vector<16x16x128xf32> to vector<256x128xf32>
    %58 = vector.extract_strided_slice %47 {offsets = [1, 2, 0], sizes = [16, 16, 128], strides = [1, 1, 1]} : vector<18x18x128xf32> to vector<16x16x128xf32>
    %59 = vector.shape_cast %58 : vector<16x16x128xf32> to vector<256x128xf32>
    %60 = vector.extract_strided_slice %47 {offsets = [2, 0, 0], sizes = [16, 16, 128], strides = [1, 1, 1]} : vector<18x18x128xf32> to vector<16x16x128xf32>
    %61 = vector.shape_cast %60 : vector<16x16x128xf32> to vector<256x128xf32>
    %62 = vector.extract_strided_slice %47 {offsets = [2, 1, 0], sizes = [16, 16, 128], strides = [1, 1, 1]} : vector<18x18x128xf32> to vector<16x16x128xf32>
    %63 = vector.shape_cast %62 : vector<16x16x128xf32> to vector<256x128xf32>
    %64 = vector.extract_strided_slice %47 {offsets = [2, 2, 0], sizes = [16, 16, 128], strides = [1, 1, 1]} : vector<18x18x128xf32> to vector<16x16x128xf32>
    %65 = vector.shape_cast %64 : vector<16x16x128xf32> to vector<256x128xf32>
    %66 = tpu.concatenate %49, %51, %53, %55, %57, %59, %61, %63, %65 in 1 : vector<256x128xf32>, vector<256x128xf32>, vector<256x128xf32>, vector<256x128xf32>, vector<256x128xf32>, vector<256x128xf32>, vector<256x128xf32>, vector<256x128xf32>, vector<256x128xf32> -> vector<256x1152xf32>
    %67 = arith.truncf %66 : vector<256x1152xf32> to vector<256x1152xbf16>
    %c0_22 = arith.constant 0 : index
    %c0_23 = arith.constant 0 : index
    %68 = vector.load %arg4[%c0_22, %c0_23] : memref<1152x128xbf16, #tpu.memory_space<vmem>>, vector<1152x128xbf16>
    %cst_24 = arith.constant dense<0.000000e+00> : vector<256x128xf32>
    %69 = tpu.matmul %67, %68, %cst_24 {dimension_numbers = #tpu.dot_dimension_numbers<[1], [0], [0], [1], [0, 0, 1, 1], [], []>} : vector<256x1152xbf16>, vector<1152x128xbf16>, vector<256x128xf32> -> vector<256x128xf32>
    %c0_25 = arith.constant 0 : index
    %c0_26 = arith.constant 0 : index
    %70 = vector.load %arg5[%c0_25, %c0_26] : memref<2x128xf32, #tpu.memory_space<vmem>>, vector<1x128xf32>
    %71 = vector.broadcast %70 : vector<1x128xf32> to vector<256x128xf32>
    %72 = arith.mulf %69, %71 : vector<256x128xf32>
    %c1_27 = arith.constant 1 : index
    %c0_28 = arith.constant 0 : index
    %73 = vector.load %arg5[%c1_27, %c0_28] : memref<2x128xf32, #tpu.memory_space<vmem>>, vector<1x128xf32>
    %74 = vector.broadcast %73 : vector<1x128xf32> to vector<256x128xf32>
    %75 = arith.addf %72, %74 : vector<256x128xf32>
    %76 = vector.extract_strided_slice %1 {offsets = [1, 1, 0], sizes = [16, 16, 128], strides = [1, 1, 1]} : vector<18x18x128xf32> to vector<16x16x128xf32>
    %77 = vector.shape_cast %76 : vector<16x16x128xf32> to vector<256x128xf32>
    %78 = arith.addf %75, %77 : vector<256x128xf32>
    %cst_29 = arith.constant 5.000000e-01 : f32
    %79 = vector.broadcast %cst_29 : f32 to vector<256x128xf32>
    %80 = arith.mulf %79, %78 : vector<256x128xf32>
    %cst_30 = arith.constant 4.471500e-02 : f32
    %81 = vector.broadcast %cst_30 : f32 to vector<256x128xf32>
    %82 = arith.mulf %81, %78 : vector<256x128xf32>
    %83 = arith.mulf %82, %78 : vector<256x128xf32>
    %84 = arith.mulf %83, %78 : vector<256x128xf32>
    %85 = arith.addf %78, %84 : vector<256x128xf32>
    %cst_31 = arith.constant 0.797884583 : f32
    %86 = vector.broadcast %cst_31 : f32 to vector<256x128xf32>
    %87 = arith.mulf %86, %85 : vector<256x128xf32>
    %88 = math.tanh %87 : vector<256x128xf32>
    %cst_32 = arith.constant 1.000000e+00 : f32
    %89 = vector.broadcast %cst_32 : f32 to vector<256x128xf32>
    %90 = arith.addf %89, %88 : vector<256x128xf32>
    %91 = arith.mulf %80, %90 : vector<256x128xf32>
    %92 = vector.shape_cast %91 : vector<256x128xf32> to vector<1x16x16x128xf32>
    %c0_33 = arith.constant 0 : index
    %c0_34 = arith.constant 0 : index
    %c0_35 = arith.constant 0 : index
    %c0_36 = arith.constant 0 : index
    %93 = vector.load %arg6[%c0_33, %c0_34, %c0_35, %c0_36] : memref<1x16x16x128xf32, #tpu.memory_space<vmem>>, vector<1x16x16x128xf32>
    tpu.vector_store %arg6[%c0_33, %c0_34, %c0_35, %c0_36], %92 {strides = array<i32>} : memref<1x16x16x128xf32, #tpu.memory_space<vmem>>, vector<1x16x16x128xf32>,
    return
  }
  func.func @transform_0(%arg0: i32) -> (i32, i32, i32, i32) {
    %c0_i32 = arith.constant 0 : i32
    %c0_i32_0 = arith.constant 0 : i32
    %c0_i32_1 = arith.constant 0 : i32
    %c0_i32_2 = arith.constant 0 : i32
    return %arg0, %c0_i32, %c0_i32_0, %c0_i32_1 : i32, i32, i32, i32
  }
  func.func @transform_1(%arg0: i32) -> (i32, i32) {
    %c0_i32 = arith.constant 0 : i32
    %c0_i32_0 = arith.constant 0 : i32
    %c0_i32_1 = arith.constant 0 : i32
    return %c0_i32, %c0_i32_0 : i32, i32
  }
  func.func @transform_2(%arg0: i32) -> (i32, i32) {
    %c0_i32 = arith.constant 0 : i32
    %c0_i32_0 = arith.constant 0 : i32
    %c0_i32_1 = arith.constant 0 : i32
    return %c0_i32, %c0_i32_0 : i32, i32
  }
  func.func @transform_3(%arg0: i32) -> (i32, i32) {
    %c0_i32 = arith.constant 0 : i32
    %c0_i32_0 = arith.constant 0 : i32
    %c0_i32_1 = arith.constant 0 : i32
    return %c0_i32, %c0_i32_0 : i32, i32
  }
  func.func @transform_4(%arg0: i32) -> (i32, i32) {
    %c0_i32 = arith.constant 0 : i32
    %c0_i32_0 = arith.constant 0 : i32
    %c0_i32_1 = arith.constant 0 : i32
    return %c0_i32, %c0_i32_0 : i32, i32
  }
  func.func @transform_5(%arg0: i32) -> (i32, i32, i32, i32) {
    %c0_i32 = arith.constant 0 : i32
    %c0_i32_0 = arith.constant 0 : i32
    %c0_i32_1 = arith.constant 0 : i32
    %c0_i32_2 = arith.constant 0 : i32
    return %arg0, %c0_i32, %c0_i32_0, %c0_i32_1 : i32, i32, i32, i32
  }
}

</mosaic_0001>

<llo_original>
// kernel: basicmodule_apply.1
$region0: #{basicmodule_apply.1}
  #allocation0 [shape = 'u32[]', space=smem, size = 0x4, offset = 0x4, fixed_abs, tag = 'smem constant byte address 0x4 - core index']
  #allocation1 [shape = 'u32[144,128]{1,0:T(1,128)}', space=vmem, size = 0x12000, scoped, tag = 'internal scratch']
  #allocation2 [shape = 'f32[18,18,128]{2,1,0:T(8,128)}', space=vmem, size = 0x36000, scoped, tag = 'scratch operand']
  %s0 = inlined_call_operand.vmem [shape: f32[2,18,18,128], index: 0, kind: input, shape index: {}]
  %s1 = inlined_call_operand.vmem [shape: bf16[1152,128], index: 1, kind: input, shape index: {}]
  %s2 = inlined_call_operand.vmem [shape: f32[2,128], index: 2, kind: input, shape index: {}]
  %s3 = inlined_call_operand.vmem [shape: bf16[1152,128], index: 3, kind: input, shape index: {}]
  %s4 = inlined_call_operand.vmem [shape: f32[2,128], index: 4, kind: input, shape index: {}]
  %s5 = inlined_call_operand.hbm [shape: f32[2,16,16,128], index: 5, kind: output, shape index: {}]
  %s6 = sld [smem:[#allocation0]]
  $region53: #{basicmodule_apply.1} parent=0
    _
  %s8 = ssub.s32 1, %s6
  %s9 = scalar_select 0, %s8, %s6
  $region1: #{basicmodule_apply.1} parent=0
    #allocation3 [shape = 'u8[262144]{0}', space=vmem, size = 0x40000, scoped, tag = 'output window, operand 0']
    #allocation4 [shape = 's32[2]{0}', space=sflag, size = 0x8, scoped, tag = 'scoped memory for basicmodule_apply.1']
    %10 = vsyncpa [#allocation4], 0
    %s11 = scalar_lea.sflag [#allocation4], 1
    %12 = vsyncpa %s11, 0
    loop: start=0, step=1, limit=4
    $region2: #{basicmodule_apply.1} parent=1 // loop_pre_header
      _
    $region3: #{basicmodule_apply.1} parent=1 // loop_header
      %s14 = sphi 0, %s18
      %p15 = scmp.ge.s32.totalorder %s14, 4
      %s24 = sphi 0, %s26
      %s27 = sphi 0, %s24
      %s28 = sphi 0, %s27
      %s44 = sphi 0, %s28
      %s48 = sphi 0, %s48
      %s50 = sphi 0, %s48
      %s51 = sphi 0, %s50
      %s65 = sphi 0, %s51
      %s69 = sphi 0, %s69
      %s71 = sphi 0, %s69
      %s72 = sphi 0, %s71
      %s86 = sphi 0, %s72
      %s90 = sphi 0, %s90
      %s92 = sphi 0, %s90
      %s93 = sphi 0, %s92
      %s107 = sphi 0, %s93
      %s111 = sphi 0, %s111
      %s113 = sphi 0, %s111
      %s114 = sphi 0, %s113
      %s128 = sphi 0, %s114
      %s134 = sphi 0, %s136
      %s137 = sphi 0, %s134
      %s138 = sphi 0, %s137
      %s154 = sphi 0, %s138
    $region4: #{basicmodule_apply.1} parent=1 // loop_header_branch
      %17 = sbr.rel (%p15) target = $region8
    $region5: #{basicmodule_apply.1} parent=1 // loop_body
      %s19 = ssub.s32 %s14, 1
      %s20 = ssub.s32 %s14, 2
      %s21 = sadd.s32 %s14, 1
      %s22 = ssub.s32 %s14, %s21
      %p23 = scmp.eq.s32.totalorder %s22, 0
      %s25 = sadd.s32 %s24, 1
      %s26 = scalar_select %p23, %s24, %s25
      %p29 = pneg %p23
      %p30 = scmp.eq.s32.totalorder %s14, 1
      %p31 = por %p29, %p30
      %p32 = scmp.ne.s32.totalorder %s24, %s27
      %p33 = scmp.eq.s32.totalorder %s14, 0
      %p34 = por %p32, %p33
      %p35 = scmp.ne.s32.totalorder %s24, %s27
      %p36 = scmp.eq.s32.totalorder %s19, 1
      %p37 = por %p35, %p36
      %p38 = scmp.ne.s32.totalorder %s27, %s28
      %p39 = scmp.eq.s32.totalorder %s19, 0
      %p40 = por %p38, %p39
      %p41 = scmp.ne.s32.totalorder %s27, %s28
      %p42 = scmp.eq.s32.totalorder %s20, 1
      %p43 = por %p41, %p42
      %p45 = scmp.ne.s32.totalorder %s28, %s44
      %p46 = scmp.eq.s32.totalorder %s20, 0
      %p47 = por %p45, %p46
      %s49 = sadd.s32 %s48, 1
      %p52 = scmp.eq.s32.totalorder %s14, 1
      %p53 = scmp.ne.s32.totalorder %s48, %s50
      %p54 = scmp.eq.s32.totalorder %s14, 0
      %p55 = por %p53, %p54
      %p56 = scmp.ne.s32.totalorder %s48, %s50
      %p57 = scmp.eq.s32.totalorder %s19, 1
      %p58 = por %p56, %p57
      %p59 = scmp.ne.s32.totalorder %s50, %s51
      %p60 = scmp.eq.s32.totalorder %s19, 0
      %p61 = por %p59, %p60
      %p62 = scmp.ne.s32.totalorder %s50, %s51
      %p63 = scmp.eq.s32.totalorder %s20, 1
      %p64 = por %p62, %p63
      %p66 = scmp.ne.s32.totalorder %s51, %s65
      %p67 = scmp.eq.s32.totalorder %s20, 0
      %p68 = por %p66, %p67
      %s70 = sadd.s32 %s69, 1
      %p73 = scmp.eq.s32.totalorder %s14, 1
      %p74 = scmp.ne.s32.totalorder %s69, %s71
      %p75 = scmp.eq.s32.totalorder %s14, 0
      %p76 = por %p74, %p75
      %p77 = scmp.ne.s32.totalorder %s69, %s71
      %p78 = scmp.eq.s32.totalorder %s19, 1
      %p79 = por %p77, %p78
      %p80 = scmp.ne.s32.totalorder %s71, %s72
      %p81 = scmp.eq.s32.totalorder %s19, 0
      %p82 = por %p80, %p81
      %p83 = scmp.ne.s32.totalorder %s71, %s72
      %p84 = scmp.eq.s32.totalorder %s20, 1
      %p85 = por %p83, %p84
      %p87 = scmp.ne.s32.totalorder %s72, %s86
      %p88 = scmp.eq.s32.totalorder %s20, 0
      %p89 = por %p87, %p88
      %s91 = sadd.s32 %s90, 1
      %p94 = scmp.eq.s32.totalorder %s14, 1
      %p95 = scmp.ne.s32.totalorder %s90, %s92
      %p96 = scmp.eq.s32.totalorder %s14, 0
      %p97 = por %p95, %p96
      %p98 = scmp.ne.s32.totalorder %s90, %s92
      %p99 = scmp.eq.s32.totalorder %s19, 1
      %p100 = por %p98, %p99
      %p101 = scmp.ne.s32.totalorder %s92, %s93
      %p102 = scmp.eq.s32.totalorder %s19, 0
      %p103 = por %p101, %p102
      %p104 = scmp.ne.s32.totalorder %s92, %s93
      %p105 = scmp.eq.s32.totalorder %s20, 1
      %p106 = por %p104, %p105
      %p108 = scmp.ne.s32.totalorder %s93, %s107
      %p109 = scmp.eq.s32.totalorder %s20, 0
      %p110 = por %p108, %p109
      %s112 = sadd.s32 %s111, 1
      %p115 = scmp.eq.s32.totalorder %s14, 1
      %p116 = scmp.ne.s32.totalorder %s111, %s113
      %p117 = scmp.eq.s32.totalorder %s14, 0
      %p118 = por %p116, %p117
      %p119 = scmp.ne.s32.totalorder %s111, %s113
      %p120 = scmp.eq.s32.totalorder %s19, 1
      %p121 = por %p119, %p120
      %p122 = scmp.ne.s32.totalorder %s113, %s114
      %p123 = scmp.eq.s32.totalorder %s19, 0
      %p124 = por %p122, %p123
      %p125 = scmp.ne.s32.totalorder %s113, %s114
      %p126 = scmp.eq.s32.totalorder %s20, 1
      %p127 = por %p125, %p126
      %p129 = scmp.ne.s32.totalorder %s114, %s128
      %p130 = scmp.eq.s32.totalorder %s20, 0
      %p131 = por %p129, %p130
      %s132 = ssub.s32 %s14, %s21
      %p133 = scmp.eq.s32.totalorder %s132, 0
      %s135 = sadd.s32 %s134, 1
      %s136 = scalar_select %p133, %s134, %s135
      %p139 = pneg %p133
      %p140 = scmp.eq.s32.totalorder %s14, 1
      %p141 = por %p139, %p140
      %p142 = scmp.ne.s32.totalorder %s134, %s137
      %p143 = scmp.eq.s32.totalorder %s14, 0
      %p144 = por %p142, %p143
      %p145 = scmp.ne.s32.totalorder %s134, %s137
      %p146 = scmp.eq.s32.totalorder %s19, 1
      %p147 = por %p145, %p146
      %p148 = scmp.ne.s32.totalorder %s137, %s138
      %p149 = scmp.eq.s32.totalorder %s19, 0
      %p150 = por %p148, %p149
      %p151 = scmp.ne.s32.totalorder %s137, %s138
      %p152 = scmp.eq.s32.totalorder %s20, 1
      %p153 = por %p151, %p152
      %p155 = scmp.ne.s32.totalorder %s138, %s154
      %p156 = scmp.eq.s32.totalorder %s20, 0
      %p157 = por %p155, %p156
      %p158 = scmp.le.s32.totalorder 1, %s14
      %p159 = scmp.lt.s32.totalorder %s14, 3
      %p160 = pnand %p158, %p159
      %p161 = pneg %p160
      // Predicated region
      $region9: #{basicmodule_apply.1} parent=5 // pred_check
        _
      $region10: #{basicmodule_apply.1} parent=5 // pred_check_branch
        %163 = sbr.rel (%p160) target = $region12
      $region11: #{basicmodule_apply.1} parent=5 // pred_region
        %s164 = ssub.s32 %s14, 1
        // Predicated region
        $region13: #{basicmodule_apply.1} parent=11 // pred_check
          %p165 = pneg %p61
        $region14: #{basicmodule_apply.1} parent=11 // pred_check_branch
          %167 = sbr.rel (%p165) target = $region16
        $region15: #{basicmodule_apply.1} parent=11 // pred_region
          _
        $region16: #{basicmodule_apply.1} parent=11 // pred_fallthru
          _
        // Predicated region
        $region17: #{basicmodule_apply.1} parent=11 // pred_check
          %p168 = pneg %p82
        $region18: #{basicmodule_apply.1} parent=11 // pred_check_branch
          %170 = sbr.rel (%p168) target = $region20
        $region19: #{basicmodule_apply.1} parent=11 // pred_region
          _
        $region20: #{basicmodule_apply.1} parent=11 // pred_fallthru
          _
        // Predicated region
        $region21: #{basicmodule_apply.1} parent=11 // pred_check
          %p171 = pneg %p103
        $region22: #{basicmodule_apply.1} parent=11 // pred_check_branch
          %173 = sbr.rel (%p171) target = $region24
        $region23: #{basicmodule_apply.1} parent=11 // pred_region
          _
        $region24: #{basicmodule_apply.1} parent=11 // pred_fallthru
          _
        // Predicated region
        $region25: #{basicmodule_apply.1} parent=11 // pred_check
          %p174 = pneg %p124
        $region26: #{basicmodule_apply.1} parent=11 // pred_check_branch
          %176 = sbr.rel (%p174) target = $region28
        $region27: #{basicmodule_apply.1} parent=11 // pred_region
          _
        $region28: #{basicmodule_apply.1} parent=11 // pred_fallthru
          _
      $region12: #{basicmodule_apply.1} parent=5 // pred_fallthru
        _
      %p177 = scmp.lt.s32.totalorder %s14, 2
      // Predicated region
      $region29: #{basicmodule_apply.1} parent=5 // pred_check
        %p178 = pneg %p177
      $region30: #{basicmodule_apply.1} parent=5 // pred_check_branch
        %180 = sbr.rel (%p178) target = $region32
      $region31: #{basicmodule_apply.1} parent=5 // pred_region
        // Predicated region
        $region33: #{basicmodule_apply.1} parent=31 // pred_check
          %p181 = pneg %p34
        $region34: #{basicmodule_apply.1} parent=31 // pred_check_branch
          %183 = sbr.rel (%p181) target = $region36
        $region35: #{basicmodule_apply.1} parent=31 // pred_region
          %p184 = scmp.lt.s32.totalorder %s14, 1
          %s185 = scalar_select %p184, %s14, 1
          %s186 = smul.addr %s185, 54
          %s187 = smul.addr %s186, 8
          %s188 = scalar_lea.vmem %s0, %s187
        $region36: #{basicmodule_apply.1} parent=31 // pred_fallthru
          _
      $region32: #{basicmodule_apply.1} parent=5 // pred_fallthru
        _
      %p189 = scmp.le.s32.totalorder 1, %s14
      %p190 = scmp.lt.s32.totalorder %s14, 3
      %p191 = pnand %p189, %p190
      %p192 = pneg %p191
      // Predicated region
      $region37: #{basicmodule_apply.1} parent=5 // pred_check
        _
      $region38: #{basicmodule_apply.1} parent=5 // pred_check_branch
        %194 = sbr.rel (%p191) target = $region40
      $region39: #{basicmodule_apply.1} parent=5 // pred_region
        %s195 = ssub.s32 %s14, 1
        %p196 = scmp.lt.s32.totalorder %s19, 1
        %s197 = scalar_select %p196, %s19, 1
        %s198 = smul.addr %s197, 54
        %s199 = smul.addr %s198, 8
        %s200 = scalar_lea.vmem %s0, %s199
        %p201 = pneg %p40
        %p202 = pneg %p37
        %p203 = pneg %p61
        %p204 = pneg %p58
        %p205 = pneg %p82
        %p206 = pneg %p79
        %p207 = pneg %p103
        %p208 = pneg %p100
        %p209 = pneg %p124
        %p210 = pneg %p121
        %p211 = pneg %p150
        %p212 = pneg %p147
        %s213 = sand.u32 %s137, 1
        %s214 = scalar_lea.sflag [#allocation4], %s213
        %s215 = sand.u32 %s137, 1
        %s216 = smul.addr %s215, 256
        %s217 = scalar_lea.vmem [#allocation3], %s216
        %p218 = scmp.lt.s32.totalorder %s19, 1
        %s219 = scalar_select %p218, %s19, 1
        %s220 = smul.addr %s219, 54
        %s221 = smul.addr %s220, 8
        %s222 = scalar_lea.vmem %s0, %s221
        %v224 = vld [vmem:[%s222] sm:$0xff]
        %v225 = vld [vmem:[%s222 + $0x8] sm:$0xff]
        %v226 = vld [vmem:[%s222 + $0x10] sm:$0x3]
        %v227 = vld [vmem:[%s222 + $0x18] sm:$0xff]
        %v228 = vld [vmem:[%s222 + $0x20] sm:$0xff]
        %v229 = vld [vmem:[%s222 + $0x28] sm:$0x3]
        %v230 = vld [vmem:[%s222 + $0x30] sm:$0xff]
        %v231 = vld [vmem:[%s222 + $0x38] sm:$0xff]
        %v232 = vld [vmem:[%s222 + $0x40] sm:$0x3]
        %v233 = vld [vmem:[%s222 + $0x48] sm:$0xff]
        %v234 = vld [vmem:[%s222 + $0x50] sm:$0xff]
        %v235 = vld [vmem:[%s222 + $0x58] sm:$0x3]
        %v236 = vld [vmem:[%s222 + $0x60] sm:$0xff]
        %v237 = vld [vmem:[%s222 + $0x68] sm:$0xff]
        %v238 = vld [vmem:[%s222 + $0x70] sm:$0x3]
        %v239 = vld [vmem:[%s222 + $0x78] sm:$0xff]
        %v240 = vld [vmem:[%s222 + $0x80] sm:$0xff]
        %v241 = vld [vmem:[%s222 + $0x88] sm:$0x3]
        %v242 = vld [vmem:[%s222 + $0x90] sm:$0xff]
        %v243 = vld [vmem:[%s222 + $0x98] sm:$0xff]
        %v244 = vld [vmem:[%s222 + $0xa0] sm:$0x3]
        %v245 = vld [vmem:[%s222 + $0xa8] sm:$0xff]
        %v246 = vld [vmem:[%s222 + $0xb0] sm:$0xff]
        %v247 = vld [vmem:[%s222 + $0xb8] sm:$0x3]
        %v248 = vld [vmem:[%s222 + $0xc0] sm:$0xff]
        %v249 = vld [vmem:[%s222 + $0xc8] sm:$0xff]
        %v250 = vld [vmem:[%s222 + $0xd0] sm:$0x3]
        %v251 = vld [vmem:[%s222 + $0xd8] sm:$0xff]
        %v252 = vld [vmem:[%s222 + $0xe0] sm:$0xff]
        %v253 = vld [vmem:[%s222 + $0xe8] sm:$0x3]
        %v254 = vld [vmem:[%s222 + $0xf0] sm:$0xff]
        %v255 = vld [vmem:[%s222 + $0xf8] sm:$0xff]
        %v256 = vld [vmem:[%s222 + $0x100] sm:$0x3]
        %v257 = vld [vmem:[%s222 + $0x108] sm:$0xff]
        %v258 = vld [vmem:[%s222 + $0x110] sm:$0xff]
        %v259 = vld [vmem:[%s222 + $0x118] sm:$0x3]
        %v260 = vld [vmem:[%s222 + $0x120] sm:$0xff]
        %v261 = vld [vmem:[%s222 + $0x128] sm:$0xff]
        %v262 = vld [vmem:[%s222 + $0x130] sm:$0x3]
        %v263 = vld [vmem:[%s222 + $0x138] sm:$0xff]
        %v264 = vld [vmem:[%s222 + $0x140] sm:$0xff]
        %v265 = vld [vmem:[%s222 + $0x148] sm:$0x3]
        %v266 = vld [vmem:[%s222 + $0x150] sm:$0xff]
        %v267 = vld [vmem:[%s222 + $0x158] sm:$0xff]
        %v268 = vld [vmem:[%s222 + $0x160] sm:$0x3]
        %v269 = vld [vmem:[%s222 + $0x168] sm:$0xff]
        %v270 = vld [vmem:[%s222 + $0x170] sm:$0xff]
        %v271 = vld [vmem:[%s222 + $0x178] sm:$0x3]
        %v272 = vld [vmem:[%s222 + $0x180] sm:$0xff]
        %v273 = vld [vmem:[%s222 + $0x188] sm:$0xff]
        %v274 = vld [vmem:[%s222 + $0x190] sm:$0x3]
        %v275 = vld [vmem:[%s222 + $0x198] sm:$0xff]
        %v276 = vld [vmem:[%s222 + $0x1a0] sm:$0xff]
        %v277 = vld [vmem:[%s222 + $0x1a8] sm:$0x3]
        %vm326 = vcmask 1046528
        %v327 = vrot.slane %v224, 1
        %v328 = vrot.slane %v225, 1
        %v329 = vsel %vm326, %v327, %v328
        %v330 = vrot.slane %v226, 1
        %v331 = vsel %vm326, %v328, %v330
        %v332 = vrot.slane %v227, 1
        %v333 = vrot.slane %v228, 1
        %v334 = vsel %vm326, %v332, %v333
        %v335 = vrot.slane %v229, 1
        %v336 = vsel %vm326, %v333, %v335
        %v337 = vrot.slane %v230, 1
        %v338 = vrot.slane %v231, 1
        %v339 = vsel %vm326, %v337, %v338
        %v340 = vrot.slane %v232, 1
        %v341 = vsel %vm326, %v338, %v340
        %v342 = vrot.slane %v233, 1
        %v343 = vrot.slane %v234, 1
        %v344 = vsel %vm326, %v342, %v343
        %v345 = vrot.slane %v235, 1
        %v346 = vsel %vm326, %v343, %v345
        %v347 = vrot.slane %v236, 1
        %v348 = vrot.slane %v237, 1
        %v349 = vsel %vm326, %v347, %v348
        %v350 = vrot.slane %v238, 1
        %v351 = vsel %vm326, %v348, %v350
        %v352 = vrot.slane %v239, 1
        %v353 = vrot.slane %v240, 1
        %v354 = vsel %vm326, %v352, %v353
        %v355 = vrot.slane %v241, 1
        %v356 = vsel %vm326, %v353, %v355
        %v357 = vrot.slane %v242, 1
        %v358 = vrot.slane %v243, 1
        %v359 = vsel %vm326, %v357, %v358
        %v360 = vrot.slane %v244, 1
        %v361 = vsel %vm326, %v358, %v360
        %v362 = vrot.slane %v245, 1
        %v363 = vrot.slane %v246, 1
        %v364 = vsel %vm326, %v362, %v363
        %v365 = vrot.slane %v247, 1
        %v366 = vsel %vm326, %v363, %v365
        %v367 = vrot.slane %v248, 1
        %v368 = vrot.slane %v249, 1
        %v369 = vsel %vm326, %v367, %v368
        %v370 = vrot.slane %v250, 1
        %v371 = vsel %vm326, %v368, %v370
        %v372 = vrot.slane %v251, 1
        %v373 = vrot.slane %v252, 1
        %v374 = vsel %vm326, %v372, %v373
        %v375 = vrot.slane %v253, 1
        %v376 = vsel %vm326, %v373, %v375
        %v377 = vrot.slane %v254, 1
        %v378 = vrot.slane %v255, 1
        %v379 = vsel %vm326, %v377, %v378
        %v380 = vrot.slane %v256, 1
        %v381 = vsel %vm326, %v378, %v380
        %v382 = vrot.slane %v257, 1
        %v383 = vrot.slane %v258, 1
        %v384 = vsel %vm326, %v382, %v383
        %v385 = vrot.slane %v259, 1
        %v386 = vsel %vm326, %v383, %v385
        %v387 = vrot.slane %v260, 1
        %v388 = vrot.slane %v261, 1
        %v389 = vsel %vm326, %v387, %v388
        %v390 = vrot.slane %v262, 1
        %v391 = vsel %vm326, %v388, %v390
        %v392 = vrot.slane %v263, 1
        %v393 = vrot.slane %v264, 1
        %v394 = vsel %vm326, %v392, %v393
        %v395 = vrot.slane %v265, 1
        %v396 = vsel %vm326, %v393, %v395
        %v397 = vrot.slane %v266, 1
        %v398 = vrot.slane %v267, 1
        %v399 = vsel %vm326, %v397, %v398
        %v400 = vrot.slane %v268, 1
        %v401 = vsel %vm326, %v398, %v400
        %v402 = vrot.slane %v269, 1
        %v403 = vrot.slane %v270, 1
        %v404 = vsel %vm326, %v402, %v403
        %v405 = vrot.slane %v271, 1
        %v406 = vsel %vm326, %v403, %v405
        %vm439 = vcmask 1045504
        %v440 = vrot.slane %v224, 2
        %v441 = vrot.slane %v225, 2
        %v442 = vsel %vm439, %v440, %v441
        %v443 = vrot.slane %v226, 2
        %v444 = vsel %vm439, %v441, %v443
        %v445 = vrot.slane %v227, 2
        %v446 = vrot.slane %v228, 2
        %v447 = vsel %vm439, %v445, %v446
        %v448 = vrot.slane %v229, 2
        %v449 = vsel %vm439, %v446, %v448
        %v450 = vrot.slane %v230, 2
        %v451 = vrot.slane %v231, 2
        %v452 = vsel %vm439, %v450, %v451
        %v453 = vrot.slane %v232, 2
        %v454 = vsel %vm439, %v451, %v453
        %v455 = vrot.slane %v233, 2
        %v456 = vrot.slane %v234, 2
        %v457 = vsel %vm439, %v455, %v456
        %v458 = vrot.slane %v235, 2
        %v459 = vsel %vm439, %v456, %v458
        %v460 = vrot.slane %v236, 2
        %v461 = vrot.slane %v237, 2
        %v462 = vsel %vm439, %v460, %v461
        %v463 = vrot.slane %v238, 2
        %v464 = vsel %vm439, %v461, %v463
        %v465 = vrot.slane %v239, 2
        %v466 = vrot.slane %v240, 2
        %v467 = vsel %vm439, %v465, %v466
        %v468 = vrot.slane %v241, 2
        %v469 = vsel %vm439, %v466, %v468
        %v470 = vrot.slane %v242, 2
        %v471 = vrot.slane %v243, 2
        %v472 = vsel %vm439, %v470, %v471
        %v473 = vrot.slane %v244, 2
        %v474 = vsel %vm439, %v471, %v473
        %v475 = vrot.slane %v245, 2
        %v476 = vrot.slane %v246, 2
        %v477 = vsel %vm439, %v475, %v476
        %v478 = vrot.slane %v247, 2
        %v479 = vsel %vm439, %v476, %v478
        %v480 = vrot.slane %v248, 2
        %v481 = vrot.slane %v249, 2
        %v482 = vsel %vm439, %v480, %v481
        %v483 = vrot.slane %v250, 2
        %v484 = vsel %vm439, %v481, %v483
        %v485 = vrot.slane %v251, 2
        %v486 = vrot.slane %v252, 2
        %v487 = vsel %vm439, %v485, %v486
        %v488 = vrot.slane %v253, 2
        %v489 = vsel %vm439, %v486, %v488
        %v490 = vrot.slane %v254, 2
        %v491 = vrot.slane %v255, 2
        %v492 = vsel %vm439, %v490, %v491
        %v493 = vrot.slane %v256, 2
        %v494 = vsel %vm439, %v491, %v493
        %v495 = vrot.slane %v257, 2
        %v496 = vrot.slane %v258, 2
        %v497 = vsel %vm439, %v495, %v496
        %v498 = vrot.slane %v259, 2
        %v499 = vsel %vm439, %v496, %v498
        %v500 = vrot.slane %v260, 2
        %v501 = vrot.slane %v261, 2
        %v502 = vsel %vm439, %v500, %v501
        %v503 = vrot.slane %v262, 2
        %v504 = vsel %vm439, %v501, %v503
        %v505 = vrot.slane %v263, 2
        %v506 = vrot.slane %v264, 2
        %v507 = vsel %vm439, %v505, %v506
        %v508 = vrot.slane %v265, 2
        %v509 = vsel %vm439, %v506, %v508
        %v510 = vrot.slane %v266, 2
        %v511 = vrot.slane %v267, 2
        %v512 = vsel %vm439, %v510, %v511
        %v513 = vrot.slane %v268, 2
        %v514 = vsel %vm439, %v511, %v513
        %v515 = vrot.slane %v269, 2
        %v516 = vrot.slane %v270, 2
        %v517 = vsel %vm439, %v515, %v516
        %v518 = vrot.slane %v271, 2
        %v519 = vsel %vm439, %v516, %v518
        %v555 = vrot.slane %v272, 1
        %v556 = vrot.slane %v273, 1
        %v557 = vsel %vm326, %v555, %v556
        %v558 = vrot.slane %v274, 1
        %v559 = vsel %vm326, %v556, %v558
        %v562 = vrot.slane %v272, 2
        %v563 = vrot.slane %v273, 2
        %v564 = vsel %vm439, %v562, %v563
        %v565 = vrot.slane %v274, 2
        %v566 = vsel %vm439, %v563, %v565
        %v572 = vrot.slane %v275, 1
        %v573 = vrot.slane %v276, 1
        %v574 = vsel %vm326, %v572, %v573
        %v575 = vrot.slane %v277, 1
        %v576 = vsel %vm326, %v573, %v575
        %v579 = vrot.slane %v275, 2
        %v580 = vrot.slane %v276, 2
        %v581 = vsel %vm439, %v579, %v580
        %v582 = vrot.slane %v277, 2
        %v583 = vsel %vm439, %v580, %v582
        %v586 = vpack.c.bf16 %v225, %v224
        %v587 = vpack.c.bf16 %v331, %v329
        %v588 = vpack.c.bf16 %v444, %v442
        %v589 = vpack.c.bf16 %v228, %v227
        %v590 = vpack.c.bf16 %v336, %v334
        %v591 = vpack.c.bf16 %v449, %v447
        %v592 = vpack.c.bf16 %v231, %v230
        %v593 = vpack.c.bf16 %v341, %v339
        %v594 = vpack.c.bf16 %v454, %v452
        %v595 = vpack.c.bf16 %v234, %v233
        %v596 = vpack.c.bf16 %v346, %v344
        %v597 = vpack.c.bf16 %v459, %v457
        %v598 = vpack.c.bf16 %v237, %v236
        %v599 = vpack.c.bf16 %v351, %v349
        %v600 = vpack.c.bf16 %v464, %v462
        %v601 = vpack.c.bf16 %v240, %v239
        %v602 = vpack.c.bf16 %v356, %v354
        %v603 = vpack.c.bf16 %v469, %v467
        %v604 = vpack.c.bf16 %v243, %v242
        %v605 = vpack.c.bf16 %v361, %v359
        %v606 = vpack.c.bf16 %v474, %v472
        %v607 = vpack.c.bf16 %v246, %v245
        %v608 = vpack.c.bf16 %v366, %v364
        %v609 = vpack.c.bf16 %v479, %v477
        %v610 = vpack.c.bf16 %v249, %v248
        %v611 = vpack.c.bf16 %v371, %v369
        %v612 = vpack.c.bf16 %v484, %v482
        %v613 = vpack.c.bf16 %v252, %v251
        %v614 = vpack.c.bf16 %v376, %v374
        %v615 = vpack.c.bf16 %v489, %v487
        %v616 = vpack.c.bf16 %v255, %v254
        %v617 = vpack.c.bf16 %v381, %v379
        %v618 = vpack.c.bf16 %v494, %v492
        %v619 = vpack.c.bf16 %v258, %v257
        %v620 = vpack.c.bf16 %v386, %v384
        %v621 = vpack.c.bf16 %v499, %v497
        %v622 = vpack.c.bf16 %v261, %v260
        %v623 = vpack.c.bf16 %v391, %v389
        %v624 = vpack.c.bf16 %v504, %v502
        %v625 = vpack.c.bf16 %v264, %v263
        %v626 = vpack.c.bf16 %v396, %v394
        %v627 = vpack.c.bf16 %v509, %v507
        %v628 = vpack.c.bf16 %v267, %v266
        %v629 = vpack.c.bf16 %v401, %v399
        %v630 = vpack.c.bf16 %v514, %v512
        %v631 = vpack.c.bf16 %v270, %v269
        %v632 = vpack.c.bf16 %v406, %v404
        %v633 = vpack.c.bf16 %v519, %v517
        %v634 = vpack.c.bf16 %v273, %v272
        %v635 = vpack.c.bf16 %v559, %v557
        %v636 = vpack.c.bf16 %v566, %v564
        %v637 = vpack.c.bf16 %v276, %v275
        %v638 = vpack.c.bf16 %v576, %v574
        %v639 = vpack.c.bf16 %v583, %v581
        %v640 = vld [vmem:[%s1] sm:$0xf]
        %v641 = vld [vmem:[%s1 + $0x4] sm:$0xf]
        %v642 = vld [vmem:[%s1 + $0x8] sm:$0xf]
        %v643 = vld [vmem:[%s1 + $0xc] sm:$0xf]
        %v644 = vld [vmem:[%s1 + $0x10] sm:$0xf]
        %v645 = vld [vmem:[%s1 + $0x14] sm:$0xf]
        %v646 = vld [vmem:[%s1 + $0x18] sm:$0xf]
        %v647 = vld [vmem:[%s1 + $0x1c] sm:$0xf]
        %v648 = vld [vmem:[%s1 + $0x20] sm:$0xf]
        %v649 = vld [vmem:[%s1 + $0x24] sm:$0xf]
        %v650 = vld [vmem:[%s1 + $0x28] sm:$0xf]
        %v651 = vld [vmem:[%s1 + $0x2c] sm:$0xf]
        %v652 = vld [vmem:[%s1 + $0x30] sm:$0xf]
        %v653 = vld [vmem:[%s1 + $0x34] sm:$0xf]
        %v654 = vld [vmem:[%s1 + $0x38] sm:$0xf]
        %v655 = vld [vmem:[%s1 + $0x3c] sm:$0xf]
        %v656 = vld [vmem:[%s1 + $0x40] sm:$0xf]
        %v657 = vld [vmem:[%s1 + $0x44] sm:$0xf]
        %v658 = vld [vmem:[%s1 + $0x48] sm:$0xf]
        %v659 = vld [vmem:[%s1 + $0x4c] sm:$0xf]
        %v660 = vld [vmem:[%s1 + $0x50] sm:$0xf]
        %v661 = vld [vmem:[%s1 + $0x54] sm:$0xf]
        %v662 = vld [vmem:[%s1 + $0x58] sm:$0xf]
        %v663 = vld [vmem:[%s1 + $0x5c] sm:$0xf]
        %v664 = vld [vmem:[%s1 + $0x60] sm:$0xf]
        %v665 = vld [vmem:[%s1 + $0x64] sm:$0xf]
        %v666 = vld [vmem:[%s1 + $0x68] sm:$0xf]
        %v667 = vld [vmem:[%s1 + $0x6c] sm:$0xf]
        %v668 = vld [vmem:[%s1 + $0x70] sm:$0xf]
        %v669 = vld [vmem:[%s1 + $0x74] sm:$0xf]
        %v670 = vld [vmem:[%s1 + $0x78] sm:$0xf]
        %v671 = vld [vmem:[%s1 + $0x7c] sm:$0xf]
        %v672 = vld [vmem:[%s1 + $0x80] sm:$0xf]
        %v673 = vld [vmem:[%s1 + $0x84] sm:$0xf]
        %v674 = vld [vmem:[%s1 + $0x88] sm:$0xf]
        %v675 = vld [vmem:[%s1 + $0x8c] sm:$0xf]
        %v676 = vld [vmem:[%s1 + $0x90] sm:$0xf]
        %v677 = vld [vmem:[%s1 + $0x94] sm:$0xf]
        %v678 = vld [vmem:[%s1 + $0x98] sm:$0xf]
        %v679 = vld [vmem:[%s1 + $0x9c] sm:$0xf]
        %v680 = vld [vmem:[%s1 + $0xa0] sm:$0xf]
        %v681 = vld [vmem:[%s1 + $0xa4] sm:$0xf]
        %v682 = vld [vmem:[%s1 + $0xa8] sm:$0xf]
        %v683 = vld [vmem:[%s1 + $0xac] sm:$0xf]
        %v684 = vld [vmem:[%s1 + $0xb0] sm:$0xf]
        %v685 = vld [vmem:[%s1 + $0xb4] sm:$0xf]
        %v686 = vld [vmem:[%s1 + $0xb8] sm:$0xf]
        %v687 = vld [vmem:[%s1 + $0xbc] sm:$0xf]
        %v688 = vld [vmem:[%s1 + $0xc0] sm:$0xf]
        %v689 = vld [vmem:[%s1 + $0xc4] sm:$0xf]
        %v690 = vld [vmem:[%s1 + $0xc8] sm:$0xf]
        %v691 = vld [vmem:[%s1 + $0xcc] sm:$0xf]
        %v692 = vld [vmem:[%s1 + $0xd0] sm:$0xf]
        %v693 = vld [vmem:[%s1 + $0xd4] sm:$0xf]
        %v694 = vld [vmem:[%s1 + $0xd8] sm:$0xf]
        %v695 = vld [vmem:[%s1 + $0xdc] sm:$0xf]
        %v696 = vld [vmem:[%s1 + $0xe0] sm:$0xf]
        %v697 = vld [vmem:[%s1 + $0xe4] sm:$0xf]
        %v698 = vld [vmem:[%s1 + $0xe8] sm:$0xf]
        %v699 = vld [vmem:[%s1 + $0xec] sm:$0xf]
        %v700 = vld [vmem:[%s1 + $0xf0] sm:$0xf]
        %v701 = vld [vmem:[%s1 + $0xf4] sm:$0xf]
        %v702 = vld [vmem:[%s1 + $0xf8] sm:$0xf]
        %v703 = vld [vmem:[%s1 + $0xfc] sm:$0xf]
        %v704 = vld [vmem:[%s1 + $0x100] sm:$0xf]
        %v705 = vld [vmem:[%s1 + $0x104] sm:$0xf]
        %v706 = vld [vmem:[%s1 + $0x108] sm:$0xf]
        %v707 = vld [vmem:[%s1 + $0x10c] sm:$0xf]
        %v708 = vld [vmem:[%s1 + $0x110] sm:$0xf]
        %v709 = vld [vmem:[%s1 + $0x114] sm:$0xf]
        %v710 = vld [vmem:[%s1 + $0x118] sm:$0xf]
        %v711 = vld [vmem:[%s1 + $0x11c] sm:$0xf]
        %v712 = vld [vmem:[%s1 + $0x120] sm:$0xf]
        %v713 = vld [vmem:[%s1 + $0x124] sm:$0xf]
        %v714 = vld [vmem:[%s1 + $0x128] sm:$0xf]
        %v715 = vld [vmem:[%s1 + $0x12c] sm:$0xf]
        %v716 = vld [vmem:[%s1 + $0x130] sm:$0xf]
        %v717 = vld [vmem:[%s1 + $0x134] sm:$0xf]
        %v718 = vld [vmem:[%s1 + $0x138] sm:$0xf]
        %v719 = vld [vmem:[%s1 + $0x13c] sm:$0xf]
        %v720 = vld [vmem:[%s1 + $0x140] sm:$0xf]
        %v721 = vld [vmem:[%s1 + $0x144] sm:$0xf]
        %v722 = vld [vmem:[%s1 + $0x148] sm:$0xf]
        %v723 = vld [vmem:[%s1 + $0x14c] sm:$0xf]
        %v724 = vld [vmem:[%s1 + $0x150] sm:$0xf]
        %v725 = vld [vmem:[%s1 + $0x154] sm:$0xf]
        %v726 = vld [vmem:[%s1 + $0x158] sm:$0xf]
        %v727 = vld [vmem:[%s1 + $0x15c] sm:$0xf]
        %v728 = vld [vmem:[%s1 + $0x160] sm:$0xf]
        %v729 = vld [vmem:[%s1 + $0x164] sm:$0xf]
        %v730 = vld [vmem:[%s1 + $0x168] sm:$0xf]
        %v731 = vld [vmem:[%s1 + $0x16c] sm:$0xf]
        %v732 = vld [vmem:[%s1 + $0x170] sm:$0xf]
        %v733 = vld [vmem:[%s1 + $0x174] sm:$0xf]
        %v734 = vld [vmem:[%s1 + $0x178] sm:$0xf]
        %v735 = vld [vmem:[%s1 + $0x17c] sm:$0xf]
        %v736 = vld [vmem:[%s1 + $0x180] sm:$0xf]
        %v737 = vld [vmem:[%s1 + $0x184] sm:$0xf]
        %v738 = vld [vmem:[%s1 + $0x188] sm:$0xf]
        %v739 = vld [vmem:[%s1 + $0x18c] sm:$0xf]
        %v740 = vld [vmem:[%s1 + $0x190] sm:$0xf]
        %v741 = vld [vmem:[%s1 + $0x194] sm:$0xf]
        %v742 = vld [vmem:[%s1 + $0x198] sm:$0xf]
        %v743 = vld [vmem:[%s1 + $0x19c] sm:$0xf]
        %v744 = vld [vmem:[%s1 + $0x1a0] sm:$0xf]
        %v745 = vld [vmem:[%s1 + $0x1a4] sm:$0xf]
        %v746 = vld [vmem:[%s1 + $0x1a8] sm:$0xf]
        %v747 = vld [vmem:[%s1 + $0x1ac] sm:$0xf]
        %v748 = vld [vmem:[%s1 + $0x1b0] sm:$0xf]
        %v749 = vld [vmem:[%s1 + $0x1b4] sm:$0xf]
        %v750 = vld [vmem:[%s1 + $0x1b8] sm:$0xf]
        %v751 = vld [vmem:[%s1 + $0x1bc] sm:$0xf]
        %v752 = vld [vmem:[%s1 + $0x1c0] sm:$0xf]
        %v753 = vld [vmem:[%s1 + $0x1c4] sm:$0xf]
        %v754 = vld [vmem:[%s1 + $0x1c8] sm:$0xf]
        %v755 = vld [vmem:[%s1 + $0x1cc] sm:$0xf]
        %v756 = vld [vmem:[%s1 + $0x1d0] sm:$0xf]
        %v757 = vld [vmem:[%s1 + $0x1d4] sm:$0xf]
        %v758 = vld [vmem:[%s1 + $0x1d8] sm:$0xf]
        %v759 = vld [vmem:[%s1 + $0x1dc] sm:$0xf]
        %v760 = vld [vmem:[%s1 + $0x1e0] sm:$0xf]
        %v761 = vld [vmem:[%s1 + $0x1e4] sm:$0xf]
        %v762 = vld [vmem:[%s1 + $0x1e8] sm:$0xf]
        %v763 = vld [vmem:[%s1 + $0x1ec] sm:$0xf]
        %v764 = vld [vmem:[%s1 + $0x1f0] sm:$0xf]
        %v765 = vld [vmem:[%s1 + $0x1f4] sm:$0xf]
        %v766 = vld [vmem:[%s1 + $0x1f8] sm:$0xf]
        %v767 = vld [vmem:[%s1 + $0x1fc] sm:$0xf]
        %v768 = vld [vmem:[%s1 + $0x200] sm:$0xf]
        %v769 = vld [vmem:[%s1 + $0x204] sm:$0xf]
        %v770 = vld [vmem:[%s1 + $0x208] sm:$0xf]
        %v771 = vld [vmem:[%s1 + $0x20c] sm:$0xf]
        %v772 = vld [vmem:[%s1 + $0x210] sm:$0xf]
        %v773 = vld [vmem:[%s1 + $0x214] sm:$0xf]
        %v774 = vld [vmem:[%s1 + $0x218] sm:$0xf]
        %v775 = vld [vmem:[%s1 + $0x21c] sm:$0xf]
        %v776 = vld [vmem:[%s1 + $0x220] sm:$0xf]
        %v777 = vld [vmem:[%s1 + $0x224] sm:$0xf]
        %v778 = vld [vmem:[%s1 + $0x228] sm:$0xf]
        %v779 = vld [vmem:[%s1 + $0x22c] sm:$0xf]
        %v780 = vld [vmem:[%s1 + $0x230] sm:$0xf]
        %v781 = vld [vmem:[%s1 + $0x234] sm:$0xf]
        %v782 = vld [vmem:[%s1 + $0x238] sm:$0xf]
        %v783 = vld [vmem:[%s1 + $0x23c] sm:$0xf]
        %v928 = vunpack.c.l.b16 %v640
        %v929 = vunpack.c.l.b16 %v641
        %v930 = vunpack.c.l.b16 %v642
        %v931 = vunpack.c.l.b16 %v643
        %v932 = vunpack.c.l.b16 %v644
        %v933 = vunpack.c.l.b16 %v645
        %v934 = vunpack.c.l.b16 %v646
        %v935 = vunpack.c.l.b16 %v647
        %v936 = vunpack.c.l.b16 %v648
        %v937 = vunpack.c.l.b16 %v649
        %v938 = vunpack.c.l.b16 %v650
        %v939 = vunpack.c.l.b16 %v651
        %v940 = vunpack.c.l.b16 %v652
        %v941 = vunpack.c.l.b16 %v653
        %v942 = vunpack.c.l.b16 %v654
        %v943 = vunpack.c.l.b16 %v655
        %v944 = vunpack.c.l.b16 %v656
        %v945 = vunpack.c.l.b16 %v657
        %v946 = vunpack.c.l.b16 %v658
        %v947 = vunpack.c.l.b16 %v659
        %v948 = vunpack.c.l.b16 %v660
        %v949 = vunpack.c.l.b16 %v661
        %v950 = vunpack.c.l.b16 %v662
        %v951 = vunpack.c.l.b16 %v663
        %v952 = vunpack.c.l.b16 %v664
        %v953 = vunpack.c.l.b16 %v665
        %v954 = vunpack.c.l.b16 %v666
        %v955 = vunpack.c.l.b16 %v667
        %v956 = vunpack.c.l.b16 %v668
        %v957 = vunpack.c.l.b16 %v669
        %v958 = vunpack.c.l.b16 %v670
        %v959 = vunpack.c.l.b16 %v671
        %v960 = vunpack.c.l.b16 %v672
        %v961 = vunpack.c.l.b16 %v673
        %v962 = vunpack.c.l.b16 %v674
        %v963 = vunpack.c.l.b16 %v675
        %v964 = vunpack.c.l.b16 %v676
        %v965 = vunpack.c.l.b16 %v677
        %v966 = vunpack.c.l.b16 %v678
        %v967 = vunpack.c.l.b16 %v679
        %v968 = vunpack.c.l.b16 %v680
        %v969 = vunpack.c.l.b16 %v681
        %v970 = vunpack.c.l.b16 %v682
        %v971 = vunpack.c.l.b16 %v683
        %v972 = vunpack.c.l.b16 %v684
        %v973 = vunpack.c.l.b16 %v685
        %v974 = vunpack.c.l.b16 %v686
        %v975 = vunpack.c.l.b16 %v687
        %v976 = vunpack.c.l.b16 %v688
        %v977 = vunpack.c.l.b16 %v689
        %v978 = vunpack.c.l.b16 %v690
        %v979 = vunpack.c.l.b16 %v691
        %v980 = vunpack.c.l.b16 %v692
        %v981 = vunpack.c.l.b16 %v693
        %v982 = vunpack.c.l.b16 %v694
        %v983 = vunpack.c.l.b16 %v695
        %v984 = vunpack.c.l.b16 %v696
        %v985 = vunpack.c.l.b16 %v697
        %v986 = vunpack.c.l.b16 %v698
        %v987 = vunpack.c.l.b16 %v699
        %v988 = vunpack.c.l.b16 %v700
        %v989 = vunpack.c.l.b16 %v701
        %v990 = vunpack.c.l.b16 %v702
        %v991 = vunpack.c.l.b16 %v703
        %v992 = vunpack.c.l.b16 %v704
        %v993 = vunpack.c.l.b16 %v705
        %v994 = vunpack.c.l.b16 %v706
        %v995 = vunpack.c.l.b16 %v707
        %v996 = vunpack.c.l.b16 %v708
        %v997 = vunpack.c.l.b16 %v709
        %v998 = vunpack.c.l.b16 %v710
        %v999 = vunpack.c.l.b16 %v711
        %v1000 = vunpack.c.l.b16 %v712
        %v1001 = vunpack.c.l.b16 %v713
        %v1002 = vunpack.c.l.b16 %v714
        %v1003 = vunpack.c.l.b16 %v715
        %v1004 = vunpack.c.l.b16 %v716
        %v1005 = vunpack.c.l.b16 %v717
        %v1006 = vunpack.c.l.b16 %v718
        %v1007 = vunpack.c.l.b16 %v719
        %v1008 = vunpack.c.l.b16 %v720
        %v1009 = vunpack.c.l.b16 %v721
        %v1010 = vunpack.c.l.b16 %v722
        %v1011 = vunpack.c.l.b16 %v723
        %v1012 = vunpack.c.l.b16 %v724
        %v1013 = vunpack.c.l.b16 %v725
        %v1014 = vunpack.c.l.b16 %v726
        %v1015 = vunpack.c.l.b16 %v727
        %v1016 = vunpack.c.l.b16 %v728
        %v1017 = vunpack.c.l.b16 %v729
        %v1018 = vunpack.c.l.b16 %v730
        %v1019 = vunpack.c.l.b16 %v731
        %v1020 = vunpack.c.l.b16 %v732
        %v1021 = vunpack.c.l.b16 %v733
        %v1022 = vunpack.c.l.b16 %v734
        %v1023 = vunpack.c.l.b16 %v735
        %v1024 = vunpack.c.l.b16 %v736
        %v1025 = vunpack.c.l.b16 %v737
        %v1026 = vunpack.c.l.b16 %v738
        %v1027 = vunpack.c.l.b16 %v739
        %v1028 = vunpack.c.l.b16 %v740
        %v1029 = vunpack.c.l.b16 %v741
        %v1030 = vunpack.c.l.b16 %v742
        %v1031 = vunpack.c.l.b16 %v743
        %v1032 = vunpack.c.l.b16 %v744
        %v1033 = vunpack.c.l.b16 %v745
        %v1034 = vunpack.c.l.b16 %v746
        %v1035 = vunpack.c.l.b16 %v747
        %v1036 = vunpack.c.l.b16 %v748
        %v1037 = vunpack.c.l.b16 %v749
        %v1038 = vunpack.c.l.b16 %v750
        %v1039 = vunpack.c.l.b16 %v751
        %v1040 = vunpack.c.l.b16 %v752
        %v1041 = vunpack.c.l.b16 %v753
        %v1042 = vunpack.c.l.b16 %v754
        %v1043 = vunpack.c.l.b16 %v755
        %v1044 = vunpack.c.l.b16 %v756
        %v1045 = vunpack.c.l.b16 %v757
        %v1046 = vunpack.c.l.b16 %v758
        %v1047 = vunpack.c.l.b16 %v759
        %v1048 = vunpack.c.l.b16 %v760
        %v1049 = vunpack.c.l.b16 %v761
        %v1050 = vunpack.c.l.b16 %v762
        %v1051 = vunpack.c.l.b16 %v763
        %v1052 = vunpack.c.l.b16 %v764
        %v1053 = vunpack.c.l.b16 %v765
        %v1054 = vunpack.c.l.b16 %v766
        %v1055 = vunpack.c.l.b16 %v767
        %v1056 = vunpack.c.l.b16 %v768
        %v1057 = vunpack.c.l.b16 %v769
        %v1058 = vunpack.c.l.b16 %v770
        %v1059 = vunpack.c.l.b16 %v771
        %v1060 = vunpack.c.l.b16 %v772
        %v1061 = vunpack.c.l.b16 %v773
        %v1062 = vunpack.c.l.b16 %v774
        %v1063 = vunpack.c.l.b16 %v775
        %v1064 = vunpack.c.l.b16 %v776
        %v1065 = vunpack.c.l.b16 %v777
        %v1066 = vunpack.c.l.b16 %v778
        %v1067 = vunpack.c.l.b16 %v779
        %v1068 = vunpack.c.l.b16 %v780
        %v1069 = vunpack.c.l.b16 %v781
        %v1070 = vunpack.c.l.b16 %v782
        %v1071 = vunpack.c.l.b16 %v783
        %v1072 = vpack.c.b16 %v929, %v928
        %v1073 = vpack.c.b16 %v931, %v930
        %v1074 = vpack.c.b16 %v933, %v932
        %v1075 = vpack.c.b16 %v935, %v934
        %v1076 = vpack.c.b16 %v937, %v936
        %v1077 = vpack.c.b16 %v939, %v938
        %v1078 = vpack.c.b16 %v941, %v940
        %v1079 = vpack.c.b16 %v943, %v942
        %v1080 = vpack.c.b16 %v945, %v944
        %v1081 = vpack.c.b16 %v947, %v946
        %v1082 = vpack.c.b16 %v949, %v948
        %v1083 = vpack.c.b16 %v951, %v950
        %v1084 = vpack.c.b16 %v953, %v952
        %v1085 = vpack.c.b16 %v955, %v954
        %v1086 = vpack.c.b16 %v957, %v956
        %v1087 = vpack.c.b16 %v959, %v958
        %v1088 = vpack.c.b16 %v961, %v960
        %v1089 = vpack.c.b16 %v963, %v962
        %v1090 = vpack.c.b16 %v965, %v964
        %v1091 = vpack.c.b16 %v967, %v966
        %v1092 = vpack.c.b16 %v969, %v968
        %v1093 = vpack.c.b16 %v971, %v970
        %v1094 = vpack.c.b16 %v973, %v972
        %v1095 = vpack.c.b16 %v975, %v974
        %v1096 = vpack.c.b16 %v977, %v976
        %v1097 = vpack.c.b16 %v979, %v978
        %v1098 = vpack.c.b16 %v981, %v980
        %v1099 = vpack.c.b16 %v983, %v982
        %v1100 = vpack.c.b16 %v985, %v984
        %v1101 = vpack.c.b16 %v987, %v986
        %v1102 = vpack.c.b16 %v989, %v988
        %v1103 = vpack.c.b16 %v991, %v990
        %v1104 = vpack.c.b16 %v993, %v992
        %v1105 = vpack.c.b16 %v995, %v994
        %v1106 = vpack.c.b16 %v997, %v996
        %v1107 = vpack.c.b16 %v999, %v998
        %v1108 = vpack.c.b16 %v1001, %v1000
        %v1109 = vpack.c.b16 %v1003, %v1002
        %v1110 = vpack.c.b16 %v1005, %v1004
        %v1111 = vpack.c.b16 %v1007, %v1006
        %v1112 = vpack.c.b16 %v1009, %v1008
        %v1113 = vpack.c.b16 %v1011, %v1010
        %v1114 = vpack.c.b16 %v1013, %v1012
        %v1115 = vpack.c.b16 %v1015, %v1014
        %v1116 = vpack.c.b16 %v1017, %v1016
        %v1117 = vpack.c.b16 %v1019, %v1018
        %v1118 = vpack.c.b16 %v1021, %v1020
        %v1119 = vpack.c.b16 %v1023, %v1022
        %v1120 = vpack.c.b16 %v1025, %v1024
        %v1121 = vpack.c.b16 %v1027, %v1026
        %v1122 = vpack.c.b16 %v1029, %v1028
        %v1123 = vpack.c.b16 %v1031, %v1030
        %v1124 = vpack.c.b16 %v1033, %v1032
        %v1125 = vpack.c.b16 %v1035, %v1034
        %v1126 = vpack.c.b16 %v1037, %v1036
        %v1127 = vpack.c.b16 %v1039, %v1038
        %v1128 = vpack.c.b16 %v1041, %v1040
        %v1129 = vpack.c.b16 %v1043, %v1042
        %v1130 = vpack.c.b16 %v1045, %v1044
        %v1131 = vpack.c.b16 %v1047, %v1046
        %v1132 = vpack.c.b16 %v1049, %v1048
        %v1133 = vpack.c.b16 %v1051, %v1050
        %v1134 = vpack.c.b16 %v1053, %v1052
        %v1135 = vpack.c.b16 %v1055, %v1054
        %v1136 = vpack.c.b16 %v1057, %v1056
        %v1137 = vpack.c.b16 %v1059, %v1058
        %v1138 = vpack.c.b16 %v1061, %v1060
        %v1139 = vpack.c.b16 %v1063, %v1062
        %v1140 = vpack.c.b16 %v1065, %v1064
        %v1141 = vpack.c.b16 %v1067, %v1066
        %v1142 = vpack.c.b16 %v1069, %v1068
        %v1143 = vpack.c.b16 %v1071, %v1070
        %1216 = vmatprep.subr.bf16.mxu0 0
        %1217 = vmatpush1.bf16.msra.mxu0 %v1072
        %1218 = vmatprep.subr.bf16.mxu0 0
        %1219 = vmatpush1.bf16.msra.mxu0 %v1073
        %1220 = vmatprep.subr.bf16.mxu0 0
        %1221 = vmatpush1.bf16.msra.mxu0 %v1074
        %1222 = vmatprep.subr.bf16.mxu0 0
        %1223 = vmatpush1.bf16.msra.mxu0 %v1075
        %1224 = vmatprep.subr.bf16.mxu0 0
        %1225 = vmatpush1.bf16.msra.mxu0 %v1076
        %1226 = vmatprep.subr.bf16.mxu0 0
        %1227 = vmatpush1.bf16.msra.mxu0 %v1077
        %1228 = vmatprep.subr.bf16.mxu0 0
        %1229 = vmatpush1.bf16.msra.mxu0 %v1078
        %1230 = vmatprep.subr.bf16.mxu0 0
        %1231 = vmatpush1.bf16.msra.mxu0 %v1079
        %1232 = vmatprep.subr.bf16.mxu0 0
        %1233 = vmatpush1.bf16.msra.mxu0 %v1080
        %1234 = vmatprep.subr.bf16.mxu0 0
        %1235 = vmatpush1.bf16.msra.mxu0 %v1081
        %1236 = vmatprep.subr.bf16.mxu0 0
        %1237 = vmatpush1.bf16.msra.mxu0 %v1082
        %1238 = vmatprep.subr.bf16.mxu0 0
        %1239 = vmatpush1.bf16.msra.mxu0 %v1083
        %1240 = vmatprep.subr.bf16.mxu0 0
        %1241 = vmatpush1.bf16.msra.mxu0 %v1084
        %1242 = vmatprep.subr.bf16.mxu0 0
        %1243 = vmatpush1.bf16.msra.mxu0 %v1085
        %1244 = vmatprep.subr.bf16.mxu0 0
        %1245 = vmatpush1.bf16.msra.mxu0 %v1086
        %1246 = vmatprep.subr.bf16.mxu0 0
        %1247 = vmatpush1.bf16.msra.mxu0 %v1087
        %1248 = vmatprep.mubr.bf16.mxu0 %v587
        %1249 = vmatmul.mubr.bf16.gmra.mrb[0].mxu0 %v586
        %v1250 = vpop.f32.mrb[0].mxu0
        %v1251 = vadd.f32 0.0, %v1250
        %v1252 = vpop.f32.mrb[0].mxu0
        %v1253 = vpop.f32.mrb[0].mxu0
        %v1254 = vadd.f32 0.0, %v1253
        %v1255 = vpop.f32.mrb[0].mxu0
        %1256 = vmatprep.mubr.bf16.mxu0 %v590
        %1257 = vmatmul.mubr.bf16.gmra.mrb[0].mxu0 %v589
        %v1258 = vpop.f32.mrb[0].mxu0
        %v1259 = vadd.f32 0.0, %v1258
        %v1260 = vpop.f32.mrb[0].mxu0
        %v1261 = vpop.f32.mrb[0].mxu0
        %v1262 = vadd.f32 0.0, %v1261
        %v1263 = vpop.f32.mrb[0].mxu0
        %1264 = vmatprep.mubr.bf16.mxu0 %v593
        %1265 = vmatmul.mubr.bf16.gmra.mrb[0].mxu0 %v592
        %v1266 = vpop.f32.mrb[0].mxu0
        %v1267 = vadd.f32 0.0, %v1266
        %v1268 = vpop.f32.mrb[0].mxu0
        %v1269 = vpop.f32.mrb[0].mxu0
        %v1270 = vadd.f32 0.0, %v1269
        %v1271 = vpop.f32.mrb[0].mxu0
        %1272 = vmatprep.mubr.bf16.mxu0 %v596
        %1273 = vmatmul.mubr.bf16.gmra.mrb[0].mxu0 %v595
        %v1274 = vpop.f32.mrb[0].mxu0
        %v1275 = vadd.f32 0.0, %v1274
        %v1276 = vpop.f32.mrb[0].mxu0
        %v1277 = vpop.f32.mrb[0].mxu0
        %v1278 = vadd.f32 0.0, %v1277
        %v1279 = vpop.f32.mrb[0].mxu0
        %1280 = vmatprep.mubr.bf16.mxu0 %v599
        %1281 = vmatmul.mubr.bf16.gmra.mrb[0].mxu0 %v598
        %v1282 = vpop.f32.mrb[0].mxu0
        %v1283 = vadd.f32 0.0, %v1282
        %v1284 = vpop.f32.mrb[0].mxu0
        %v1285 = vpop.f32.mrb[0].mxu0
        %v1286 = vadd.f32 0.0, %v1285
        %v1287 = vpop.f32.mrb[0].mxu0
        %1288 = vmatprep.mubr.bf16.mxu0 %v602
        %1289 = vmatmul.mubr.bf16.gmra.mrb[0].mxu0 %v601
        %v1290 = vpop.f32.mrb[0].mxu0
        %v1291 = vadd.f32 0.0, %v1290
        %v1292 = vpop.f32.mrb[0].mxu0
        %v1293 = vpop.f32.mrb[0].mxu0
        %v1294 = vadd.f32 0.0, %v1293
        %v1295 = vpop.f32.mrb[0].mxu0
        %1296 = vmatprep.mubr.bf16.mxu0 %v605
        %1297 = vmatmul.mubr.bf16.gmra.mrb[0].mxu0 %v604
        %v1298 = vpop.f32.mrb[0].mxu0
        %v1299 = vadd.f32 0.0, %v1298
        %v1300 = vpop.f32.mrb[0].mxu0
        %v1301 = vpop.f32.mrb[0].mxu0
        %v1302 = vadd.f32 0.0, %v1301
        %v1303 = vpop.f32.mrb[0].mxu0
        %1304 = vmatprep.mubr.bf16.mxu0 %v608
        %1305 = vmatmul.mubr.bf16.gmra.mrb[0].mxu0 %v607
        %v1306 = vpop.f32.mrb[0].mxu0
        %v1307 = vadd.f32 0.0, %v1306
        %v1308 = vpop.f32.mrb[0].mxu0
        %v1309 = vpop.f32.mrb[0].mxu0
        %v1310 = vadd.f32 0.0, %v1309
        %v1311 = vpop.f32.mrb[0].mxu0
        %1312 = vmatprep.mubr.bf16.mxu0 %v611
        %1313 = vmatmul.mubr.bf16.gmra.mrb[0].mxu0 %v610
        %v1314 = vpop.f32.mrb[0].mxu0
        %v1315 = vadd.f32 0.0, %v1314
        %v1316 = vpop.f32.mrb[0].mxu0
        %v1317 = vpop.f32.mrb[0].mxu0
        %v1318 = vadd.f32 0.0, %v1317
        %v1319 = vpop.f32.mrb[0].mxu0
        %1320 = vmatprep.mubr.bf16.mxu0 %v614
        %1321 = vmatmul.mubr.bf16.gmra.mrb[0].mxu0 %v613
        %v1322 = vpop.f32.mrb[0].mxu0
        %v1323 = vadd.f32 0.0, %v1322
        %v1324 = vpop.f32.mrb[0].mxu0
        %v1325 = vpop.f32.mrb[0].mxu0
        %v1326 = vadd.f32 0.0, %v1325
        %v1327 = vpop.f32.mrb[0].mxu0
        %1328 = vmatprep.mubr.bf16.mxu0 %v617
        %1329 = vmatmul.mubr.bf16.gmra.mrb[0].mxu0 %v616
        %v1330 = vpop.f32.mrb[0].mxu0
        %v1331 = vadd.f32 0.0, %v1330
        %v1332 = vpop.f32.mrb[0].mxu0
        %v1333 = vpop.f32.mrb[0].mxu0
        %v1334 = vadd.f32 0.0, %v1333
        %v1335 = vpop.f32.mrb[0].mxu0
        %1336 = vmatprep.mubr.bf16.mxu0 %v620
        %1337 = vmatmul.mubr.bf16.gmra.mrb[0].mxu0 %v619
        %v1338 = vpop.f32.mrb[0].mxu0
        %v1339 = vadd.f32 0.0, %v1338
        %v1340 = vpop.f32.mrb[0].mxu0
        %v1341 = vpop.f32.mrb[0].mxu0
        %v1342 = vadd.f32 0.0, %v1341
        %v1343 = vpop.f32.mrb[0].mxu0
        %1344 = vmatprep.mubr.bf16.mxu0 %v623
        %1345 = vmatmul.mubr.bf16.gmra.mrb[0].mxu0 %v622
        %v1346 = vpop.f32.mrb[0].mxu0
        %v1347 = vadd.f32 0.0, %v1346
        %v1348 = vpop.f32.mrb[0].mxu0
        %v1349 = vpop.f32.mrb[0].mxu0
        %v1350 = vadd.f32 0.0, %v1349
        %v1351 = vpop.f32.mrb[0].mxu0
        %1352 = vmatprep.mubr.bf16.mxu0 %v626
        %1353 = vmatmul.mubr.bf16.gmra.mrb[0].mxu0 %v625
        %v1354 = vpop.f32.mrb[0].mxu0
        %v1355 = vadd.f32 0.0, %v1354
        %v1356 = vpop.f32.mrb[0].mxu0
        %v1357 = vpop.f32.mrb[0].mxu0
        %v1358 = vadd.f32 0.0, %v1357
        %v1359 = vpop.f32.mrb[0].mxu0
        %1360 = vmatprep.mubr.bf16.mxu0 %v629
        %1361 = vmatmul.mubr.bf16.gmra.mrb[0].mxu0 %v628
        %v1362 = vpop.f32.mrb[0].mxu0
        %v1363 = vadd.f32 0.0, %v1362
        %v1364 = vpop.f32.mrb[0].mxu0
        %v1365 = vpop.f32.mrb[0].mxu0
        %v1366 = vadd.f32 0.0, %v1365
        %v1367 = vpop.f32.mrb[0].mxu0
        %1368 = vmatprep.mubr.bf16.mxu0 %v632
        %1369 = vmatmul.mubr.bf16.gmra.mrb[0].mxu0 %v631
        %v1370 = vpop.f32.mrb[0].mxu0
        %v1371 = vadd.f32 0.0, %v1370
        %v1372 = vpop.f32.mrb[0].mxu0
        %v1373 = vpop.f32.mrb[0].mxu0
        %v1374 = vadd.f32 0.0, %v1373
        %v1375 = vpop.f32.mrb[0].mxu0
        %1376 = vdwg.mxu0
        %1377 = vmatprep.subr.bf16.mxu0 0
        %1378 = vmatpush1.bf16.msra.mxu0 %v1088
        %1379 = vmatprep.subr.bf16.mxu0 0
        %1380 = vmatpush1.bf16.msra.mxu0 %v1089
        %1381 = vmatprep.subr.bf16.mxu0 0
        %1382 = vmatpush1.bf16.msra.mxu0 %v1090
        %1383 = vmatprep.subr.bf16.mxu0 0
        %1384 = vmatpush1.bf16.msra.mxu0 %v1091
        %1385 = vmatprep.subr.bf16.mxu0 0
        %1386 = vmatpush1.bf16.msra.mxu0 %v1092
        %1387 = vmatprep.subr.bf16.mxu0 0
        %1388 = vmatpush1.bf16.msra.mxu0 %v1093
        %1389 = vmatprep.subr.bf16.mxu0 0
        %1390 = vmatpush1.bf16.msra.mxu0 %v1094
        %1391 = vmatprep.subr.bf16.mxu0 0
        %1392 = vmatpush1.bf16.msra.mxu0 %v1095
        %1393 = vmatprep.subr.bf16.mxu0 0
        %1394 = vmatpush1.bf16.msra.mxu0 %v1096
        %1395 = vmatprep.subr.bf16.mxu0 0
        %1396 = vmatpush1.bf16.msra.mxu0 %v1097
        %1397 = vmatprep.subr.bf16.mxu0 0
        %1398 = vmatpush1.bf16.msra.mxu0 %v1098
        %1399 = vmatprep.subr.bf16.mxu0 0
        %1400 = vmatpush1.bf16.msra.mxu0 %v1099
        %1401 = vmatprep.subr.bf16.mxu0 0
        %1402 = vmatpush1.bf16.msra.mxu0 %v1100
        %1403 = vmatprep.subr.bf16.mxu0 0
        %1404 = vmatpush1.bf16.msra.mxu0 %v1101
        %1405 = vmatprep.subr.bf16.mxu0 0
        %1406 = vmatpush1.bf16.msra.mxu0 %v1102
        %1407 = vmatprep.subr.bf16.mxu0 0
        %1408 = vmatpush1.bf16.msra.mxu0 %v1103
        %1409 = vmatprep.mubr.bf16.mxu0 %v589
        %1410 = vmatmul.mubr.bf16.gmra.mrb[0].mxu0 %v588
        %v1411 = vpop.f32.mrb[0].mxu0
        %v1412 = vadd.f32 %v1251, %v1411
        %v1413 = vpop.f32.mrb[0].mxu0
        %v1414 = vpop.f32.mrb[0].mxu0
        %v1415 = vadd.f32 %v1254, %v1414
        %v1416 = vpop.f32.mrb[0].mxu0
        %1417 = vmatprep.mubr.bf16.mxu0 %v592
        %1418 = vmatmul.mubr.bf16.gmra.mrb[0].mxu0 %v591
        %v1419 = vpop.f32.mrb[0].mxu0
        %v1420 = vadd.f32 %v1259, %v1419
        %v1421 = vpop.f32.mrb[0].mxu0
        %v1422 = vpop.f32.mrb[0].mxu0
        %v1423 = vadd.f32 %v1262, %v1422
        %v1424 = vpop.f32.mrb[0].mxu0
        %1425 = vmatprep.mubr.bf16.mxu0 %v595
        %1426 = vmatmul.mubr.bf16.gmra.mrb[0].mxu0 %v594
        %v1427 = vpop.f32.mrb[0].mxu0
        %v1428 = vadd.f32 %v1267, %v1427
        %v1429 = vpop.f32.mrb[0].mxu0
        %v1430 = vpop.f32.mrb[0].mxu0
        %v1431 = vadd.f32 %v1270, %v1430
        %v1432 = vpop.f32.mrb[0].mxu0
        %1433 = vmatprep.mubr.bf16.mxu0 %v598
        %1434 = vmatmul.mubr.bf16.gmra.mrb[0].mxu0 %v597
        %v1435 = vpop.f32.mrb[0].mxu0
        %v1436 = vadd.f32 %v1275, %v1435
        %v1437 = vpop.f32.mrb[0].mxu0
        %v1438 = vpop.f32.mrb[0].mxu0
        %v1439 = vadd.f32 %v1278, %v1438
        %v1440 = vpop.f32.mrb[0].mxu0
        %1441 = vmatprep.mubr.bf16.mxu0 %v601
        %1442 = vmatmul.mubr.bf16.gmra.mrb[0].mxu0 %v600
        %v1443 = vpop.f32.mrb[0].mxu0
        %v1444 = vadd.f32 %v1283, %v1443
        %v1445 = vpop.f32.mrb[0].mxu0
        %v1446 = vpop.f32.mrb[0].mxu0
        %v1447 = vadd.f32 %v1286, %v1446
        %v1448 = vpop.f32.mrb[0].mxu0
        %1449 = vmatprep.mubr.bf16.mxu0 %v604
        %1450 = vmatmul.mubr.bf16.gmra.mrb[0].mxu0 %v603
        %v1451 = vpop.f32.mrb[0].mxu0
        %v1452 = vadd.f32 %v1291, %v1451
        %v1453 = vpop.f32.mrb[0].mxu0
        %v1454 = vpop.f32.mrb[0].mxu0
        %v1455 = vadd.f32 %v1294, %v1454
        %v1456 = vpop.f32.mrb[0].mxu0
        %1457 = vmatprep.mubr.bf16.mxu0 %v607
        %1458 = vmatmul.mubr.bf16.gmra.mrb[0].mxu0 %v606
        %v1459 = vpop.f32.mrb[0].mxu0
        %v1460 = vadd.f32 %v1299, %v1459
        %v1461 = vpop.f32.mrb[0].mxu0
        %v1462 = vpop.f32.mrb[0].mxu0
        %v1463 = vadd.f32 %v1302, %v1462
        %v1464 = vpop.f32.mrb[0].mxu0
        %1465 = vmatprep.mubr.bf16.mxu0 %v610
        %1466 = vmatmul.mubr.bf16.gmra.mrb[0].mxu0 %v609
        %v1467 = vpop.f32.mrb[0].mxu0
        %v1468 = vadd.f32 %v1307, %v1467
        %v1469 = vpop.f32.mrb[0].mxu0
        %v1470 = vpop.f32.mrb[0].mxu0
        %v1471 = vadd.f32 %v1310, %v1470
        %v1472 = vpop.f32.mrb[0].mxu0
        %1473 = vmatprep.mubr.bf16.mxu0 %v613
        %1474 = vmatmul.mubr.bf16.gmra.mrb[0].mxu0 %v612
        %v1475 = vpop.f32.mrb[0].mxu0
        %v1476 = vadd.f32 %v1315, %v1475
        %v1477 = vpop.f32.mrb[0].mxu0
        %v1478 = vpop.f32.mrb[0].mxu0
        %v1479 = vadd.f32 %v1318, %v1478
        %v1480 = vpop.f32.mrb[0].mxu0
        %1481 = vmatprep.mubr.bf16.mxu0 %v616
        %1482 = vmatmul.mubr.bf16.gmra.mrb[0].mxu0 %v615
        %v1483 = vpop.f32.mrb[0].mxu0
        %v1484 = vadd.f32 %v1323, %v1483
        %v1485 = vpop.f32.mrb[0].mxu0
        %v1486 = vpop.f32.mrb[0].mxu0
        %v1487 = vadd.f32 %v1326, %v1486
        %v1488 = vpop.f32.mrb[0].mxu0
        %1489 = vmatprep.mubr.bf16.mxu0 %v619
        %1490 = vmatmul.mubr.bf16.gmra.mrb[0].mxu0 %v618
        %v1491 = vpop.f32.mrb[0].mxu0
        %v1492 = vadd.f32 %v1331, %v1491
        %v1493 = vpop.f32.mrb[0].mxu0
        %v1494 = vpop.f32.mrb[0].mxu0
        %v1495 = vadd.f32 %v1334, %v1494
        %v1496 = vpop.f32.mrb[0].mxu0
        %1497 = vmatprep.mubr.bf16.mxu0 %v622
        %1498 = vmatmul.mubr.bf16.gmra.mrb[0].mxu0 %v621
        %v1499 = vpop.f32.mrb[0].mxu0
        %v1500 = vadd.f32 %v1339, %v1499
        %v1501 = vpop.f32.mrb[0].mxu0
        %v1502 = vpop.f32.mrb[0].mxu0
        %v1503 = vadd.f32 %v1342, %v1502
        %v1504 = vpop.f32.mrb[0].mxu0
        %1505 = vmatprep.mubr.bf16.mxu0 %v625
        %1506 = vmatmul.mubr.bf16.gmra.mrb[0].mxu0 %v624
        %v1507 = vpop.f32.mrb[0].mxu0
        %v1508 = vadd.f32 %v1347, %v1507
        %v1509 = vpop.f32.mrb[0].mxu0
        %v1510 = vpop.f32.mrb[0].mxu0
        %v1511 = vadd.f32 %v1350, %v1510
        %v1512 = vpop.f32.mrb[0].mxu0
        %1513 = vmatprep.mubr.bf16.mxu0 %v628
        %1514 = vmatmul.mubr.bf16.gmra.mrb[0].mxu0 %v627
        %v1515 = vpop.f32.mrb[0].mxu0
        %v1516 = vadd.f32 %v1355, %v1515
        %v1517 = vpop.f32.mrb[0].mxu0
        %v1518 = vpop.f32.mrb[0].mxu0
        %v1519 = vadd.f32 %v1358, %v1518
        %v1520 = vpop.f32.mrb[0].mxu0
        %1521 = vmatprep.mubr.bf16.mxu0 %v631
        %1522 = vmatmul.mubr.bf16.gmra.mrb[0].mxu0 %v630
        %v1523 = vpop.f32.mrb[0].mxu0
        %v1524 = vadd.f32 %v1363, %v1523
        %v1525 = vpop.f32.mrb[0].mxu0
        %v1526 = vpop.f32.mrb[0].mxu0
        %v1527 = vadd.f32 %v1366, %v1526
        %v1528 = vpop.f32.mrb[0].mxu0
        %1529 = vmatprep.mubr.bf16.mxu0 %v634
        %1530 = vmatmul.mubr.bf16.gmra.mrb[0].mxu0 %v633
        %v1531 = vpop.f32.mrb[0].mxu0
        %v1532 = vadd.f32 %v1371, %v1531
        %v1533 = vpop.f32.mrb[0].mxu0
        %v1534 = vpop.f32.mrb[0].mxu0
        %v1535 = vadd.f32 %v1374, %v1534
        %v1536 = vpop.f32.mrb[0].mxu0
        %1537 = vdwg.mxu0
        %1538 = vmatprep.subr.bf16.mxu0 0
        %1539 = vmatpush1.bf16.msra.mxu0 %v1104
        %1540 = vmatprep.subr.bf16.mxu0 0
        %1541 = vmatpush1.bf16.msra.mxu0 %v1105
        %1542 = vmatprep.subr.bf16.mxu0 0
        %1543 = vmatpush1.bf16.msra.mxu0 %v1106
        %1544 = vmatprep.subr.bf16.mxu0 0
        %1545 = vmatpush1.bf16.msra.mxu0 %v1107
        %1546 = vmatprep.subr.bf16.mxu0 0
        %1547 = vmatpush1.bf16.msra.mxu0 %v1108
        %1548 = vmatprep.subr.bf16.mxu0 0
        %1549 = vmatpush1.bf16.msra.mxu0 %v1109
        %1550 = vmatprep.subr.bf16.mxu0 0
        %1551 = vmatpush1.bf16.msra.mxu0 %v1110
        %1552 = vmatprep.subr.bf16.mxu0 0
        %1553 = vmatpush1.bf16.msra.mxu0 %v1111
        %1554 = vmatprep.subr.bf16.mxu0 0
        %1555 = vmatpush1.bf16.msra.mxu0 %v1112
        %1556 = vmatprep.subr.bf16.mxu0 0
        %1557 = vmatpush1.bf16.msra.mxu0 %v1113
        %1558 = vmatprep.subr.bf16.mxu0 0
        %1559 = vmatpush1.bf16.msra.mxu0 %v1114
        %1560 = vmatprep.subr.bf16.mxu0 0
        %1561 = vmatpush1.bf16.msra.mxu0 %v1115
        %1562 = vmatprep.subr.bf16.mxu0 0
        %1563 = vmatpush1.bf16.msra.mxu0 %v1116
        %1564 = vmatprep.subr.bf16.mxu0 0
        %1565 = vmatpush1.bf16.msra.mxu0 %v1117
        %1566 = vmatprep.subr.bf16.mxu0 0
        %1567 = vmatpush1.bf16.msra.mxu0 %v1118
        %1568 = vmatprep.subr.bf16.mxu0 0
        %1569 = vmatpush1.bf16.msra.mxu0 %v1119
        %1570 = vmatprep.mubr.bf16.mxu0 %v591
        %1571 = vmatmul.mubr.bf16.gmra.mrb[0].mxu0 %v590
        %v1572 = vpop.f32.mrb[0].mxu0
        %v1573 = vadd.f32 %v1412, %v1572
        %v1574 = vpop.f32.mrb[0].mxu0
        %v1575 = vpop.f32.mrb[0].mxu0
        %v1576 = vadd.f32 %v1415, %v1575
        %v1577 = vpop.f32.mrb[0].mxu0
        %1578 = vmatprep.mubr.bf16.mxu0 %v594
        %1579 = vmatmul.mubr.bf16.gmra.mrb[0].mxu0 %v593
        %v1580 = vpop.f32.mrb[0].mxu0
        %v1581 = vadd.f32 %v1420, %v1580
        %v1582 = vpop.f32.mrb[0].mxu0
        %v1583 = vpop.f32.mrb[0].mxu0
        %v1584 = vadd.f32 %v1423, %v1583
        %v1585 = vpop.f32.mrb[0].mxu0
        %1586 = vmatprep.mubr.bf16.mxu0 %v597
        %1587 = vmatmul.mubr.bf16.gmra.mrb[0].mxu0 %v596
        %v1588 = vpop.f32.mrb[0].mxu0
        %v1589 = vadd.f32 %v1428, %v1588
        %v1590 = vpop.f32.mrb[0].mxu0
        %v1591 = vpop.f32.mrb[0].mxu0
        %v1592 = vadd.f32 %v1431, %v1591
        %v1593 = vpop.f32.mrb[0].mxu0
        %1594 = vmatprep.mubr.bf16.mxu0 %v600
        %1595 = vmatmul.mubr.bf16.gmra.mrb[0].mxu0 %v599
        %v1596 = vpop.f32.mrb[0].mxu0
        %v1597 = vadd.f32 %v1436, %v1596
        %v1598 = vpop.f32.mrb[0].mxu0
        %v1599 = vpop.f32.mrb[0].mxu0
        %v1600 = vadd.f32 %v1439, %v1599
        %v1601 = vpop.f32.mrb[0].mxu0
        %1602 = vmatprep.mubr.bf16.mxu0 %v603
        %1603 = vmatmul.mubr.bf16.gmra.mrb[0].mxu0 %v602
        %v1604 = vpop.f32.mrb[0].mxu0
        %v1605 = vadd.f32 %v1444, %v1604
        %v1606 = vpop.f32.mrb[0].mxu0
        %v1607 = vpop.f32.mrb[0].mxu0
        %v1608 = vadd.f32 %v1447, %v1607
        %v1609 = vpop.f32.mrb[0].mxu0
        %1610 = vmatprep.mubr.bf16.mxu0 %v606
        %1611 = vmatmul.mubr.bf16.gmra.mrb[0].mxu0 %v605
        %v1612 = vpop.f32.mrb[0].mxu0
        %v1613 = vadd.f32 %v1452, %v1612
        %v1614 = vpop.f32.mrb[0].mxu0
        %v1615 = vpop.f32.mrb[0].mxu0
        %v1616 = vadd.f32 %v1455, %v1615
        %v1617 = vpop.f32.mrb[0].mxu0
        %1618 = vmatprep.mubr.bf16.mxu0 %v609
        %1619 = vmatmul.mubr.bf16.gmra.mrb[0].mxu0 %v608
        %v1620 = vpop.f32.mrb[0].mxu0
        %v1621 = vadd.f32 %v1460, %v1620
        %v1622 = vpop.f32.mrb[0].mxu0
        %v1623 = vpop.f32.mrb[0].mxu0
        %v1624 = vadd.f32 %v1463, %v1623
        %v1625 = vpop.f32.mrb[0].mxu0
        %1626 = vmatprep.mubr.bf16.mxu0 %v612
        %1627 = vmatmul.mubr.bf16.gmra.mrb[0].mxu0 %v611
        %v1628 = vpop.f32.mrb[0].mxu0
        %v1629 = vadd.f32 %v1468, %v1628
        %v1630 = vpop.f32.mrb[0].mxu0
        %v1631 = vpop.f32.mrb[0].mxu0
        %v1632 = vadd.f32 %v1471, %v1631
        %v1633 = vpop.f32.mrb[0].mxu0
        %1634 = vmatprep.mubr.bf16.mxu0 %v615
        %1635 = vmatmul.mubr.bf16.gmra.mrb[0].mxu0 %v614
        %v1636 = vpop.f32.mrb[0].mxu0
        %v1637 = vadd.f32 %v1476, %v1636
        %v1638 = vpop.f32.mrb[0].mxu0
        %v1639 = vpop.f32.mrb[0].mxu0
        %v1640 = vadd.f32 %v1479, %v1639
        %v1641 = vpop.f32.mrb[0].mxu0
        %1642 = vmatprep.mubr.bf16.mxu0 %v618
        %1643 = vmatmul.mubr.bf16.gmra.mrb[0].mxu0 %v617
        %v1644 = vpop.f32.mrb[0].mxu0
        %v1645 = vadd.f32 %v1484, %v1644
        %v1646 = vpop.f32.mrb[0].mxu0
        %v1647 = vpop.f32.mrb[0].mxu0
        %v1648 = vadd.f32 %v1487, %v1647
        %v1649 = vpop.f32.mrb[0].mxu0
        %1650 = vmatprep.mubr.bf16.mxu0 %v621
        %1651 = vmatmul.mubr.bf16.gmra.mrb[0].mxu0 %v620
        %v1652 = vpop.f32.mrb[0].mxu0
        %v1653 = vadd.f32 %v1492, %v1652
        %v1654 = vpop.f32.mrb[0].mxu0
        %v1655 = vpop.f32.mrb[0].mxu0
        %v1656 = vadd.f32 %v1495, %v1655
        %v1657 = vpop.f32.mrb[0].mxu0
        %1658 = vmatprep.mubr.bf16.mxu0 %v624
        %1659 = vmatmul.mubr.bf16.gmra.mrb[0].mxu0 %v623
        %v1660 = vpop.f32.mrb[0].mxu0
        %v1661 = vadd.f32 %v1500, %v1660
        %v1662 = vpop.f32.mrb[0].mxu0
        %v1663 = vpop.f32.mrb[0].mxu0
        %v1664 = vadd.f32 %v1503, %v1663
        %v1665 = vpop.f32.mrb[0].mxu0
        %1666 = vmatprep.mubr.bf16.mxu0 %v627
        %1667 = vmatmul.mubr.bf16.gmra.mrb[0].mxu0 %v626
        %v1668 = vpop.f32.mrb[0].mxu0
        %v1669 = vadd.f32 %v1508, %v1668
        %v1670 = vpop.f32.mrb[0].mxu0
        %v1671 = vpop.f32.mrb[0].mxu0
        %v1672 = vadd.f32 %v1511, %v1671
        %v1673 = vpop.f32.mrb[0].mxu0
        %1674 = vmatprep.mubr.bf16.mxu0 %v630
        %1675 = vmatmul.mubr.bf16.gmra.mrb[0].mxu0 %v629
        %v1676 = vpop.f32.mrb[0].mxu0
        %v1677 = vadd.f32 %v1516, %v1676
        %v1678 = vpop.f32.mrb[0].mxu0
        %v1679 = vpop.f32.mrb[0].mxu0
        %v1680 = vadd.f32 %v1519, %v1679
        %v1681 = vpop.f32.mrb[0].mxu0
        %1682 = vmatprep.mubr.bf16.mxu0 %v633
        %1683 = vmatmul.mubr.bf16.gmra.mrb[0].mxu0 %v632
        %v1684 = vpop.f32.mrb[0].mxu0
        %v1685 = vadd.f32 %v1524, %v1684
        %v1686 = vpop.f32.mrb[0].mxu0
        %v1687 = vpop.f32.mrb[0].mxu0
        %v1688 = vadd.f32 %v1527, %v1687
        %v1689 = vpop.f32.mrb[0].mxu0
        %1690 = vmatprep.mubr.bf16.mxu0 %v636
        %1691 = vmatmul.mubr.bf16.gmra.mrb[0].mxu0 %v635
        %v1692 = vpop.f32.mrb[0].mxu0
        %v1693 = vadd.f32 %v1532, %v1692
        %v1694 = vpop.f32.mrb[0].mxu0
        %v1695 = vpop.f32.mrb[0].mxu0
        %v1696 = vadd.f32 %v1535, %v1695
        %v1697 = vpop.f32.mrb[0].mxu0
        %1698 = vdwg.mxu0
        %1699 = vmatprep.subr.bf16.mxu0 0
        %1700 = vmatpush1.bf16.msra.mxu0 %v1120
        %1701 = vmatprep.subr.bf16.mxu0 0
        %1702 = vmatpush1.bf16.msra.mxu0 %v1121
        %1703 = vmatprep.subr.bf16.mxu0 0
        %1704 = vmatpush1.bf16.msra.mxu0 %v1122
        %1705 = vmatprep.subr.bf16.mxu0 0
        %1706 = vmatpush1.bf16.msra.mxu0 %v1123
        %1707 = vmatprep.subr.bf16.mxu0 0
        %1708 = vmatpush1.bf16.msra.mxu0 %v1124
        %1709 = vmatprep.subr.bf16.mxu0 0
        %1710 = vmatpush1.bf16.msra.mxu0 %v1125
        %1711 = vmatprep.subr.bf16.mxu0 0
        %1712 = vmatpush1.bf16.msra.mxu0 %v1126
        %1713 = vmatprep.subr.bf16.mxu0 0
        %1714 = vmatpush1.bf16.msra.mxu0 %v1127
        %1715 = vmatprep.subr.bf16.mxu0 0
        %1716 = vmatpush1.bf16.msra.mxu0 %v1128
        %1717 = vmatprep.subr.bf16.mxu0 0
        %1718 = vmatpush1.bf16.msra.mxu0 %v1129
        %1719 = vmatprep.subr.bf16.mxu0 0
        %1720 = vmatpush1.bf16.msra.mxu0 %v1130
        %1721 = vmatprep.subr.bf16.mxu0 0
        %1722 = vmatpush1.bf16.msra.mxu0 %v1131
        %1723 = vmatprep.subr.bf16.mxu0 0
        %1724 = vmatpush1.bf16.msra.mxu0 %v1132
        %1725 = vmatprep.subr.bf16.mxu0 0
        %1726 = vmatpush1.bf16.msra.mxu0 %v1133
        %1727 = vmatprep.subr.bf16.mxu0 0
        %1728 = vmatpush1.bf16.msra.mxu0 %v1134
        %1729 = vmatprep.subr.bf16.mxu0 0
        %1730 = vmatpush1.bf16.msra.mxu0 %v1135
        %1731 = vmatprep.mubr.bf16.mxu0 %v593
        %1732 = vmatmul.mubr.bf16.gmra.mrb[0].mxu0 %v592
        %v1733 = vpop.f32.mrb[0].mxu0
        %v1734 = vadd.f32 %v1573, %v1733
        %v1735 = vpop.f32.mrb[0].mxu0
        %v1736 = vpop.f32.mrb[0].mxu0
        %v1737 = vadd.f32 %v1576, %v1736
        %v1738 = vpop.f32.mrb[0].mxu0
        %1739 = vmatprep.mubr.bf16.mxu0 %v596
        %1740 = vmatmul.mubr.bf16.gmra.mrb[0].mxu0 %v595
        %v1741 = vpop.f32.mrb[0].mxu0
        %v1742 = vadd.f32 %v1581, %v1741
        %v1743 = vpop.f32.mrb[0].mxu0
        %v1744 = vpop.f32.mrb[0].mxu0
        %v1745 = vadd.f32 %v1584, %v1744
        %v1746 = vpop.f32.mrb[0].mxu0
        %1747 = vmatprep.mubr.bf16.mxu0 %v599
        %1748 = vmatmul.mubr.bf16.gmra.mrb[0].mxu0 %v598
        %v1749 = vpop.f32.mrb[0].mxu0
        %v1750 = vadd.f32 %v1589, %v1749
        %v1751 = vpop.f32.mrb[0].mxu0
        %v1752 = vpop.f32.mrb[0].mxu0
        %v1753 = vadd.f32 %v1592, %v1752
        %v1754 = vpop.f32.mrb[0].mxu0
        %1755 = vmatprep.mubr.bf16.mxu0 %v602
        %1756 = vmatmul.mubr.bf16.gmra.mrb[0].mxu0 %v601
        %v1757 = vpop.f32.mrb[0].mxu0
        %v1758 = vadd.f32 %v1597, %v1757
        %v1759 = vpop.f32.mrb[0].mxu0
        %v1760 = vpop.f32.mrb[0].mxu0
        %v1761 = vadd.f32 %v1600, %v1760
        %v1762 = vpop.f32.mrb[0].mxu0
        %1763 = vmatprep.mubr.bf16.mxu0 %v605
        %1764 = vmatmul.mubr.bf16.gmra.mrb[0].mxu0 %v604
        %v1765 = vpop.f32.mrb[0].mxu0
        %v1766 = vadd.f32 %v1605, %v1765
        %v1767 = vpop.f32.mrb[0].mxu0
        %v1768 = vpop.f32.mrb[0].mxu0
        %v1769 = vadd.f32 %v1608, %v1768
        %v1770 = vpop.f32.mrb[0].mxu0
        %1771 = vmatprep.mubr.bf16.mxu0 %v608
        %1772 = vmatmul.mubr.bf16.gmra.mrb[0].mxu0 %v607
        %v1773 = vpop.f32.mrb[0].mxu0
        %v1774 = vadd.f32 %v1613, %v1773
        %v1775 = vpop.f32.mrb[0].mxu0
        %v1776 = vpop.f32.mrb[0].mxu0
        %v1777 = vadd.f32 %v1616, %v1776
        %v1778 = vpop.f32.mrb[0].mxu0
        %1779 = vmatprep.mubr.bf16.mxu0 %v611
        %1780 = vmatmul.mubr.bf16.gmra.mrb[0].mxu0 %v610
        %v1781 = vpop.f32.mrb[0].mxu0
        %v1782 = vadd.f32 %v1621, %v1781
        %v1783 = vpop.f32.mrb[0].mxu0
        %v1784 = vpop.f32.mrb[0].mxu0
        %v1785 = vadd.f32 %v1624, %v1784
        %v1786 = vpop.f32.mrb[0].mxu0
        %1787 = vmatprep.mubr.bf16.mxu0 %v614
        %1788 = vmatmul.mubr.bf16.gmra.mrb[0].mxu0 %v613
        %v1789 = vpop.f32.mrb[0].mxu0
        %v1790 = vadd.f32 %v1629, %v1789
        %v1791 = vpop.f32.mrb[0].mxu0
        %v1792 = vpop.f32.mrb[0].mxu0
        %v1793 = vadd.f32 %v1632, %v1792
        %v1794 = vpop.f32.mrb[0].mxu0
        %1795 = vmatprep.mubr.bf16.mxu0 %v617
        %1796 = vmatmul.mubr.bf16.gmra.mrb[0].mxu0 %v616
        %v1797 = vpop.f32.mrb[0].mxu0
        %v1798 = vadd.f32 %v1637, %v1797
        %v1799 = vpop.f32.mrb[0].mxu0
        %v1800 = vpop.f32.mrb[0].mxu0
        %v1801 = vadd.f32 %v1640, %v1800
        %v1802 = vpop.f32.mrb[0].mxu0
        %1803 = vmatprep.mubr.bf16.mxu0 %v620
        %1804 = vmatmul.mubr.bf16.gmra.mrb[0].mxu0 %v619
        %v1805 = vpop.f32.mrb[0].mxu0
        %v1806 = vadd.f32 %v1645, %v1805
        %v1807 = vpop.f32.mrb[0].mxu0
        %v1808 = vpop.f32.mrb[0].mxu0
        %v1809 = vadd.f32 %v1648, %v1808
        %v1810 = vpop.f32.mrb[0].mxu0
        %1811 = vmatprep.mubr.bf16.mxu0 %v623
        %1812 = vmatmul.mubr.bf16.gmra.mrb[0].mxu0 %v622
        %v1813 = vpop.f32.mrb[0].mxu0
        %v1814 = vadd.f32 %v1653, %v1813
        %v1815 = vpop.f32.mrb[0].mxu0
        %v1816 = vpop.f32.mrb[0].mxu0
        %v1817 = vadd.f32 %v1656, %v1816
        %v1818 = vpop.f32.mrb[0].mxu0
        %1819 = vmatprep.mubr.bf16.mxu0 %v626
        %1820 = vmatmul.mubr.bf16.gmra.mrb[0].mxu0 %v625
        %v1821 = vpop.f32.mrb[0].mxu0
        %v1822 = vadd.f32 %v1661, %v1821
        %v1823 = vpop.f32.mrb[0].mxu0
        %v1824 = vpop.f32.mrb[0].mxu0
        %v1825 = vadd.f32 %v1664, %v1824
        %v1826 = vpop.f32.mrb[0].mxu0
        %1827 = vmatprep.mubr.bf16.mxu0 %v629
        %1828 = vmatmul.mubr.bf16.gmra.mrb[0].mxu0 %v628
        %v1829 = vpop.f32.mrb[0].mxu0
        %v1830 = vadd.f32 %v1669, %v1829
        %v1831 = vpop.f32.mrb[0].mxu0
        %v1832 = vpop.f32.mrb[0].mxu0
        %v1833 = vadd.f32 %v1672, %v1832
        %v1834 = vpop.f32.mrb[0].mxu0
        %1835 = vmatprep.mubr.bf16.mxu0 %v632
        %1836 = vmatmul.mubr.bf16.gmra.mrb[0].mxu0 %v631
        %v1837 = vpop.f32.mrb[0].mxu0
        %v1838 = vadd.f32 %v1677, %v1837
        %v1839 = vpop.f32.mrb[0].mxu0
        %v1840 = vpop.f32.mrb[0].mxu0
        %v1841 = vadd.f32 %v1680, %v1840
        %v1842 = vpop.f32.mrb[0].mxu0
        %1843 = vmatprep.mubr.bf16.mxu0 %v635
        %1844 = vmatmul.mubr.bf16.gmra.mrb[0].mxu0 %v634
        %v1845 = vpop.f32.mrb[0].mxu0
        %v1846 = vadd.f32 %v1685, %v1845
        %v1847 = vpop.f32.mrb[0].mxu0
        %v1848 = vpop.f32.mrb[0].mxu0
        %v1849 = vadd.f32 %v1688, %v1848
        %v1850 = vpop.f32.mrb[0].mxu0
        %1851 = vmatprep.mubr.bf16.mxu0 %v638
        %1852 = vmatmul.mubr.bf16.gmra.mrb[0].mxu0 %v637
        %v1853 = vpop.f32.mrb[0].mxu0
        %v1854 = vadd.f32 %v1693, %v1853
        %v1855 = vpop.f32.mrb[0].mxu0
        %v1856 = vpop.f32.mrb[0].mxu0
        %v1857 = vadd.f32 %v1696, %v1856
        %v1858 = vpop.f32.mrb[0].mxu0
        %1859 = vdwg.mxu0
        %1860 = vmatprep.subr.bf16.mxu0 0
        %1861 = vmatpush1.bf16.msra.mxu0 %v1136
        %1862 = vmatprep.subr.bf16.mxu0 0
        %1863 = vmatpush1.bf16.msra.mxu0 %v1137
        %1864 = vmatprep.subr.bf16.mxu0 0
        %1865 = vmatpush1.bf16.msra.mxu0 %v1138
        %1866 = vmatprep.subr.bf16.mxu0 0
        %1867 = vmatpush1.bf16.msra.mxu0 %v1139
        %1868 = vmatprep.subr.bf16.mxu0 0
        %1869 = vmatpush1.bf16.msra.mxu0 %v1140
        %1870 = vmatprep.subr.bf16.mxu0 0
        %1871 = vmatpush1.bf16.msra.mxu0 %v1141
        %1872 = vmatprep.subr.bf16.mxu0 0
        %1873 = vmatpush1.bf16.msra.mxu0 %v1142
        %1874 = vmatprep.subr.bf16.mxu0 0
        %1875 = vmatpush1.bf16.msra.mxu0 %v1143
        %1876 = vmatprep.subr.bf16.mxu0 0
        %1877 = vmatpush1.bf16.msra.mxu0 0
        %1878 = vmatprep.subr.bf16.mxu0 0
        %1879 = vmatpush1.bf16.msra.mxu0 0
        %1880 = vmatprep.subr.bf16.mxu0 0
        %1881 = vmatpush1.bf16.msra.mxu0 0
        %1882 = vmatprep.subr.bf16.mxu0 0
        %1883 = vmatpush1.bf16.msra.mxu0 0
        %1884 = vmatprep.subr.bf16.mxu0 0
        %1885 = vmatpush1.bf16.msra.mxu0 0
        %1886 = vmatprep.subr.bf16.mxu0 0
        %1887 = vmatpush1.bf16.msra.mxu0 0
        %1888 = vmatprep.subr.bf16.mxu0 0
        %1889 = vmatpush1.bf16.msra.mxu0 0
        %1890 = vmatprep.subr.bf16.mxu0 0
        %1891 = vmatpush1.bf16.msra.mxu0 0
        %1892 = vmatprep.mubr.bf16.mxu0 0
        %1893 = vmatmul.mubr.bf16.gmra.mrb[0].mxu0 %v594
        %v1894 = vpop.f32.mrb[0].mxu0
        %v1895 = vadd.f32 %v1734, %v1894
        %v1896 = vpop.f32.mrb[0].mxu0
        %v1897 = vpop.f32.mrb[0].mxu0
        %v1898 = vadd.f32 %v1737, %v1897
        %v1899 = vpop.f32.mrb[0].mxu0
        %1900 = vmatprep.mubr.bf16.mxu0 0
        %1901 = vmatmul.mubr.bf16.gmra.mrb[0].mxu0 %v597
        %v1902 = vpop.f32.mrb[0].mxu0
        %v1903 = vadd.f32 %v1742, %v1902
        %v1904 = vpop.f32.mrb[0].mxu0
        %v1905 = vpop.f32.mrb[0].mxu0
        %v1906 = vadd.f32 %v1745, %v1905
        %v1907 = vpop.f32.mrb[0].mxu0
        %1908 = vmatprep.mubr.bf16.mxu0 0
        %1909 = vmatmul.mubr.bf16.gmra.mrb[0].mxu0 %v600
        %v1910 = vpop.f32.mrb[0].mxu0
        %v1911 = vadd.f32 %v1750, %v1910
        %v1912 = vpop.f32.mrb[0].mxu0
        %v1913 = vpop.f32.mrb[0].mxu0
        %v1914 = vadd.f32 %v1753, %v1913
        %v1915 = vpop.f32.mrb[0].mxu0
        %1916 = vmatprep.mubr.bf16.mxu0 0
        %1917 = vmatmul.mubr.bf16.gmra.mrb[0].mxu0 %v603
        %v1918 = vpop.f32.mrb[0].mxu0
        %v1919 = vadd.f32 %v1758, %v1918
        %v1920 = vpop.f32.mrb[0].mxu0
        %v1921 = vpop.f32.mrb[0].mxu0
        %v1922 = vadd.f32 %v1761, %v1921
        %v1923 = vpop.f32.mrb[0].mxu0
        %1924 = vmatprep.mubr.bf16.mxu0 0
        %1925 = vmatmul.mubr.bf16.gmra.mrb[0].mxu0 %v606
        %v1926 = vpop.f32.mrb[0].mxu0
        %v1927 = vadd.f32 %v1766, %v1926
        %v1928 = vpop.f32.mrb[0].mxu0
        %v1929 = vpop.f32.mrb[0].mxu0
        %v1930 = vadd.f32 %v1769, %v1929
        %v1931 = vpop.f32.mrb[0].mxu0
        %1932 = vmatprep.mubr.bf16.mxu0 0
        %1933 = vmatmul.mubr.bf16.gmra.mrb[0].mxu0 %v609
        %v1934 = vpop.f32.mrb[0].mxu0
        %v1935 = vadd.f32 %v1774, %v1934
        %v1936 = vpop.f32.mrb[0].mxu0
        %v1937 = vpop.f32.mrb[0].mxu0
        %v1938 = vadd.f32 %v1777, %v1937
        %v1939 = vpop.f32.mrb[0].mxu0
        %1940 = vmatprep.mubr.bf16.mxu0 0
        %1941 = vmatmul.mubr.bf16.gmra.mrb[0].mxu0 %v612
        %v1942 = vpop.f32.mrb[0].mxu0
        %v1943 = vadd.f32 %v1782, %v1942
        %v1944 = vpop.f32.mrb[0].mxu0
        %v1945 = vpop.f32.mrb[0].mxu0
        %v1946 = vadd.f32 %v1785, %v1945
        %v1947 = vpop.f32.mrb[0].mxu0
        %1948 = vmatprep.mubr.bf16.mxu0 0
        %1949 = vmatmul.mubr.bf16.gmra.mrb[0].mxu0 %v615
        %v1950 = vpop.f32.mrb[0].mxu0
        %v1951 = vadd.f32 %v1790, %v1950
        %v1952 = vpop.f32.mrb[0].mxu0
        %v1953 = vpop.f32.mrb[0].mxu0
        %v1954 = vadd.f32 %v1793, %v1953
        %v1955 = vpop.f32.mrb[0].mxu0
        %1956 = vmatprep.mubr.bf16.mxu0 0
        %1957 = vmatmul.mubr.bf16.gmra.mrb[0].mxu0 %v618
        %v1958 = vpop.f32.mrb[0].mxu0
        %v1959 = vadd.f32 %v1798, %v1958
        %v1960 = vpop.f32.mrb[0].mxu0
        %v1961 = vpop.f32.mrb[0].mxu0
        %v1962 = vadd.f32 %v1801, %v1961
        %v1963 = vpop.f32.mrb[0].mxu0
        %1964 = vmatprep.mubr.bf16.mxu0 0
        %1965 = vmatmul.mubr.bf16.gmra.mrb[0].mxu0 %v621
        %v1966 = vpop.f32.mrb[0].mxu0
        %v1967 = vadd.f32 %v1806, %v1966
        %v1968 = vpop.f32.mrb[0].mxu0
        %v1969 = vpop.f32.mrb[0].mxu0
        %v1970 = vadd.f32 %v1809, %v1969
        %v1971 = vpop.f32.mrb[0].mxu0
        %1972 = vmatprep.mubr.bf16.mxu0 0
        %1973 = vmatmul.mubr.bf16.gmra.mrb[0].mxu0 %v624
        %v1974 = vpop.f32.mrb[0].mxu0
        %v1975 = vadd.f32 %v1814, %v1974
        %v1976 = vpop.f32.mrb[0].mxu0
        %v1977 = vpop.f32.mrb[0].mxu0
        %v1978 = vadd.f32 %v1817, %v1977
        %v1979 = vpop.f32.mrb[0].mxu0
        %1980 = vmatprep.mubr.bf16.mxu0 0
        %1981 = vmatmul.mubr.bf16.gmra.mrb[0].mxu0 %v627
        %v1982 = vpop.f32.mrb[0].mxu0
        %v1983 = vadd.f32 %v1822, %v1982
        %v1984 = vpop.f32.mrb[0].mxu0
        %v1985 = vpop.f32.mrb[0].mxu0
        %v1986 = vadd.f32 %v1825, %v1985
        %v1987 = vpop.f32.mrb[0].mxu0
        %1988 = vmatprep.mubr.bf16.mxu0 0
        %1989 = vmatmul.mubr.bf16.gmra.mrb[0].mxu0 %v630
        %v1990 = vpop.f32.mrb[0].mxu0
        %v1991 = vadd.f32 %v1830, %v1990
        %v1992 = vpop.f32.mrb[0].mxu0
        %v1993 = vpop.f32.mrb[0].mxu0
        %v1994 = vadd.f32 %v1833, %v1993
        %v1995 = vpop.f32.mrb[0].mxu0
        %1996 = vmatprep.mubr.bf16.mxu0 0
        %1997 = vmatmul.mubr.bf16.gmra.mrb[0].mxu0 %v633
        %v1998 = vpop.f32.mrb[0].mxu0
        %v1999 = vadd.f32 %v1838, %v1998
        %v2000 = vpop.f32.mrb[0].mxu0
        %v2001 = vpop.f32.mrb[0].mxu0
        %v2002 = vadd.f32 %v1841, %v2001
        %v2003 = vpop.f32.mrb[0].mxu0
        %2004 = vmatprep.mubr.bf16.mxu0 0
        %2005 = vmatmul.mubr.bf16.gmra.mrb[0].mxu0 %v636
        %v2006 = vpop.f32.mrb[0].mxu0
        %v2007 = vadd.f32 %v1846, %v2006
        %v2008 = vpop.f32.mrb[0].mxu0
        %v2009 = vpop.f32.mrb[0].mxu0
        %v2010 = vadd.f32 %v1849, %v2009
        %v2011 = vpop.f32.mrb[0].mxu0
        %2012 = vmatprep.mubr.bf16.mxu0 0
        %2013 = vmatmul.mubr.bf16.gmra.mrb[0].mxu0 %v639
        %v2014 = vpop.f32.mrb[0].mxu0
        %v2015 = vadd.f32 %v1854, %v2014
        %v2016 = vpop.f32.mrb[0].mxu0
        %v2017 = vpop.f32.mrb[0].mxu0
        %v2018 = vadd.f32 %v1857, %v2017
        %v2019 = vpop.f32.mrb[0].mxu0
        %2020 = vdwg.mxu0
        %v2021 = vld [vmem:[%s2] sm:$0x1]
        %v2022 = vlaneseq
        %v2023 = vshrl.u32 %v2022, 7
        %v2024 = vsub.s32 0, %v2023
        %v2025 = vrot.slane %v2021, %v2024
        %v2026 = vmul.f32 %v1895, %v2025
        %v2027 = vmul.f32 %v1898, %v2025
        %v2028 = vmul.f32 %v1903, %v2025
        %v2029 = vmul.f32 %v1906, %v2025
        %v2030 = vmul.f32 %v1911, %v2025
        %v2031 = vmul.f32 %v1914, %v2025
        %v2032 = vmul.f32 %v1919, %v2025
        %v2033 = vmul.f32 %v1922, %v2025
        %v2034 = vmul.f32 %v1927, %v2025
        %v2035 = vmul.f32 %v1930, %v2025
        %v2036 = vmul.f32 %v1935, %v2025
        %v2037 = vmul.f32 %v1938, %v2025
        %v2038 = vmul.f32 %v1943, %v2025
        %v2039 = vmul.f32 %v1946, %v2025
        %v2040 = vmul.f32 %v1951, %v2025
        %v2041 = vmul.f32 %v1954, %v2025
        %v2042 = vmul.f32 %v1959, %v2025
        %v2043 = vmul.f32 %v1962, %v2025
        %v2044 = vmul.f32 %v1967, %v2025
        %v2045 = vmul.f32 %v1970, %v2025
        %v2046 = vmul.f32 %v1975, %v2025
        %v2047 = vmul.f32 %v1978, %v2025
        %v2048 = vmul.f32 %v1983, %v2025
        %v2049 = vmul.f32 %v1986, %v2025
        %v2050 = vmul.f32 %v1991, %v2025
        %v2051 = vmul.f32 %v1994, %v2025
        %v2052 = vmul.f32 %v1999, %v2025
        %v2053 = vmul.f32 %v2002, %v2025
        %v2054 = vmul.f32 %v2007, %v2025
        %v2055 = vmul.f32 %v2010, %v2025
        %v2056 = vmul.f32 %v2015, %v2025
        %v2057 = vmul.f32 %v2018, %v2025
        %v2058 = vld [vmem:[%s2 + $0x1] sm:$0x1]
        %v2059 = vlaneseq
        %v2060 = vshrl.u32 %v2059, 7
        %v2061 = vsub.s32 0, %v2060
        %v2062 = vrot.slane %v2058, %v2061
        %v2063 = vadd.f32 %v2026, %v2062
        %v2064 = vadd.f32 %v2027, %v2062
        %v2065 = vadd.f32 %v2028, %v2062
        %v2066 = vadd.f32 %v2029, %v2062
        %v2067 = vadd.f32 %v2030, %v2062
        %v2068 = vadd.f32 %v2031, %v2062
        %v2069 = vadd.f32 %v2032, %v2062
        %v2070 = vadd.f32 %v2033, %v2062
        %v2071 = vadd.f32 %v2034, %v2062
        %v2072 = vadd.f32 %v2035, %v2062
        %v2073 = vadd.f32 %v2036, %v2062
        %v2074 = vadd.f32 %v2037, %v2062
        %v2075 = vadd.f32 %v2038, %v2062
        %v2076 = vadd.f32 %v2039, %v2062
        %v2077 = vadd.f32 %v2040, %v2062
        %v2078 = vadd.f32 %v2041, %v2062
        %v2079 = vadd.f32 %v2042, %v2062
        %v2080 = vadd.f32 %v2043, %v2062
        %v2081 = vadd.f32 %v2044, %v2062
        %v2082 = vadd.f32 %v2045, %v2062
        %v2083 = vadd.f32 %v2046, %v2062
        %v2084 = vadd.f32 %v2047, %v2062
        %v2085 = vadd.f32 %v2048, %v2062
        %v2086 = vadd.f32 %v2049, %v2062
        %v2087 = vadd.f32 %v2050, %v2062
        %v2088 = vadd.f32 %v2051, %v2062
        %v2089 = vadd.f32 %v2052, %v2062
        %v2090 = vadd.f32 %v2053, %v2062
        %v2091 = vadd.f32 %v2054, %v2062
        %v2092 = vadd.f32 %v2055, %v2062
        %v2093 = vadd.f32 %v2056, %v2062
        %v2094 = vadd.f32 %v2057, %v2062
        %v2095 = vmul.f32 %v2063, 0.5
        %v2096 = vmul.f32 %v2064, 0.5
        %v2097 = vmul.f32 %v2065, 0.5
        %v2098 = vmul.f32 %v2066, 0.5
        %v2099 = vmul.f32 %v2067, 0.5
        %v2100 = vmul.f32 %v2068, 0.5
        %v2101 = vmul.f32 %v2069, 0.5
        %v2102 = vmul.f32 %v2070, 0.5
        %v2103 = vmul.f32 %v2071, 0.5
        %v2104 = vmul.f32 %v2072, 0.5
        %v2105 = vmul.f32 %v2073, 0.5
        %v2106 = vmul.f32 %v2074, 0.5
        %v2107 = vmul.f32 %v2075, 0.5
        %v2108 = vmul.f32 %v2076, 0.5
        %v2109 = vmul.f32 %v2077, 0.5
        %v2110 = vmul.f32 %v2078, 0.5
        %v2111 = vmul.f32 %v2079, 0.5
        %v2112 = vmul.f32 %v2080, 0.5
        %v2113 = vmul.f32 %v2081, 0.5
        %v2114 = vmul.f32 %v2082, 0.5
        %v2115 = vmul.f32 %v2083, 0.5
        %v2116 = vmul.f32 %v2084, 0.5
        %v2117 = vmul.f32 %v2085, 0.5
        %v2118 = vmul.f32 %v2086, 0.5
        %v2119 = vmul.f32 %v2087, 0.5
        %v2120 = vmul.f32 %v2088, 0.5
        %v2121 = vmul.f32 %v2089, 0.5
        %v2122 = vmul.f32 %v2090, 0.5
        %v2123 = vmul.f32 %v2091, 0.5
        %v2124 = vmul.f32 %v2092, 0.5
        %v2125 = vmul.f32 %v2093, 0.5
        %v2126 = vmul.f32 %v2094, 0.5
        %v2127 = vmul.f32 %v2063, 0.044715
        %v2128 = vmul.f32 %v2064, 0.044715
        %v2129 = vmul.f32 %v2065, 0.044715
        %v2130 = vmul.f32 %v2066, 0.044715
        %v2131 = vmul.f32 %v2067, 0.044715
        %v2132 = vmul.f32 %v2068, 0.044715
        %v2133 = vmul.f32 %v2069, 0.044715
        %v2134 = vmul.f32 %v2070, 0.044715
        %v2135 = vmul.f32 %v2071, 0.044715
        %v2136 = vmul.f32 %v2072, 0.044715
        %v2137 = vmul.f32 %v2073, 0.044715
        %v2138 = vmul.f32 %v2074, 0.044715
        %v2139 = vmul.f32 %v2075, 0.044715
        %v2140 = vmul.f32 %v2076, 0.044715
        %v2141 = vmul.f32 %v2077, 0.044715
        %v2142 = vmul.f32 %v2078, 0.044715
        %v2143 = vmul.f32 %v2079, 0.044715
        %v2144 = vmul.f32 %v2080, 0.044715
        %v2145 = vmul.f32 %v2081, 0.044715
        %v2146 = vmul.f32 %v2082, 0.044715
        %v2147 = vmul.f32 %v2083, 0.044715
        %v2148 = vmul.f32 %v2084, 0.044715
        %v2149 = vmul.f32 %v2085, 0.044715
        %v2150 = vmul.f32 %v2086, 0.044715
        %v2151 = vmul.f32 %v2087, 0.044715
        %v2152 = vmul.f32 %v2088, 0.044715
        %v2153 = vmul.f32 %v2089, 0.044715
        %v2154 = vmul.f32 %v2090, 0.044715
        %v2155 = vmul.f32 %v2091, 0.044715
        %v2156 = vmul.f32 %v2092, 0.044715
        %v2157 = vmul.f32 %v2093, 0.044715
        %v2158 = vmul.f32 %v2094, 0.044715
        %v2159 = vmul.f32 %v2127, %v2063
        %v2160 = vmul.f32 %v2128, %v2064
        %v2161 = vmul.f32 %v2129, %v2065
        %v2162 = vmul.f32 %v2130, %v2066
        %v2163 = vmul.f32 %v2131, %v2067
        %v2164 = vmul.f32 %v2132, %v2068
        %v2165 = vmul.f32 %v2133, %v2069
        %v2166 = vmul.f32 %v2134, %v2070
        %v2167 = vmul.f32 %v2135, %v2071
        %v2168 = vmul.f32 %v2136, %v2072
        %v2169 = vmul.f32 %v2137, %v2073
        %v2170 = vmul.f32 %v2138, %v2074
        %v2171 = vmul.f32 %v2139, %v2075
        %v2172 = vmul.f32 %v2140, %v2076
        %v2173 = vmul.f32 %v2141, %v2077
        %v2174 = vmul.f32 %v2142, %v2078
        %v2175 = vmul.f32 %v2143, %v2079
        %v2176 = vmul.f32 %v2144, %v2080
        %v2177 = vmul.f32 %v2145, %v2081
        %v2178 = vmul.f32 %v2146, %v2082
        %v2179 = vmul.f32 %v2147, %v2083
        %v2180 = vmul.f32 %v2148, %v2084
        %v2181 = vmul.f32 %v2149, %v2085
        %v2182 = vmul.f32 %v2150, %v2086
        %v2183 = vmul.f32 %v2151, %v2087
        %v2184 = vmul.f32 %v2152, %v2088
        %v2185 = vmul.f32 %v2153, %v2089
        %v2186 = vmul.f32 %v2154, %v2090
        %v2187 = vmul.f32 %v2155, %v2091
        %v2188 = vmul.f32 %v2156, %v2092
        %v2189 = vmul.f32 %v2157, %v2093
        %v2190 = vmul.f32 %v2158, %v2094
        %v2191 = vmul.f32 %v2159, %v2063
        %v2192 = vmul.f32 %v2160, %v2064
        %v2193 = vmul.f32 %v2161, %v2065
        %v2194 = vmul.f32 %v2162, %v2066
        %v2195 = vmul.f32 %v2163, %v2067
        %v2196 = vmul.f32 %v2164, %v2068
        %v2197 = vmul.f32 %v2165, %v2069
        %v2198 = vmul.f32 %v2166, %v2070
        %v2199 = vmul.f32 %v2167, %v2071
        %v2200 = vmul.f32 %v2168, %v2072
        %v2201 = vmul.f32 %v2169, %v2073
        %v2202 = vmul.f32 %v2170, %v2074
        %v2203 = vmul.f32 %v2171, %v2075
        %v2204 = vmul.f32 %v2172, %v2076
        %v2205 = vmul.f32 %v2173, %v2077
        %v2206 = vmul.f32 %v2174, %v2078
        %v2207 = vmul.f32 %v2175, %v2079
        %v2208 = vmul.f32 %v2176, %v2080
        %v2209 = vmul.f32 %v2177, %v2081
        %v2210 = vmul.f32 %v2178, %v2082
        %v2211 = vmul.f32 %v2179, %v2083
        %v2212 = vmul.f32 %v2180, %v2084
        %v2213 = vmul.f32 %v2181, %v2085
        %v2214 = vmul.f32 %v2182, %v2086
        %v2215 = vmul.f32 %v2183, %v2087
        %v2216 = vmul.f32 %v2184, %v2088
        %v2217 = vmul.f32 %v2185, %v2089
        %v2218 = vmul.f32 %v2186, %v2090
        %v2219 = vmul.f32 %v2187, %v2091
        %v2220 = vmul.f32 %v2188, %v2092
        %v2221 = vmul.f32 %v2189, %v2093
        %v2222 = vmul.f32 %v2190, %v2094
        %v2223 = vadd.f32 %v2063, %v2191
        %v2224 = vadd.f32 %v2064, %v2192
        %v2225 = vadd.f32 %v2065, %v2193
        %v2226 = vadd.f32 %v2066, %v2194
        %v2227 = vadd.f32 %v2067, %v2195
        %v2228 = vadd.f32 %v2068, %v2196
        %v2229 = vadd.f32 %v2069, %v2197
        %v2230 = vadd.f32 %v2070, %v2198
        %v2231 = vadd.f32 %v2071, %v2199
        %v2232 = vadd.f32 %v2072, %v2200
        %v2233 = vadd.f32 %v2073, %v2201
        %v2234 = vadd.f32 %v2074, %v2202
        %v2235 = vadd.f32 %v2075, %v2203
        %v2236 = vadd.f32 %v2076, %v2204
        %v2237 = vadd.f32 %v2077, %v2205
        %v2238 = vadd.f32 %v2078, %v2206
        %v2239 = vadd.f32 %v2079, %v2207
        %v2240 = vadd.f32 %v2080, %v2208
        %v2241 = vadd.f32 %v2081, %v2209
        %v2242 = vadd.f32 %v2082, %v2210
        %v2243 = vadd.f32 %v2083, %v2211
        %v2244 = vadd.f32 %v2084, %v2212
        %v2245 = vadd.f32 %v2085, %v2213
        %v2246 = vadd.f32 %v2086, %v2214
        %v2247 = vadd.f32 %v2087, %v2215
        %v2248 = vadd.f32 %v2088, %v2216
        %v2249 = vadd.f32 %v2089, %v2217
        %v2250 = vadd.f32 %v2090, %v2218
        %v2251 = vadd.f32 %v2091, %v2219
        %v2252 = vadd.f32 %v2092, %v2220
        %v2253 = vadd.f32 %v2093, %v2221
        %v2254 = vadd.f32 %v2094, %v2222
        %v2255 = vmul.f32 %v2223, 0.7978846
        %v2256 = vmul.f32 %v2224, 0.7978846
        %v2257 = vmul.f32 %v2225, 0.7978846
        %v2258 = vmul.f32 %v2226, 0.7978846
        %v2259 = vmul.f32 %v2227, 0.7978846
        %v2260 = vmul.f32 %v2228, 0.7978846
        %v2261 = vmul.f32 %v2229, 0.7978846
        %v2262 = vmul.f32 %v2230, 0.7978846
        %v2263 = vmul.f32 %v2231, 0.7978846
        %v2264 = vmul.f32 %v2232, 0.7978846
        %v2265 = vmul.f32 %v2233, 0.7978846
        %v2266 = vmul.f32 %v2234, 0.7978846
        %v2267 = vmul.f32 %v2235, 0.7978846
        %v2268 = vmul.f32 %v2236, 0.7978846
        %v2269 = vmul.f32 %v2237, 0.7978846
        %v2270 = vmul.f32 %v2238, 0.7978846
        %v2271 = vmul.f32 %v2239, 0.7978846
        %v2272 = vmul.f32 %v2240, 0.7978846
        %v2273 = vmul.f32 %v2241, 0.7978846
        %v2274 = vmul.f32 %v2242, 0.7978846
        %v2275 = vmul.f32 %v2243, 0.7978846
        %v2276 = vmul.f32 %v2244, 0.7978846
        %v2277 = vmul.f32 %v2245, 0.7978846
        %v2278 = vmul.f32 %v2246, 0.7978846
        %v2279 = vmul.f32 %v2247, 0.7978846
        %v2280 = vmul.f32 %v2248, 0.7978846
        %v2281 = vmul.f32 %v2249, 0.7978846
        %v2282 = vmul.f32 %v2250, 0.7978846
        %v2283 = vmul.f32 %v2251, 0.7978846
        %v2284 = vmul.f32 %v2252, 0.7978846
        %v2285 = vmul.f32 %v2253, 0.7978846
        %v2286 = vmul.f32 %v2254, 0.7978846
        %v2287 = vtanh.pop %v2255
        %v2288 = vtanh.pop %v2256
        %v2289 = vtanh.pop %v2257
        %v2290 = vtanh.pop %v2258
        %v2291 = vtanh.pop %v2259
        %v2292 = vtanh.pop %v2260
        %v2293 = vtanh.pop %v2261
        %v2294 = vtanh.pop %v2262
        %v2295 = vtanh.pop %v2263
        %v2296 = vtanh.pop %v2264
        %v2297 = vtanh.pop %v2265
        %v2298 = vtanh.pop %v2266
        %v2299 = vtanh.pop %v2267
        %v2300 = vtanh.pop %v2268
        %v2301 = vtanh.pop %v2269
        %v2302 = vtanh.pop %v2270
        %v2303 = vtanh.pop %v2271
        %v2304 = vtanh.pop %v2272
        %v2305 = vtanh.pop %v2273
        %v2306 = vtanh.pop %v2274
        %v2307 = vtanh.pop %v2275
        %v2308 = vtanh.pop %v2276
        %v2309 = vtanh.pop %v2277
        %v2310 = vtanh.pop %v2278
        %v2311 = vtanh.pop %v2279
        %v2312 = vtanh.pop %v2280
        %v2313 = vtanh.pop %v2281
        %v2314 = vtanh.pop %v2282
        %v2315 = vtanh.pop %v2283
        %v2316 = vtanh.pop %v2284
        %v2317 = vtanh.pop %v2285
        %v2318 = vtanh.pop %v2286
        %v2319 = vadd.f32 %v2287, 1.0
        %v2320 = vadd.f32 %v2288, 1.0
        %v2321 = vadd.f32 %v2289, 1.0
        %v2322 = vadd.f32 %v2290, 1.0
        %v2323 = vadd.f32 %v2291, 1.0
        %v2324 = vadd.f32 %v2292, 1.0
        %v2325 = vadd.f32 %v2293, 1.0
        %v2326 = vadd.f32 %v2294, 1.0
        %v2327 = vadd.f32 %v2295, 1.0
        %v2328 = vadd.f32 %v2296, 1.0
        %v2329 = vadd.f32 %v2297, 1.0
        %v2330 = vadd.f32 %v2298, 1.0
        %v2331 = vadd.f32 %v2299, 1.0
        %v2332 = vadd.f32 %v2300, 1.0
        %v2333 = vadd.f32 %v2301, 1.0
        %v2334 = vadd.f32 %v2302, 1.0
        %v2335 = vadd.f32 %v2303, 1.0
        %v2336 = vadd.f32 %v2304, 1.0
        %v2337 = vadd.f32 %v2305, 1.0
        %v2338 = vadd.f32 %v2306, 1.0
        %v2339 = vadd.f32 %v2307, 1.0
        %v2340 = vadd.f32 %v2308, 1.0
        %v2341 = vadd.f32 %v2309, 1.0
        %v2342 = vadd.f32 %v2310, 1.0
        %v2343 = vadd.f32 %v2311, 1.0
        %v2344 = vadd.f32 %v2312, 1.0
        %v2345 = vadd.f32 %v2313, 1.0
        %v2346 = vadd.f32 %v2314, 1.0
        %v2347 = vadd.f32 %v2315, 1.0
        %v2348 = vadd.f32 %v2316, 1.0
        %v2349 = vadd.f32 %v2317, 1.0
        %v2350 = vadd.f32 %v2318, 1.0
        %v2351 = vmul.f32 %v2095, %v2319
        %v2352 = vmul.f32 %v2096, %v2320
        %v2353 = vmul.f32 %v2097, %v2321
        %v2354 = vmul.f32 %v2098, %v2322
        %v2355 = vmul.f32 %v2099, %v2323
        %v2356 = vmul.f32 %v2100, %v2324
        %v2357 = vmul.f32 %v2101, %v2325
        %v2358 = vmul.f32 %v2102, %v2326
        %v2359 = vmul.f32 %v2103, %v2327
        %v2360 = vmul.f32 %v2104, %v2328
        %v2361 = vmul.f32 %v2105, %v2329
        %v2362 = vmul.f32 %v2106, %v2330
        %v2363 = vmul.f32 %v2107, %v2331
        %v2364 = vmul.f32 %v2108, %v2332
        %v2365 = vmul.f32 %v2109, %v2333
        %v2366 = vmul.f32 %v2110, %v2334
        %v2367 = vmul.f32 %v2111, %v2335
        %v2368 = vmul.f32 %v2112, %v2336
        %v2369 = vmul.f32 %v2113, %v2337
        %v2370 = vmul.f32 %v2114, %v2338
        %v2371 = vmul.f32 %v2115, %v2339
        %v2372 = vmul.f32 %v2116, %v2340
        %v2373 = vmul.f32 %v2117, %v2341
        %v2374 = vmul.f32 %v2118, %v2342
        %v2375 = vmul.f32 %v2119, %v2343
        %v2376 = vmul.f32 %v2120, %v2344
        %v2377 = vmul.f32 %v2121, %v2345
        %v2378 = vmul.f32 %v2122, %v2346
        %v2379 = vmul.f32 %v2123, %v2347
        %v2380 = vmul.f32 %v2124, %v2348
        %v2381 = vmul.f32 %v2125, %v2349
        %v2382 = vmul.f32 %v2126, %v2350
        %2383 = vst [vmem:[#allocation2] sm:$0xff] 0.0
        %2384 = vst [vmem:[#allocation2 + $0x8] sm:$0xff] 0.0
        %2385 = vst [vmem:[#allocation2 + $0x10] sm:$0x3] 0.0
        %2386 = vst [vmem:[#allocation2 + $0x18] sm:$0xff] 0.0
        %2387 = vst [vmem:[#allocation2 + $0x20] sm:$0xff] 0.0
        %2388 = vst [vmem:[#allocation2 + $0x28] sm:$0x3] 0.0
        %2389 = vst [vmem:[#allocation2 + $0x30] sm:$0xff] 0.0
        %2390 = vst [vmem:[#allocation2 + $0x38] sm:$0xff] 0.0
        %2391 = vst [vmem:[#allocation2 + $0x40] sm:$0x3] 0.0
        %2392 = vst [vmem:[#allocation2 + $0x48] sm:$0xff] 0.0
        %2393 = vst [vmem:[#allocation2 + $0x50] sm:$0xff] 0.0
        %2394 = vst [vmem:[#allocation2 + $0x58] sm:$0x3] 0.0
        %2395 = vst [vmem:[#allocation2 + $0x60] sm:$0xff] 0.0
        %2396 = vst [vmem:[#allocation2 + $0x68] sm:$0xff] 0.0
        %2397 = vst [vmem:[#allocation2 + $0x70] sm:$0x3] 0.0
        %2398 = vst [vmem:[#allocation2 + $0x78] sm:$0xff] 0.0
        %2399 = vst [vmem:[#allocation2 + $0x80] sm:$0xff] 0.0
        %2400 = vst [vmem:[#allocation2 + $0x88] sm:$0x3] 0.0
        %2401 = vst [vmem:[#allocation2 + $0x90] sm:$0xff] 0.0
        %2402 = vst [vmem:[#allocation2 + $0x98] sm:$0xff] 0.0
        %2403 = vst [vmem:[#allocation2 + $0xa0] sm:$0x3] 0.0
        %2404 = vst [vmem:[#allocation2 + $0xa8] sm:$0xff] 0.0
        %2405 = vst [vmem:[#allocation2 + $0xb0] sm:$0xff] 0.0
        %2406 = vst [vmem:[#allocation2 + $0xb8] sm:$0x3] 0.0
        %2407 = vst [vmem:[#allocation2 + $0xc0] sm:$0xff] 0.0
        %2408 = vst [vmem:[#allocation2 + $0xc8] sm:$0xff] 0.0
        %2409 = vst [vmem:[#allocation2 + $0xd0] sm:$0x3] 0.0
        %2410 = vst [vmem:[#allocation2 + $0xd8] sm:$0xff] 0.0
        %2411 = vst [vmem:[#allocation2 + $0xe0] sm:$0xff] 0.0
        %2412 = vst [vmem:[#allocation2 + $0xe8] sm:$0x3] 0.0
        %2413 = vst [vmem:[#allocation2 + $0xf0] sm:$0xff] 0.0
        %2414 = vst [vmem:[#allocation2 + $0xf8] sm:$0xff] 0.0
        %2415 = vst [vmem:[#allocation2 + $0x100] sm:$0x3] 0.0
        %2416 = vst [vmem:[#allocation2 + $0x108] sm:$0xff] 0.0
        %2417 = vst [vmem:[#allocation2 + $0x110] sm:$0xff] 0.0
        %2418 = vst [vmem:[#allocation2 + $0x118] sm:$0x3] 0.0
        %2419 = vst [vmem:[#allocation2 + $0x120] sm:$0xff] 0.0
        %2420 = vst [vmem:[#allocation2 + $0x128] sm:$0xff] 0.0
        %2421 = vst [vmem:[#allocation2 + $0x130] sm:$0x3] 0.0
        %2422 = vst [vmem:[#allocation2 + $0x138] sm:$0xff] 0.0
        %2423 = vst [vmem:[#allocation2 + $0x140] sm:$0xff] 0.0
        %2424 = vst [vmem:[#allocation2 + $0x148] sm:$0x3] 0.0
        %2425 = vst [vmem:[#allocation2 + $0x150] sm:$0xff] 0.0
        %2426 = vst [vmem:[#allocation2 + $0x158] sm:$0xff] 0.0
        %2427 = vst [vmem:[#allocation2 + $0x160] sm:$0x3] 0.0
        %2428 = vst [vmem:[#allocation2 + $0x168] sm:$0xff] 0.0
        %2429 = vst [vmem:[#allocation2 + $0x170] sm:$0xff] 0.0
        %2430 = vst [vmem:[#allocation2 + $0x178] sm:$0x3] 0.0
        %2431 = vst [vmem:[#allocation2 + $0x180] sm:$0xff] 0.0
        %2432 = vst [vmem:[#allocation2 + $0x188] sm:$0xff] 0.0
        %2433 = vst [vmem:[#allocation2 + $0x190] sm:$0x3] 0.0
        %2434 = vst [vmem:[#allocation2 + $0x198] sm:$0xff] 0.0
        %2435 = vst [vmem:[#allocation2 + $0x1a0] sm:$0xff] 0.0
        %2436 = vst [vmem:[#allocation2 + $0x1a8] sm:$0x3] 0.0
        %s2437 = scalar_lea.vmem [#allocation2], 24
        %2438 = vst [vmem:[%s2437 + $0x1] sm:$0xff] %v2351
        %2439 = vst [vmem:[%s2437 + $0x9] sm:$0xff] %v2352
        %2440 = vst [vmem:[%s2437 + $0x19] sm:$0xff] %v2353
        %2441 = vst [vmem:[%s2437 + $0x21] sm:$0xff] %v2354
        %2442 = vst [vmem:[%s2437 + $0x31] sm:$0xff] %v2355
        %2443 = vst [vmem:[%s2437 + $0x39] sm:$0xff] %v2356
        %2444 = vst [vmem:[%s2437 + $0x49] sm:$0xff] %v2357
        %2445 = vst [vmem:[%s2437 + $0x51] sm:$0xff] %v2358
        %2446 = vst [vmem:[%s2437 + $0x61] sm:$0xff] %v2359
        %2447 = vst [vmem:[%s2437 + $0x69] sm:$0xff] %v2360
        %2448 = vst [vmem:[%s2437 + $0x79] sm:$0xff] %v2361
        %2449 = vst [vmem:[%s2437 + $0x81] sm:$0xff] %v2362
        %2450 = vst [vmem:[%s2437 + $0x91] sm:$0xff] %v2363
        %2451 = vst [vmem:[%s2437 + $0x99] sm:$0xff] %v2364
        %2452 = vst [vmem:[%s2437 + $0xa9] sm:$0xff] %v2365
        %2453 = vst [vmem:[%s2437 + $0xb1] sm:$0xff] %v2366
        %2454 = vst [vmem:[%s2437 + $0xc1] sm:$0xff] %v2367
        %2455 = vst [vmem:[%s2437 + $0xc9] sm:$0xff] %v2368
        %2456 = vst [vmem:[%s2437 + $0xd9] sm:$0xff] %v2369
        %2457 = vst [vmem:[%s2437 + $0xe1] sm:$0xff] %v2370
        %2458 = vst [vmem:[%s2437 + $0xf1] sm:$0xff] %v2371
        %2459 = vst [vmem:[%s2437 + $0xf9] sm:$0xff] %v2372
        %2460 = vst [vmem:[%s2437 + $0x109] sm:$0xff] %v2373
        %2461 = vst [vmem:[%s2437 + $0x111] sm:$0xff] %v2374
        %2462 = vst [vmem:[%s2437 + $0x121] sm:$0xff] %v2375
        %2463 = vst [vmem:[%s2437 + $0x129] sm:$0xff] %v2376
        %2464 = vst [vmem:[%s2437 + $0x139] sm:$0xff] %v2377
        %2465 = vst [vmem:[%s2437 + $0x141] sm:$0xff] %v2378
        %2466 = vst [vmem:[%s2437 + $0x151] sm:$0xff] %v2379
        %2467 = vst [vmem:[%s2437 + $0x159] sm:$0xff] %v2380
        %2468 = vst [vmem:[%s2437 + $0x169] sm:$0xff] %v2381
        %2469 = vst [vmem:[%s2437 + $0x171] sm:$0xff] %v2382
        %v2470 = vld [vmem:[#allocation2] sm:$0xff]
        %v2471 = vld [vmem:[#allocation2 + $0x8] sm:$0xff]
        %v2472 = vld [vmem:[#allocation2 + $0x10] sm:$0x3]
        %v2473 = vld [vmem:[#allocation2 + $0x18] sm:$0xff]
        %v2474 = vld [vmem:[#allocation2 + $0x20] sm:$0xff]
        %v2475 = vld [vmem:[#allocation2 + $0x28] sm:$0x3]
        %v2476 = vld [vmem:[#allocation2 + $0x30] sm:$0xff]
        %v2477 = vld [vmem:[#allocation2 + $0x38] sm:$0xff]
        %v2478 = vld [vmem:[#allocation2 + $0x40] sm:$0x3]
        %v2479 = vld [vmem:[#allocation2 + $0x48] sm:$0xff]
        %v2480 = vld [vmem:[#allocation2 + $0x50] sm:$0xff]
        %v2481 = vld [vmem:[#allocation2 + $0x58] sm:$0x3]
        %v2482 = vld [vmem:[#allocation2 + $0x60] sm:$0xff]
        %v2483 = vld [vmem:[#allocation2 + $0x68] sm:$0xff]
        %v2484 = vld [vmem:[#allocation2 + $0x70] sm:$0x3]
        %v2485 = vld [vmem:[#allocation2 + $0x78] sm:$0xff]
        %v2486 = vld [vmem:[#allocation2 + $0x80] sm:$0xff]
        %v2487 = vld [vmem:[#allocation2 + $0x88] sm:$0x3]
        %v2488 = vld [vmem:[#allocation2 + $0x90] sm:$0xff]
        %v2489 = vld [vmem:[#allocation2 + $0x98] sm:$0xff]
        %v2490 = vld [vmem:[#allocation2 + $0xa0] sm:$0x3]
        %v2491 = vld [vmem:[#allocation2 + $0xa8] sm:$0xff]
        %v2492 = vld [vmem:[#allocation2 + $0xb0] sm:$0xff]
        %v2493 = vld [vmem:[#allocation2 + $0xb8] sm:$0x3]
        %v2494 = vld [vmem:[#allocation2 + $0xc0] sm:$0xff]
        %v2495 = vld [vmem:[#allocation2 + $0xc8] sm:$0xff]
        %v2496 = vld [vmem:[#allocation2 + $0xd0] sm:$0x3]
        %v2497 = vld [vmem:[#allocation2 + $0xd8] sm:$0xff]
        %v2498 = vld [vmem:[#allocation2 + $0xe0] sm:$0xff]
        %v2499 = vld [vmem:[#allocation2 + $0xe8] sm:$0x3]
        %v2500 = vld [vmem:[#allocation2 + $0xf0] sm:$0xff]
        %v2501 = vld [vmem:[#allocation2 + $0xf8] sm:$0xff]
        %v2502 = vld [vmem:[#allocation2 + $0x100] sm:$0x3]
        %v2503 = vld [vmem:[#allocation2 + $0x108] sm:$0xff]
        %v2504 = vld [vmem:[#allocation2 + $0x110] sm:$0xff]
        %v2505 = vld [vmem:[#allocation2 + $0x118] sm:$0x3]
        %v2506 = vld [vmem:[#allocation2 + $0x120] sm:$0xff]
        %v2507 = vld [vmem:[#allocation2 + $0x128] sm:$0xff]
        %v2508 = vld [vmem:[#allocation2 + $0x130] sm:$0x3]
        %v2509 = vld [vmem:[#allocation2 + $0x138] sm:$0xff]
        %v2510 = vld [vmem:[#allocation2 + $0x140] sm:$0xff]
        %v2511 = vld [vmem:[#allocation2 + $0x148] sm:$0x3]
        %v2512 = vld [vmem:[#allocation2 + $0x150] sm:$0xff]
        %v2513 = vld [vmem:[#allocation2 + $0x158] sm:$0xff]
        %v2514 = vld [vmem:[#allocation2 + $0x160] sm:$0x3]
        %v2515 = vld [vmem:[#allocation2 + $0x168] sm:$0xff]
        %v2516 = vld [vmem:[#allocation2 + $0x170] sm:$0xff]
        %v2517 = vld [vmem:[#allocation2 + $0x178] sm:$0x3]
        %v2518 = vld [vmem:[#allocation2 + $0x180] sm:$0xff]
        %v2519 = vld [vmem:[#allocation2 + $0x188] sm:$0xff]
        %v2520 = vld [vmem:[#allocation2 + $0x190] sm:$0x3]
        %v2521 = vld [vmem:[#allocation2 + $0x198] sm:$0xff]
        %v2522 = vld [vmem:[#allocation2 + $0x1a0] sm:$0xff]
        %v2523 = vld [vmem:[#allocation2 + $0x1a8] sm:$0x3]
        %v2572 = vrot.slane %v2470, 1
        %v2573 = vrot.slane %v2471, 1
        %v2574 = vsel %vm326, %v2572, %v2573
        %v2575 = vrot.slane %v2472, 1
        %v2576 = vsel %vm326, %v2573, %v2575
        %v2577 = vrot.slane %v2473, 1
        %v2578 = vrot.slane %v2474, 1
        %v2579 = vsel %vm326, %v2577, %v2578
        %v2580 = vrot.slane %v2475, 1
        %v2581 = vsel %vm326, %v2578, %v2580
        %v2582 = vrot.slane %v2476, 1
        %v2583 = vrot.slane %v2477, 1
        %v2584 = vsel %vm326, %v2582, %v2583
        %v2585 = vrot.slane %v2478, 1
        %v2586 = vsel %vm326, %v2583, %v2585
        %v2587 = vrot.slane %v2479, 1
        %v2588 = vrot.slane %v2480, 1
        %v2589 = vsel %vm326, %v2587, %v2588
        %v2590 = vrot.slane %v2481, 1
        %v2591 = vsel %vm326, %v2588, %v2590
        %v2592 = vrot.slane %v2482, 1
        %v2593 = vrot.slane %v2483, 1
        %v2594 = vsel %vm326, %v2592, %v2593
        %v2595 = vrot.slane %v2484, 1
        %v2596 = vsel %vm326, %v2593, %v2595
        %v2597 = vrot.slane %v2485, 1
        %v2598 = vrot.slane %v2486, 1
        %v2599 = vsel %vm326, %v2597, %v2598
        %v2600 = vrot.slane %v2487, 1
        %v2601 = vsel %vm326, %v2598, %v2600
        %v2602 = vrot.slane %v2488, 1
        %v2603 = vrot.slane %v2489, 1
        %v2604 = vsel %vm326, %v2602, %v2603
        %v2605 = vrot.slane %v2490, 1
        %v2606 = vsel %vm326, %v2603, %v2605
        %v2607 = vrot.slane %v2491, 1
        %v2608 = vrot.slane %v2492, 1
        %v2609 = vsel %vm326, %v2607, %v2608
        %v2610 = vrot.slane %v2493, 1
        %v2611 = vsel %vm326, %v2608, %v2610
        %v2612 = vrot.slane %v2494, 1
        %v2613 = vrot.slane %v2495, 1
        %v2614 = vsel %vm326, %v2612, %v2613
        %v2615 = vrot.slane %v2496, 1
        %v2616 = vsel %vm326, %v2613, %v2615
        %v2617 = vrot.slane %v2497, 1
        %v2618 = vrot.slane %v2498, 1
        %v2619 = vsel %vm326, %v2617, %v2618
        %v2620 = vrot.slane %v2499, 1
        %v2621 = vsel %vm326, %v2618, %v2620
        %v2622 = vrot.slane %v2500, 1
        %v2623 = vrot.slane %v2501, 1
        %v2624 = vsel %vm326, %v2622, %v2623
        %v2625 = vrot.slane %v2502, 1
        %v2626 = vsel %vm326, %v2623, %v2625
        %v2627 = vrot.slane %v2503, 1
        %v2628 = vrot.slane %v2504, 1
        %v2629 = vsel %vm326, %v2627, %v2628
        %v2630 = vrot.slane %v2505, 1
        %v2631 = vsel %vm326, %v2628, %v2630
        %v2632 = vrot.slane %v2506, 1
        %v2633 = vrot.slane %v2507, 1
        %v2634 = vsel %vm326, %v2632, %v2633
        %v2635 = vrot.slane %v2508, 1
        %v2636 = vsel %vm326, %v2633, %v2635
        %v2637 = vrot.slane %v2509, 1
        %v2638 = vrot.slane %v2510, 1
        %v2639 = vsel %vm326, %v2637, %v2638
        %v2640 = vrot.slane %v2511, 1
        %v2641 = vsel %vm326, %v2638, %v2640
        %v2642 = vrot.slane %v2512, 1
        %v2643 = vrot.slane %v2513, 1
        %v2644 = vsel %vm326, %v2642, %v2643
        %v2645 = vrot.slane %v2514, 1
        %v2646 = vsel %vm326, %v2643, %v2645
        %v2647 = vrot.slane %v2515, 1
        %v2648 = vrot.slane %v2516, 1
        %v2649 = vsel %vm326, %v2647, %v2648
        %v2650 = vrot.slane %v2517, 1
        %v2651 = vsel %vm326, %v2648, %v2650
        %v2684 = vrot.slane %v2470, 2
        %v2685 = vrot.slane %v2471, 2
        %v2686 = vsel %vm439, %v2684, %v2685
        %v2687 = vrot.slane %v2472, 2
        %v2688 = vsel %vm439, %v2685, %v2687
        %v2689 = vrot.slane %v2473, 2
        %v2690 = vrot.slane %v2474, 2
        %v2691 = vsel %vm439, %v2689, %v2690
        %v2692 = vrot.slane %v2475, 2
        %v2693 = vsel %vm439, %v2690, %v2692
        %v2694 = vrot.slane %v2476, 2
        %v2695 = vrot.slane %v2477, 2
        %v2696 = vsel %vm439, %v2694, %v2695
        %v2697 = vrot.slane %v2478, 2
        %v2698 = vsel %vm439, %v2695, %v2697
        %v2699 = vrot.slane %v2479, 2
        %v2700 = vrot.slane %v2480, 2
        %v2701 = vsel %vm439, %v2699, %v2700
        %v2702 = vrot.slane %v2481, 2
        %v2703 = vsel %vm439, %v2700, %v2702
        %v2704 = vrot.slane %v2482, 2
        %v2705 = vrot.slane %v2483, 2
        %v2706 = vsel %vm439, %v2704, %v2705
        %v2707 = vrot.slane %v2484, 2
        %v2708 = vsel %vm439, %v2705, %v2707
        %v2709 = vrot.slane %v2485, 2
        %v2710 = vrot.slane %v2486, 2
        %v2711 = vsel %vm439, %v2709, %v2710
        %v2712 = vrot.slane %v2487, 2
        %v2713 = vsel %vm439, %v2710, %v2712
        %v2714 = vrot.slane %v2488, 2
        %v2715 = vrot.slane %v2489, 2
        %v2716 = vsel %vm439, %v2714, %v2715
        %v2717 = vrot.slane %v2490, 2
        %v2718 = vsel %vm439, %v2715, %v2717
        %v2719 = vrot.slane %v2491, 2
        %v2720 = vrot.slane %v2492, 2
        %v2721 = vsel %vm439, %v2719, %v2720
        %v2722 = vrot.slane %v2493, 2
        %v2723 = vsel %vm439, %v2720, %v2722
        %v2724 = vrot.slane %v2494, 2
        %v2725 = vrot.slane %v2495, 2
        %v2726 = vsel %vm439, %v2724, %v2725
        %v2727 = vrot.slane %v2496, 2
        %v2728 = vsel %vm439, %v2725, %v2727
        %v2729 = vrot.slane %v2497, 2
        %v2730 = vrot.slane %v2498, 2
        %v2731 = vsel %vm439, %v2729, %v2730
        %v2732 = vrot.slane %v2499, 2
        %v2733 = vsel %vm439, %v2730, %v2732
        %v2734 = vrot.slane %v2500, 2
        %v2735 = vrot.slane %v2501, 2
        %v2736 = vsel %vm439, %v2734, %v2735
        %v2737 = vrot.slane %v2502, 2
        %v2738 = vsel %vm439, %v2735, %v2737
        %v2739 = vrot.slane %v2503, 2
        %v2740 = vrot.slane %v2504, 2
        %v2741 = vsel %vm439, %v2739, %v2740
        %v2742 = vrot.slane %v2505, 2
        %v2743 = vsel %vm439, %v2740, %v2742
        %v2744 = vrot.slane %v2506, 2
        %v2745 = vrot.slane %v2507, 2
        %v2746 = vsel %vm439, %v2744, %v2745
        %v2747 = vrot.slane %v2508, 2
        %v2748 = vsel %vm439, %v2745, %v2747
        %v2749 = vrot.slane %v2509, 2
        %v2750 = vrot.slane %v2510, 2
        %v2751 = vsel %vm439, %v2749, %v2750
        %v2752 = vrot.slane %v2511, 2
        %v2753 = vsel %vm439, %v2750, %v2752
        %v2754 = vrot.slane %v2512, 2
        %v2755 = vrot.slane %v2513, 2
        %v2756 = vsel %vm439, %v2754, %v2755
        %v2757 = vrot.slane %v2514, 2
        %v2758 = vsel %vm439, %v2755, %v2757
        %v2759 = vrot.slane %v2515, 2
        %v2760 = vrot.slane %v2516, 2
        %v2761 = vsel %vm439, %v2759, %v2760
        %v2762 = vrot.slane %v2517, 2
        %v2763 = vsel %vm439, %v2760, %v2762
        %v2799 = vrot.slane %v2518, 1
        %v2800 = vrot.slane %v2519, 1
        %v2801 = vsel %vm326, %v2799, %v2800
        %v2802 = vrot.slane %v2520, 1
        %v2803 = vsel %vm326, %v2800, %v2802
        %v2806 = vrot.slane %v2518, 2
        %v2807 = vrot.slane %v2519, 2
        %v2808 = vsel %vm439, %v2806, %v2807
        %v2809 = vrot.slane %v2520, 2
        %v2810 = vsel %vm439, %v2807, %v2809
        %v2816 = vrot.slane %v2521, 1
        %v2817 = vrot.slane %v2522, 1
        %v2818 = vsel %vm326, %v2816, %v2817
        %v2819 = vrot.slane %v2523, 1
        %v2820 = vsel %vm326, %v2817, %v2819
        %v2823 = vrot.slane %v2521, 2
        %v2824 = vrot.slane %v2522, 2
        %v2825 = vsel %vm439, %v2823, %v2824
        %v2826 = vrot.slane %v2523, 2
        %v2827 = vsel %vm439, %v2824, %v2826
        %v2830 = vpack.c.bf16 %v2471, %v2470
        %v2831 = vpack.c.bf16 %v2576, %v2574
        %v2832 = vpack.c.bf16 %v2688, %v2686
        %v2833 = vpack.c.bf16 %v2474, %v2473
        %v2834 = vpack.c.bf16 %v2581, %v2579
        %v2835 = vpack.c.bf16 %v2693, %v2691
        %v2836 = vpack.c.bf16 %v2477, %v2476
        %v2837 = vpack.c.bf16 %v2586, %v2584
        %v2838 = vpack.c.bf16 %v2698, %v2696
        %v2839 = vpack.c.bf16 %v2480, %v2479
        %v2840 = vpack.c.bf16 %v2591, %v2589
        %v2841 = vpack.c.bf16 %v2703, %v2701
        %v2842 = vpack.c.bf16 %v2483, %v2482
        %v2843 = vpack.c.bf16 %v2596, %v2594
        %v2844 = vpack.c.bf16 %v2708, %v2706
        %v2845 = vpack.c.bf16 %v2486, %v2485
        %v2846 = vpack.c.bf16 %v2601, %v2599
        %v2847 = vpack.c.bf16 %v2713, %v2711
        %v2848 = vpack.c.bf16 %v2489, %v2488
        %v2849 = vpack.c.bf16 %v2606, %v2604
        %v2850 = vpack.c.bf16 %v2718, %v2716
        %v2851 = vpack.c.bf16 %v2492, %v2491
        %v2852 = vpack.c.bf16 %v2611, %v2609
        %v2853 = vpack.c.bf16 %v2723, %v2721
        %v2854 = vpack.c.bf16 %v2495, %v2494
        %v2855 = vpack.c.bf16 %v2616, %v2614
        %v2856 = vpack.c.bf16 %v2728, %v2726
        %v2857 = vpack.c.bf16 %v2498, %v2497
        %v2858 = vpack.c.bf16 %v2621, %v2619
        %v2859 = vpack.c.bf16 %v2733, %v2731
        %v2860 = vpack.c.bf16 %v2501, %v2500
        %v2861 = vpack.c.bf16 %v2626, %v2624
        %v2862 = vpack.c.bf16 %v2738, %v2736
        %v2863 = vpack.c.bf16 %v2504, %v2503
        %v2864 = vpack.c.bf16 %v2631, %v2629
        %v2865 = vpack.c.bf16 %v2743, %v2741
        %v2866 = vpack.c.bf16 %v2507, %v2506
        %v2867 = vpack.c.bf16 %v2636, %v2634
        %v2868 = vpack.c.bf16 %v2748, %v2746
        %v2869 = vpack.c.bf16 %v2510, %v2509
        %v2870 = vpack.c.bf16 %v2641, %v2639
        %v2871 = vpack.c.bf16 %v2753, %v2751
        %v2872 = vpack.c.bf16 %v2513, %v2512
        %v2873 = vpack.c.bf16 %v2646, %v2644
        %v2874 = vpack.c.bf16 %v2758, %v2756
        %v2875 = vpack.c.bf16 %v2516, %v2515
        %v2876 = vpack.c.bf16 %v2651, %v2649
        %v2877 = vpack.c.bf16 %v2763, %v2761
        %v2878 = vpack.c.bf16 %v2519, %v2518
        %v2879 = vpack.c.bf16 %v2803, %v2801
        %v2880 = vpack.c.bf16 %v2810, %v2808
        %v2881 = vpack.c.bf16 %v2522, %v2521
        %v2882 = vpack.c.bf16 %v2820, %v2818
        %v2883 = vpack.c.bf16 %v2827, %v2825
        %v2884 = vld [vmem:[%s3] sm:$0xf]
        %v2885 = vld [vmem:[%s3 + $0x4] sm:$0xf]
        %v2886 = vld [vmem:[%s3 + $0x8] sm:$0xf]
        %v2887 = vld [vmem:[%s3 + $0xc] sm:$0xf]
        %v2888 = vld [vmem:[%s3 + $0x10] sm:$0xf]
        %v2889 = vld [vmem:[%s3 + $0x14] sm:$0xf]
        %v2890 = vld [vmem:[%s3 + $0x18] sm:$0xf]
        %v2891 = vld [vmem:[%s3 + $0x1c] sm:$0xf]
        %v2892 = vld [vmem:[%s3 + $0x20] sm:$0xf]
        %v2893 = vld [vmem:[%s3 + $0x24] sm:$0xf]
        %v2894 = vld [vmem:[%s3 + $0x28] sm:$0xf]
        %v2895 = vld [vmem:[%s3 + $0x2c] sm:$0xf]
        %v2896 = vld [vmem:[%s3 + $0x30] sm:$0xf]
        %v2897 = vld [vmem:[%s3 + $0x34] sm:$0xf]
        %v2898 = vld [vmem:[%s3 + $0x38] sm:$0xf]
        %v2899 = vld [vmem:[%s3 + $0x3c] sm:$0xf]
        %v2900 = vld [vmem:[%s3 + $0x40] sm:$0xf]
        %v2901 = vld [vmem:[%s3 + $0x44] sm:$0xf]
        %v2902 = vld [vmem:[%s3 + $0x48] sm:$0xf]
        %v2903 = vld [vmem:[%s3 + $0x4c] sm:$0xf]
        %v2904 = vld [vmem:[%s3 + $0x50] sm:$0xf]
        %v2905 = vld [vmem:[%s3 + $0x54] sm:$0xf]
        %v2906 = vld [vmem:[%s3 + $0x58] sm:$0xf]
        %v2907 = vld [vmem:[%s3 + $0x5c] sm:$0xf]
        %v2908 = vld [vmem:[%s3 + $0x60] sm:$0xf]
        %v2909 = vld [vmem:[%s3 + $0x64] sm:$0xf]
        %v2910 = vld [vmem:[%s3 + $0x68] sm:$0xf]
        %v2911 = vld [vmem:[%s3 + $0x6c] sm:$0xf]
        %v2912 = vld [vmem:[%s3 + $0x70] sm:$0xf]
        %v2913 = vld [vmem:[%s3 + $0x74] sm:$0xf]
        %v2914 = vld [vmem:[%s3 + $0x78] sm:$0xf]
        %v2915 = vld [vmem:[%s3 + $0x7c] sm:$0xf]
        %v2916 = vld [vmem:[%s3 + $0x80] sm:$0xf]
        %v2917 = vld [vmem:[%s3 + $0x84] sm:$0xf]
        %v2918 = vld [vmem:[%s3 + $0x88] sm:$0xf]
        %v2919 = vld [vmem:[%s3 + $0x8c] sm:$0xf]
        %v2920 = vld [vmem:[%s3 + $0x90] sm:$0xf]
        %v2921 = vld [vmem:[%s3 + $0x94] sm:$0xf]
        %v2922 = vld [vmem:[%s3 + $0x98] sm:$0xf]
        %v2923 = vld [vmem:[%s3 + $0x9c] sm:$0xf]
        %v2924 = vld [vmem:[%s3 + $0xa0] sm:$0xf]
        %v2925 = vld [vmem:[%s3 + $0xa4] sm:$0xf]
        %v2926 = vld [vmem:[%s3 + $0xa8] sm:$0xf]
        %v2927 = vld [vmem:[%s3 + $0xac] sm:$0xf]
        %v2928 = vld [vmem:[%s3 + $0xb0] sm:$0xf]
        %v2929 = vld [vmem:[%s3 + $0xb4] sm:$0xf]
        %v2930 = vld [vmem:[%s3 + $0xb8] sm:$0xf]
        %v2931 = vld [vmem:[%s3 + $0xbc] sm:$0xf]
        %v2932 = vld [vmem:[%s3 + $0xc0] sm:$0xf]
        %v2933 = vld [vmem:[%s3 + $0xc4] sm:$0xf]
        %v2934 = vld [vmem:[%s3 + $0xc8] sm:$0xf]
        %v2935 = vld [vmem:[%s3 + $0xcc] sm:$0xf]
        %v2936 = vld [vmem:[%s3 + $0xd0] sm:$0xf]
        %v2937 = vld [vmem:[%s3 + $0xd4] sm:$0xf]
        %v2938 = vld [vmem:[%s3 + $0xd8] sm:$0xf]
        %v2939 = vld [vmem:[%s3 + $0xdc] sm:$0xf]
        %v2940 = vld [vmem:[%s3 + $0xe0] sm:$0xf]
        %v2941 = vld [vmem:[%s3 + $0xe4] sm:$0xf]
        %v2942 = vld [vmem:[%s3 + $0xe8] sm:$0xf]
        %v2943 = vld [vmem:[%s3 + $0xec] sm:$0xf]
        %v2944 = vld [vmem:[%s3 + $0xf0] sm:$0xf]
        %v2945 = vld [vmem:[%s3 + $0xf4] sm:$0xf]
        %v2946 = vld [vmem:[%s3 + $0xf8] sm:$0xf]
        %v2947 = vld [vmem:[%s3 + $0xfc] sm:$0xf]
        %v2948 = vld [vmem:[%s3 + $0x100] sm:$0xf]
        %v2949 = vld [vmem:[%s3 + $0x104] sm:$0xf]
        %v2950 = vld [vmem:[%s3 + $0x108] sm:$0xf]
        %v2951 = vld [vmem:[%s3 + $0x10c] sm:$0xf]
        %v2952 = vld [vmem:[%s3 + $0x110] sm:$0xf]
        %v2953 = vld [vmem:[%s3 + $0x114] sm:$0xf]
        %v2954 = vld [vmem:[%s3 + $0x118] sm:$0xf]
        %v2955 = vld [vmem:[%s3 + $0x11c] sm:$0xf]
        %v2956 = vld [vmem:[%s3 + $0x120] sm:$0xf]
        %v2957 = vld [vmem:[%s3 + $0x124] sm:$0xf]
        %v2958 = vld [vmem:[%s3 + $0x128] sm:$0xf]
        %v2959 = vld [vmem:[%s3 + $0x12c] sm:$0xf]
        %v2960 = vld [vmem:[%s3 + $0x130] sm:$0xf]
        %v2961 = vld [vmem:[%s3 + $0x134] sm:$0xf]
        %v2962 = vld [vmem:[%s3 + $0x138] sm:$0xf]
        %v2963 = vld [vmem:[%s3 + $0x13c] sm:$0xf]
        %v2964 = vld [vmem:[%s3 + $0x140] sm:$0xf]
        %v2965 = vld [vmem:[%s3 + $0x144] sm:$0xf]
        %v2966 = vld [vmem:[%s3 + $0x148] sm:$0xf]
        %v2967 = vld [vmem:[%s3 + $0x14c] sm:$0xf]
        %v2968 = vld [vmem:[%s3 + $0x150] sm:$0xf]
        %v2969 = vld [vmem:[%s3 + $0x154] sm:$0xf]
        %v2970 = vld [vmem:[%s3 + $0x158] sm:$0xf]
        %v2971 = vld [vmem:[%s3 + $0x15c] sm:$0xf]
        %v2972 = vld [vmem:[%s3 + $0x160] sm:$0xf]
        %v2973 = vld [vmem:[%s3 + $0x164] sm:$0xf]
        %v2974 = vld [vmem:[%s3 + $0x168] sm:$0xf]
        %v2975 = vld [vmem:[%s3 + $0x16c] sm:$0xf]
        %v2976 = vld [vmem:[%s3 + $0x170] sm:$0xf]
        %v2977 = vld [vmem:[%s3 + $0x174] sm:$0xf]
        %v2978 = vld [vmem:[%s3 + $0x178] sm:$0xf]
        %v2979 = vld [vmem:[%s3 + $0x17c] sm:$0xf]
        %v2980 = vld [vmem:[%s3 + $0x180] sm:$0xf]
        %v2981 = vld [vmem:[%s3 + $0x184] sm:$0xf]
        %v2982 = vld [vmem:[%s3 + $0x188] sm:$0xf]
        %v2983 = vld [vmem:[%s3 + $0x18c] sm:$0xf]
        %v2984 = vld [vmem:[%s3 + $0x190] sm:$0xf]
        %v2985 = vld [vmem:[%s3 + $0x194] sm:$0xf]
        %v2986 = vld [vmem:[%s3 + $0x198] sm:$0xf]
        %v2987 = vld [vmem:[%s3 + $0x19c] sm:$0xf]
        %v2988 = vld [vmem:[%s3 + $0x1a0] sm:$0xf]
        %v2989 = vld [vmem:[%s3 + $0x1a4] sm:$0xf]
        %v2990 = vld [vmem:[%s3 + $0x1a8] sm:$0xf]
        %v2991 = vld [vmem:[%s3 + $0x1ac] sm:$0xf]
        %v2992 = vld [vmem:[%s3 + $0x1b0] sm:$0xf]
        %v2993 = vld [vmem:[%s3 + $0x1b4] sm:$0xf]
        %v2994 = vld [vmem:[%s3 + $0x1b8] sm:$0xf]
        %v2995 = vld [vmem:[%s3 + $0x1bc] sm:$0xf]
        %v2996 = vld [vmem:[%s3 + $0x1c0] sm:$0xf]
        %v2997 = vld [vmem:[%s3 + $0x1c4] sm:$0xf]
        %v2998 = vld [vmem:[%s3 + $0x1c8] sm:$0xf]
        %v2999 = vld [vmem:[%s3 + $0x1cc] sm:$0xf]
        %v3000 = vld [vmem:[%s3 + $0x1d0] sm:$0xf]
        %v3001 = vld [vmem:[%s3 + $0x1d4] sm:$0xf]
        %v3002 = vld [vmem:[%s3 + $0x1d8] sm:$0xf]
        %v3003 = vld [vmem:[%s3 + $0x1dc] sm:$0xf]
        %v3004 = vld [vmem:[%s3 + $0x1e0] sm:$0xf]
        %v3005 = vld [vmem:[%s3 + $0x1e4] sm:$0xf]
        %v3006 = vld [vmem:[%s3 + $0x1e8] sm:$0xf]
        %v3007 = vld [vmem:[%s3 + $0x1ec] sm:$0xf]
        %v3008 = vld [vmem:[%s3 + $0x1f0] sm:$0xf]
        %v3009 = vld [vmem:[%s3 + $0x1f4] sm:$0xf]
        %v3010 = vld [vmem:[%s3 + $0x1f8] sm:$0xf]
        %v3011 = vld [vmem:[%s3 + $0x1fc] sm:$0xf]
        %v3012 = vld [vmem:[%s3 + $0x200] sm:$0xf]
        %v3013 = vld [vmem:[%s3 + $0x204] sm:$0xf]
        %v3014 = vld [vmem:[%s3 + $0x208] sm:$0xf]
        %v3015 = vld [vmem:[%s3 + $0x20c] sm:$0xf]
        %v3016 = vld [vmem:[%s3 + $0x210] sm:$0xf]
        %v3017 = vld [vmem:[%s3 + $0x214] sm:$0xf]
        %v3018 = vld [vmem:[%s3 + $0x218] sm:$0xf]
        %v3019 = vld [vmem:[%s3 + $0x21c] sm:$0xf]
        %v3020 = vld [vmem:[%s3 + $0x220] sm:$0xf]
        %v3021 = vld [vmem:[%s3 + $0x224] sm:$0xf]
        %v3022 = vld [vmem:[%s3 + $0x228] sm:$0xf]
        %v3023 = vld [vmem:[%s3 + $0x22c] sm:$0xf]
        %v3024 = vld [vmem:[%s3 + $0x230] sm:$0xf]
        %v3025 = vld [vmem:[%s3 + $0x234] sm:$0xf]
        %v3026 = vld [vmem:[%s3 + $0x238] sm:$0xf]
        %v3027 = vld [vmem:[%s3 + $0x23c] sm:$0xf]
        %v3172 = vunpack.c.l.b16 %v2884
        %v3173 = vunpack.c.l.b16 %v2885
        %v3174 = vunpack.c.l.b16 %v2886
        %v3175 = vunpack.c.l.b16 %v2887
        %v3176 = vunpack.c.l.b16 %v2888
        %v3177 = vunpack.c.l.b16 %v2889
        %v3178 = vunpack.c.l.b16 %v2890
        %v3179 = vunpack.c.l.b16 %v2891
        %v3180 = vunpack.c.l.b16 %v2892
        %v3181 = vunpack.c.l.b16 %v2893
        %v3182 = vunpack.c.l.b16 %v2894
        %v3183 = vunpack.c.l.b16 %v2895
        %v3184 = vunpack.c.l.b16 %v2896
        %v3185 = vunpack.c.l.b16 %v2897
        %v3186 = vunpack.c.l.b16 %v2898
        %v3187 = vunpack.c.l.b16 %v2899
        %v3188 = vunpack.c.l.b16 %v2900
        %v3189 = vunpack.c.l.b16 %v2901
        %v3190 = vunpack.c.l.b16 %v2902
        %v3191 = vunpack.c.l.b16 %v2903
        %v3192 = vunpack.c.l.b16 %v2904
        %v3193 = vunpack.c.l.b16 %v2905
        %v3194 = vunpack.c.l.b16 %v2906
        %v3195 = vunpack.c.l.b16 %v2907
        %v3196 = vunpack.c.l.b16 %v2908
        %v3197 = vunpack.c.l.b16 %v2909
        %v3198 = vunpack.c.l.b16 %v2910
        %v3199 = vunpack.c.l.b16 %v2911
        %v3200 = vunpack.c.l.b16 %v2912
        %v3201 = vunpack.c.l.b16 %v2913
        %v3202 = vunpack.c.l.b16 %v2914
        %v3203 = vunpack.c.l.b16 %v2915
        %v3204 = vunpack.c.l.b16 %v2916
        %v3205 = vunpack.c.l.b16 %v2917
        %v3206 = vunpack.c.l.b16 %v2918
        %v3207 = vunpack.c.l.b16 %v2919
        %v3208 = vunpack.c.l.b16 %v2920
        %v3209 = vunpack.c.l.b16 %v2921
        %v3210 = vunpack.c.l.b16 %v2922
        %v3211 = vunpack.c.l.b16 %v2923
        %v3212 = vunpack.c.l.b16 %v2924
        %v3213 = vunpack.c.l.b16 %v2925
        %v3214 = vunpack.c.l.b16 %v2926
        %v3215 = vunpack.c.l.b16 %v2927
        %v3216 = vunpack.c.l.b16 %v2928
        %v3217 = vunpack.c.l.b16 %v2929
        %v3218 = vunpack.c.l.b16 %v2930
        %v3219 = vunpack.c.l.b16 %v2931
        %v3220 = vunpack.c.l.b16 %v2932
        %v3221 = vunpack.c.l.b16 %v2933
        %v3222 = vunpack.c.l.b16 %v2934
        %v3223 = vunpack.c.l.b16 %v2935
        %v3224 = vunpack.c.l.b16 %v2936
        %v3225 = vunpack.c.l.b16 %v2937
        %v3226 = vunpack.c.l.b16 %v2938
        %v3227 = vunpack.c.l.b16 %v2939
        %v3228 = vunpack.c.l.b16 %v2940
        %v3229 = vunpack.c.l.b16 %v2941
        %v3230 = vunpack.c.l.b16 %v2942
        %v3231 = vunpack.c.l.b16 %v2943
        %v3232 = vunpack.c.l.b16 %v2944
        %v3233 = vunpack.c.l.b16 %v2945
        %v3234 = vunpack.c.l.b16 %v2946
        %v3235 = vunpack.c.l.b16 %v2947
        %v3236 = vunpack.c.l.b16 %v2948
        %v3237 = vunpack.c.l.b16 %v2949
        %v3238 = vunpack.c.l.b16 %v2950
        %v3239 = vunpack.c.l.b16 %v2951
        %v3240 = vunpack.c.l.b16 %v2952
        %v3241 = vunpack.c.l.b16 %v2953
        %v3242 = vunpack.c.l.b16 %v2954
        %v3243 = vunpack.c.l.b16 %v2955
        %v3244 = vunpack.c.l.b16 %v2956
        %v3245 = vunpack.c.l.b16 %v2957
        %v3246 = vunpack.c.l.b16 %v2958
        %v3247 = vunpack.c.l.b16 %v2959
        %v3248 = vunpack.c.l.b16 %v2960
        %v3249 = vunpack.c.l.b16 %v2961
        %v3250 = vunpack.c.l.b16 %v2962
        %v3251 = vunpack.c.l.b16 %v2963
        %v3252 = vunpack.c.l.b16 %v2964
        %v3253 = vunpack.c.l.b16 %v2965
        %v3254 = vunpack.c.l.b16 %v2966
        %v3255 = vunpack.c.l.b16 %v2967
        %v3256 = vunpack.c.l.b16 %v2968
        %v3257 = vunpack.c.l.b16 %v2969
        %v3258 = vunpack.c.l.b16 %v2970
        %v3259 = vunpack.c.l.b16 %v2971
        %v3260 = vunpack.c.l.b16 %v2972
        %v3261 = vunpack.c.l.b16 %v2973
        %v3262 = vunpack.c.l.b16 %v2974
        %v3263 = vunpack.c.l.b16 %v2975
        %v3264 = vunpack.c.l.b16 %v2976
        %v3265 = vunpack.c.l.b16 %v2977
        %v3266 = vunpack.c.l.b16 %v2978
        %v3267 = vunpack.c.l.b16 %v2979
        %v3268 = vunpack.c.l.b16 %v2980
        %v3269 = vunpack.c.l.b16 %v2981
        %v3270 = vunpack.c.l.b16 %v2982
        %v3271 = vunpack.c.l.b16 %v2983
        %v3272 = vunpack.c.l.b16 %v2984
        %v3273 = vunpack.c.l.b16 %v2985
        %v3274 = vunpack.c.l.b16 %v2986
        %v3275 = vunpack.c.l.b16 %v2987
        %v3276 = vunpack.c.l.b16 %v2988
        %v3277 = vunpack.c.l.b16 %v2989
        %v3278 = vunpack.c.l.b16 %v2990
        %v3279 = vunpack.c.l.b16 %v2991
        %v3280 = vunpack.c.l.b16 %v2992
        %v3281 = vunpack.c.l.b16 %v2993
        %v3282 = vunpack.c.l.b16 %v2994
        %v3283 = vunpack.c.l.b16 %v2995
        %v3284 = vunpack.c.l.b16 %v2996
        %v3285 = vunpack.c.l.b16 %v2997
        %v3286 = vunpack.c.l.b16 %v2998
        %v3287 = vunpack.c.l.b16 %v2999
        %v3288 = vunpack.c.l.b16 %v3000
        %v3289 = vunpack.c.l.b16 %v3001
        %v3290 = vunpack.c.l.b16 %v3002
        %v3291 = vunpack.c.l.b16 %v3003
        %v3292 = vunpack.c.l.b16 %v3004
        %v3293 = vunpack.c.l.b16 %v3005
        %v3294 = vunpack.c.l.b16 %v3006
        %v3295 = vunpack.c.l.b16 %v3007
        %v3296 = vunpack.c.l.b16 %v3008
        %v3297 = vunpack.c.l.b16 %v3009
        %v3298 = vunpack.c.l.b16 %v3010
        %v3299 = vunpack.c.l.b16 %v3011
        %v3300 = vunpack.c.l.b16 %v3012
        %v3301 = vunpack.c.l.b16 %v3013
        %v3302 = vunpack.c.l.b16 %v3014
        %v3303 = vunpack.c.l.b16 %v3015
        %v3304 = vunpack.c.l.b16 %v3016
        %v3305 = vunpack.c.l.b16 %v3017
        %v3306 = vunpack.c.l.b16 %v3018
        %v3307 = vunpack.c.l.b16 %v3019
        %v3308 = vunpack.c.l.b16 %v3020
        %v3309 = vunpack.c.l.b16 %v3021
        %v3310 = vunpack.c.l.b16 %v3022
        %v3311 = vunpack.c.l.b16 %v3023
        %v3312 = vunpack.c.l.b16 %v3024
        %v3313 = vunpack.c.l.b16 %v3025
        %v3314 = vunpack.c.l.b16 %v3026
        %v3315 = vunpack.c.l.b16 %v3027
        %v3316 = vpack.c.b16 %v3173, %v3172
        %v3317 = vpack.c.b16 %v3175, %v3174
        %v3318 = vpack.c.b16 %v3177, %v3176
        %v3319 = vpack.c.b16 %v3179, %v3178
        %v3320 = vpack.c.b16 %v3181, %v3180
        %v3321 = vpack.c.b16 %v3183, %v3182
        %v3322 = vpack.c.b16 %v3185, %v3184
        %v3323 = vpack.c.b16 %v3187, %v3186
        %v3324 = vpack.c.b16 %v3189, %v3188
        %v3325 = vpack.c.b16 %v3191, %v3190
        %v3326 = vpack.c.b16 %v3193, %v3192
        %v3327 = vpack.c.b16 %v3195, %v3194
        %v3328 = vpack.c.b16 %v3197, %v3196
        %v3329 = vpack.c.b16 %v3199, %v3198
        %v3330 = vpack.c.b16 %v3201, %v3200
        %v3331 = vpack.c.b16 %v3203, %v3202
        %v3332 = vpack.c.b16 %v3205, %v3204
        %v3333 = vpack.c.b16 %v3207, %v3206
        %v3334 = vpack.c.b16 %v3209, %v3208
        %v3335 = vpack.c.b16 %v3211, %v3210
        %v3336 = vpack.c.b16 %v3213, %v3212
        %v3337 = vpack.c.b16 %v3215, %v3214
        %v3338 = vpack.c.b16 %v3217, %v3216
        %v3339 = vpack.c.b16 %v3219, %v3218
        %v3340 = vpack.c.b16 %v3221, %v3220
        %v3341 = vpack.c.b16 %v3223, %v3222
        %v3342 = vpack.c.b16 %v3225, %v3224
        %v3343 = vpack.c.b16 %v3227, %v3226
        %v3344 = vpack.c.b16 %v3229, %v3228
        %v3345 = vpack.c.b16 %v3231, %v3230
        %v3346 = vpack.c.b16 %v3233, %v3232
        %v3347 = vpack.c.b16 %v3235, %v3234
        %v3348 = vpack.c.b16 %v3237, %v3236
        %v3349 = vpack.c.b16 %v3239, %v3238
        %v3350 = vpack.c.b16 %v3241, %v3240
        %v3351 = vpack.c.b16 %v3243, %v3242
        %v3352 = vpack.c.b16 %v3245, %v3244
        %v3353 = vpack.c.b16 %v3247, %v3246
        %v3354 = vpack.c.b16 %v3249, %v3248
        %v3355 = vpack.c.b16 %v3251, %v3250
        %v3356 = vpack.c.b16 %v3253, %v3252
        %v3357 = vpack.c.b16 %v3255, %v3254
        %v3358 = vpack.c.b16 %v3257, %v3256
        %v3359 = vpack.c.b16 %v3259, %v3258
        %v3360 = vpack.c.b16 %v3261, %v3260
        %v3361 = vpack.c.b16 %v3263, %v3262
        %v3362 = vpack.c.b16 %v3265, %v3264
        %v3363 = vpack.c.b16 %v3267, %v3266
        %v3364 = vpack.c.b16 %v3269, %v3268
        %v3365 = vpack.c.b16 %v3271, %v3270
        %v3366 = vpack.c.b16 %v3273, %v3272
        %v3367 = vpack.c.b16 %v3275, %v3274
        %v3368 = vpack.c.b16 %v3277, %v3276
        %v3369 = vpack.c.b16 %v3279, %v3278
        %v3370 = vpack.c.b16 %v3281, %v3280
        %v3371 = vpack.c.b16 %v3283, %v3282
        %v3372 = vpack.c.b16 %v3285, %v3284
        %v3373 = vpack.c.b16 %v3287, %v3286
        %v3374 = vpack.c.b16 %v3289, %v3288
        %v3375 = vpack.c.b16 %v3291, %v3290
        %v3376 = vpack.c.b16 %v3293, %v3292
        %v3377 = vpack.c.b16 %v3295, %v3294
        %v3378 = vpack.c.b16 %v3297, %v3296
        %v3379 = vpack.c.b16 %v3299, %v3298
        %v3380 = vpack.c.b16 %v3301, %v3300
        %v3381 = vpack.c.b16 %v3303, %v3302
        %v3382 = vpack.c.b16 %v3305, %v3304
        %v3383 = vpack.c.b16 %v3307, %v3306
        %v3384 = vpack.c.b16 %v3309, %v3308
        %v3385 = vpack.c.b16 %v3311, %v3310
        %v3386 = vpack.c.b16 %v3313, %v3312
        %v3387 = vpack.c.b16 %v3315, %v3314
        %3460 = vmatprep.subr.bf16.mxu0 0
        %3461 = vmatpush1.bf16.msra.mxu0 %v3316
        %3462 = vmatprep.subr.bf16.mxu0 0
        %3463 = vmatpush1.bf16.msra.mxu0 %v3317
        %3464 = vmatprep.subr.bf16.mxu0 0
        %3465 = vmatpush1.bf16.msra.mxu0 %v3318
        %3466 = vmatprep.subr.bf16.mxu0 0
        %3467 = vmatpush1.bf16.msra.mxu0 %v3319
        %3468 = vmatprep.subr.bf16.mxu0 0
        %3469 = vmatpush1.bf16.msra.mxu0 %v3320
        %3470 = vmatprep.subr.bf16.mxu0 0
        %3471 = vmatpush1.bf16.msra.mxu0 %v3321
        %3472 = vmatprep.subr.bf16.mxu0 0
        %3473 = vmatpush1.bf16.msra.mxu0 %v3322
        %3474 = vmatprep.subr.bf16.mxu0 0
        %3475 = vmatpush1.bf16.msra.mxu0 %v3323
        %3476 = vmatprep.subr.bf16.mxu0 0
        %3477 = vmatpush1.bf16.msra.mxu0 %v3324
        %3478 = vmatprep.subr.bf16.mxu0 0
        %3479 = vmatpush1.bf16.msra.mxu0 %v3325
        %3480 = vmatprep.subr.bf16.mxu0 0
        %3481 = vmatpush1.bf16.msra.mxu0 %v3326
        %3482 = vmatprep.subr.bf16.mxu0 0
        %3483 = vmatpush1.bf16.msra.mxu0 %v3327
        %3484 = vmatprep.subr.bf16.mxu0 0
        %3485 = vmatpush1.bf16.msra.mxu0 %v3328
        %3486 = vmatprep.subr.bf16.mxu0 0
        %3487 = vmatpush1.bf16.msra.mxu0 %v3329
        %3488 = vmatprep.subr.bf16.mxu0 0
        %3489 = vmatpush1.bf16.msra.mxu0 %v3330
        %3490 = vmatprep.subr.bf16.mxu0 0
        %3491 = vmatpush1.bf16.msra.mxu0 %v3331
        %3492 = vmatprep.mubr.bf16.mxu0 %v2831
        %3493 = vmatmul.mubr.bf16.gmra.mrb[0].mxu0 %v2830
        %v3494 = vpop.f32.mrb[0].mxu0
        %v3495 = vadd.f32 0.0, %v3494
        %v3496 = vpop.f32.mrb[0].mxu0
        %v3497 = vpop.f32.mrb[0].mxu0
        %v3498 = vadd.f32 0.0, %v3497
        %v3499 = vpop.f32.mrb[0].mxu0
        %3500 = vmatprep.mubr.bf16.mxu0 %v2834
        %3501 = vmatmul.mubr.bf16.gmra.mrb[0].mxu0 %v2833
        %v3502 = vpop.f32.mrb[0].mxu0
        %v3503 = vadd.f32 0.0, %v3502
        %v3504 = vpop.f32.mrb[0].mxu0
        %v3505 = vpop.f32.mrb[0].mxu0
        %v3506 = vadd.f32 0.0, %v3505
        %v3507 = vpop.f32.mrb[0].mxu0
        %3508 = vmatprep.mubr.bf16.mxu0 %v2837
        %3509 = vmatmul.mubr.bf16.gmra.mrb[0].mxu0 %v2836
        %v3510 = vpop.f32.mrb[0].mxu0
        %v3511 = vadd.f32 0.0, %v3510
        %v3512 = vpop.f32.mrb[0].mxu0
        %v3513 = vpop.f32.mrb[0].mxu0
        %v3514 = vadd.f32 0.0, %v3513
        %v3515 = vpop.f32.mrb[0].mxu0
        %3516 = vmatprep.mubr.bf16.mxu0 %v2840
        %3517 = vmatmul.mubr.bf16.gmra.mrb[0].mxu0 %v2839
        %v3518 = vpop.f32.mrb[0].mxu0
        %v3519 = vadd.f32 0.0, %v3518
        %v3520 = vpop.f32.mrb[0].mxu0
        %v3521 = vpop.f32.mrb[0].mxu0
        %v3522 = vadd.f32 0.0, %v3521
        %v3523 = vpop.f32.mrb[0].mxu0
        %3524 = vmatprep.mubr.bf16.mxu0 %v2843
        %3525 = vmatmul.mubr.bf16.gmra.mrb[0].mxu0 %v2842
        %v3526 = vpop.f32.mrb[0].mxu0
        %v3527 = vadd.f32 0.0, %v3526
        %v3528 = vpop.f32.mrb[0].mxu0
        %v3529 = vpop.f32.mrb[0].mxu0
        %v3530 = vadd.f32 0.0, %v3529
        %v3531 = vpop.f32.mrb[0].mxu0
        %3532 = vmatprep.mubr.bf16.mxu0 %v2846
        %3533 = vmatmul.mubr.bf16.gmra.mrb[0].mxu0 %v2845
        %v3534 = vpop.f32.mrb[0].mxu0
        %v3535 = vadd.f32 0.0, %v3534
        %v3536 = vpop.f32.mrb[0].mxu0
        %v3537 = vpop.f32.mrb[0].mxu0
        %v3538 = vadd.f32 0.0, %v3537
        %v3539 = vpop.f32.mrb[0].mxu0
        %3540 = vmatprep.mubr.bf16.mxu0 %v2849
        %3541 = vmatmul.mubr.bf16.gmra.mrb[0].mxu0 %v2848
        %v3542 = vpop.f32.mrb[0].mxu0
        %v3543 = vadd.f32 0.0, %v3542
        %v3544 = vpop.f32.mrb[0].mxu0
        %v3545 = vpop.f32.mrb[0].mxu0
        %v3546 = vadd.f32 0.0, %v3545
        %v3547 = vpop.f32.mrb[0].mxu0
        %3548 = vmatprep.mubr.bf16.mxu0 %v2852
        %3549 = vmatmul.mubr.bf16.gmra.mrb[0].mxu0 %v2851
        %v3550 = vpop.f32.mrb[0].mxu0
        %v3551 = vadd.f32 0.0, %v3550
        %v3552 = vpop.f32.mrb[0].mxu0
        %v3553 = vpop.f32.mrb[0].mxu0
        %v3554 = vadd.f32 0.0, %v3553
        %v3555 = vpop.f32.mrb[0].mxu0
        %3556 = vmatprep.mubr.bf16.mxu0 %v2855
        %3557 = vmatmul.mubr.bf16.gmra.mrb[0].mxu0 %v2854
        %v3558 = vpop.f32.mrb[0].mxu0
        %v3559 = vadd.f32 0.0, %v3558
        %v3560 = vpop.f32.mrb[0].mxu0
        %v3561 = vpop.f32.mrb[0].mxu0
        %v3562 = vadd.f32 0.0, %v3561
        %v3563 = vpop.f32.mrb[0].mxu0
        %3564 = vmatprep.mubr.bf16.mxu0 %v2858
        %3565 = vmatmul.mubr.bf16.gmra.mrb[0].mxu0 %v2857
        %v3566 = vpop.f32.mrb[0].mxu0
        %v3567 = vadd.f32 0.0, %v3566
        %v3568 = vpop.f32.mrb[0].mxu0
        %v3569 = vpop.f32.mrb[0].mxu0
        %v3570 = vadd.f32 0.0, %v3569
        %v3571 = vpop.f32.mrb[0].mxu0
        %3572 = vmatprep.mubr.bf16.mxu0 %v2861
        %3573 = vmatmul.mubr.bf16.gmra.mrb[0].mxu0 %v2860
        %v3574 = vpop.f32.mrb[0].mxu0
        %v3575 = vadd.f32 0.0, %v3574
        %v3576 = vpop.f32.mrb[0].mxu0
        %v3577 = vpop.f32.mrb[0].mxu0
        %v3578 = vadd.f32 0.0, %v3577
        %v3579 = vpop.f32.mrb[0].mxu0
        %3580 = vmatprep.mubr.bf16.mxu0 %v2864
        %3581 = vmatmul.mubr.bf16.gmra.mrb[0].mxu0 %v2863
        %v3582 = vpop.f32.mrb[0].mxu0
        %v3583 = vadd.f32 0.0, %v3582
        %v3584 = vpop.f32.mrb[0].mxu0
        %v3585 = vpop.f32.mrb[0].mxu0
        %v3586 = vadd.f32 0.0, %v3585
        %v3587 = vpop.f32.mrb[0].mxu0
        %3588 = vmatprep.mubr.bf16.mxu0 %v2867
        %3589 = vmatmul.mubr.bf16.gmra.mrb[0].mxu0 %v2866
        %v3590 = vpop.f32.mrb[0].mxu0
        %v3591 = vadd.f32 0.0, %v3590
        %v3592 = vpop.f32.mrb[0].mxu0
        %v3593 = vpop.f32.mrb[0].mxu0
        %v3594 = vadd.f32 0.0, %v3593
        %v3595 = vpop.f32.mrb[0].mxu0
        %3596 = vmatprep.mubr.bf16.mxu0 %v2870
        %3597 = vmatmul.mubr.bf16.gmra.mrb[0].mxu0 %v2869
        %v3598 = vpop.f32.mrb[0].mxu0
        %v3599 = vadd.f32 0.0, %v3598
        %v3600 = vpop.f32.mrb[0].mxu0
        %v3601 = vpop.f32.mrb[0].mxu0
        %v3602 = vadd.f32 0.0, %v3601
        %v3603 = vpop.f32.mrb[0].mxu0
        %3604 = vmatprep.mubr.bf16.mxu0 %v2873
        %3605 = vmatmul.mubr.bf16.gmra.mrb[0].mxu0 %v2872
        %v3606 = vpop.f32.mrb[0].mxu0
        %v3607 = vadd.f32 0.0, %v3606
        %v3608 = vpop.f32.mrb[0].mxu0
        %v3609 = vpop.f32.mrb[0].mxu0
        %v3610 = vadd.f32 0.0, %v3609
        %v3611 = vpop.f32.mrb[0].mxu0
        %3612 = vmatprep.mubr.bf16.mxu0 %v2876
        %3613 = vmatmul.mubr.bf16.gmra.mrb[0].mxu0 %v2875
        %v3614 = vpop.f32.mrb[0].mxu0
        %v3615 = vadd.f32 0.0, %v3614
        %v3616 = vpop.f32.mrb[0].mxu0
        %v3617 = vpop.f32.mrb[0].mxu0
        %v3618 = vadd.f32 0.0, %v3617
        %v3619 = vpop.f32.mrb[0].mxu0
        %3620 = vdwg.mxu0
        %3621 = vmatprep.subr.bf16.mxu0 0
        %3622 = vmatpush1.bf16.msra.mxu0 %v3332
        %3623 = vmatprep.subr.bf16.mxu0 0
        %3624 = vmatpush1.bf16.msra.mxu0 %v3333
        %3625 = vmatprep.subr.bf16.mxu0 0
        %3626 = vmatpush1.bf16.msra.mxu0 %v3334
        %3627 = vmatprep.subr.bf16.mxu0 0
        %3628 = vmatpush1.bf16.msra.mxu0 %v3335
        %3629 = vmatprep.subr.bf16.mxu0 0
        %3630 = vmatpush1.bf16.msra.mxu0 %v3336
        %3631 = vmatprep.subr.bf16.mxu0 0
        %3632 = vmatpush1.bf16.msra.mxu0 %v3337
        %3633 = vmatprep.subr.bf16.mxu0 0
        %3634 = vmatpush1.bf16.msra.mxu0 %v3338
        %3635 = vmatprep.subr.bf16.mxu0 0
        %3636 = vmatpush1.bf16.msra.mxu0 %v3339
        %3637 = vmatprep.subr.bf16.mxu0 0
        %3638 = vmatpush1.bf16.msra.mxu0 %v3340
        %3639 = vmatprep.subr.bf16.mxu0 0
        %3640 = vmatpush1.bf16.msra.mxu0 %v3341
        %3641 = vmatprep.subr.bf16.mxu0 0
        %3642 = vmatpush1.bf16.msra.mxu0 %v3342
        %3643 = vmatprep.subr.bf16.mxu0 0
        %3644 = vmatpush1.bf16.msra.mxu0 %v3343
        %3645 = vmatprep.subr.bf16.mxu0 0
        %3646 = vmatpush1.bf16.msra.mxu0 %v3344
        %3647 = vmatprep.subr.bf16.mxu0 0
        %3648 = vmatpush1.bf16.msra.mxu0 %v3345
        %3649 = vmatprep.subr.bf16.mxu0 0
        %3650 = vmatpush1.bf16.msra.mxu0 %v3346
        %3651 = vmatprep.subr.bf16.mxu0 0
        %3652 = vmatpush1.bf16.msra.mxu0 %v3347
        %3653 = vmatprep.mubr.bf16.mxu0 %v2833
        %3654 = vmatmul.mubr.bf16.gmra.mrb[0].mxu0 %v2832
        %v3655 = vpop.f32.mrb[0].mxu0
        %v3656 = vadd.f32 %v3495, %v3655
        %v3657 = vpop.f32.mrb[0].mxu0
        %v3658 = vpop.f32.mrb[0].mxu0
        %v3659 = vadd.f32 %v3498, %v3658
        %v3660 = vpop.f32.mrb[0].mxu0
        %3661 = vmatprep.mubr.bf16.mxu0 %v2836
        %3662 = vmatmul.mubr.bf16.gmra.mrb[0].mxu0 %v2835
        %v3663 = vpop.f32.mrb[0].mxu0
        %v3664 = vadd.f32 %v3503, %v3663
        %v3665 = vpop.f32.mrb[0].mxu0
        %v3666 = vpop.f32.mrb[0].mxu0
        %v3667 = vadd.f32 %v3506, %v3666
        %v3668 = vpop.f32.mrb[0].mxu0
        %3669 = vmatprep.mubr.bf16.mxu0 %v2839
        %3670 = vmatmul.mubr.bf16.gmra.mrb[0].mxu0 %v2838
        %v3671 = vpop.f32.mrb[0].mxu0
        %v3672 = vadd.f32 %v3511, %v3671
        %v3673 = vpop.f32.mrb[0].mxu0
        %v3674 = vpop.f32.mrb[0].mxu0
        %v3675 = vadd.f32 %v3514, %v3674
        %v3676 = vpop.f32.mrb[0].mxu0
        %3677 = vmatprep.mubr.bf16.mxu0 %v2842
        %3678 = vmatmul.mubr.bf16.gmra.mrb[0].mxu0 %v2841
        %v3679 = vpop.f32.mrb[0].mxu0
        %v3680 = vadd.f32 %v3519, %v3679
        %v3681 = vpop.f32.mrb[0].mxu0
        %v3682 = vpop.f32.mrb[0].mxu0
        %v3683 = vadd.f32 %v3522, %v3682
        %v3684 = vpop.f32.mrb[0].mxu0
        %3685 = vmatprep.mubr.bf16.mxu0 %v2845
        %3686 = vmatmul.mubr.bf16.gmra.mrb[0].mxu0 %v2844
        %v3687 = vpop.f32.mrb[0].mxu0
        %v3688 = vadd.f32 %v3527, %v3687
        %v3689 = vpop.f32.mrb[0].mxu0
        %v3690 = vpop.f32.mrb[0].mxu0
        %v3691 = vadd.f32 %v3530, %v3690
        %v3692 = vpop.f32.mrb[0].mxu0
        %3693 = vmatprep.mubr.bf16.mxu0 %v2848
        %3694 = vmatmul.mubr.bf16.gmra.mrb[0].mxu0 %v2847
        %v3695 = vpop.f32.mrb[0].mxu0
        %v3696 = vadd.f32 %v3535, %v3695
        %v3697 = vpop.f32.mrb[0].mxu0
        %v3698 = vpop.f32.mrb[0].mxu0
        %v3699 = vadd.f32 %v3538, %v3698
        %v3700 = vpop.f32.mrb[0].mxu0
        %3701 = vmatprep.mubr.bf16.mxu0 %v2851
        %3702 = vmatmul.mubr.bf16.gmra.mrb[0].mxu0 %v2850
        %v3703 = vpop.f32.mrb[0].mxu0
        %v3704 = vadd.f32 %v3543, %v3703
        %v3705 = vpop.f32.mrb[0].mxu0
        %v3706 = vpop.f32.mrb[0].mxu0
        %v3707 = vadd.f32 %v3546, %v3706
        %v3708 = vpop.f32.mrb[0].mxu0
        %3709 = vmatprep.mubr.bf16.mxu0 %v2854
        %3710 = vmatmul.mubr.bf16.gmra.mrb[0].mxu0 %v2853
        %v3711 = vpop.f32.mrb[0].mxu0
        %v3712 = vadd.f32 %v3551, %v3711
        %v3713 = vpop.f32.mrb[0].mxu0
        %v3714 = vpop.f32.mrb[0].mxu0
        %v3715 = vadd.f32 %v3554, %v3714
        %v3716 = vpop.f32.mrb[0].mxu0
        %3717 = vmatprep.mubr.bf16.mxu0 %v2857
        %3718 = vmatmul.mubr.bf16.gmra.mrb[0].mxu0 %v2856
        %v3719 = vpop.f32.mrb[0].mxu0
        %v3720 = vadd.f32 %v3559, %v3719
        %v3721 = vpop.f32.mrb[0].mxu0
        %v3722 = vpop.f32.mrb[0].mxu0
        %v3723 = vadd.f32 %v3562, %v3722
        %v3724 = vpop.f32.mrb[0].mxu0
        %3725 = vmatprep.mubr.bf16.mxu0 %v2860
        %3726 = vmatmul.mubr.bf16.gmra.mrb[0].mxu0 %v2859
        %v3727 = vpop.f32.mrb[0].mxu0
        %v3728 = vadd.f32 %v3567, %v3727
        %v3729 = vpop.f32.mrb[0].mxu0
        %v3730 = vpop.f32.mrb[0].mxu0
        %v3731 = vadd.f32 %v3570, %v3730
        %v3732 = vpop.f32.mrb[0].mxu0
        %3733 = vmatprep.mubr.bf16.mxu0 %v2863
        %3734 = vmatmul.mubr.bf16.gmra.mrb[0].mxu0 %v2862
        %v3735 = vpop.f32.mrb[0].mxu0
        %v3736 = vadd.f32 %v3575, %v3735
        %v3737 = vpop.f32.mrb[0].mxu0
        %v3738 = vpop.f32.mrb[0].mxu0
        %v3739 = vadd.f32 %v3578, %v3738
        %v3740 = vpop.f32.mrb[0].mxu0
        %3741 = vmatprep.mubr.bf16.mxu0 %v2866
        %3742 = vmatmul.mubr.bf16.gmra.mrb[0].mxu0 %v2865
        %v3743 = vpop.f32.mrb[0].mxu0
        %v3744 = vadd.f32 %v3583, %v3743
        %v3745 = vpop.f32.mrb[0].mxu0
        %v3746 = vpop.f32.mrb[0].mxu0
        %v3747 = vadd.f32 %v3586, %v3746
        %v3748 = vpop.f32.mrb[0].mxu0
        %3749 = vmatprep.mubr.bf16.mxu0 %v2869
        %3750 = vmatmul.mubr.bf16.gmra.mrb[0].mxu0 %v2868
        %v3751 = vpop.f32.mrb[0].mxu0
        %v3752 = vadd.f32 %v3591, %v3751
        %v3753 = vpop.f32.mrb[0].mxu0
        %v3754 = vpop.f32.mrb[0].mxu0
        %v3755 = vadd.f32 %v3594, %v3754
        %v3756 = vpop.f32.mrb[0].mxu0
        %3757 = vmatprep.mubr.bf16.mxu0 %v2872
        %3758 = vmatmul.mubr.bf16.gmra.mrb[0].mxu0 %v2871
        %v3759 = vpop.f32.mrb[0].mxu0
        %v3760 = vadd.f32 %v3599, %v3759
        %v3761 = vpop.f32.mrb[0].mxu0
        %v3762 = vpop.f32.mrb[0].mxu0
        %v3763 = vadd.f32 %v3602, %v3762
        %v3764 = vpop.f32.mrb[0].mxu0
        %3765 = vmatprep.mubr.bf16.mxu0 %v2875
        %3766 = vmatmul.mubr.bf16.gmra.mrb[0].mxu0 %v2874
        %v3767 = vpop.f32.mrb[0].mxu0
        %v3768 = vadd.f32 %v3607, %v3767
        %v3769 = vpop.f32.mrb[0].mxu0
        %v3770 = vpop.f32.mrb[0].mxu0
        %v3771 = vadd.f32 %v3610, %v3770
        %v3772 = vpop.f32.mrb[0].mxu0
        %3773 = vmatprep.mubr.bf16.mxu0 %v2878
        %3774 = vmatmul.mubr.bf16.gmra.mrb[0].mxu0 %v2877
        %v3775 = vpop.f32.mrb[0].mxu0
        %v3776 = vadd.f32 %v3615, %v3775
        %v3777 = vpop.f32.mrb[0].mxu0
        %v3778 = vpop.f32.mrb[0].mxu0
        %v3779 = vadd.f32 %v3618, %v3778
        %v3780 = vpop.f32.mrb[0].mxu0
        %3781 = vdwg.mxu0
        %3782 = vmatprep.subr.bf16.mxu0 0
        %3783 = vmatpush1.bf16.msra.mxu0 %v3348
        %3784 = vmatprep.subr.bf16.mxu0 0
        %3785 = vmatpush1.bf16.msra.mxu0 %v3349
        %3786 = vmatprep.subr.bf16.mxu0 0
        %3787 = vmatpush1.bf16.msra.mxu0 %v3350
        %3788 = vmatprep.subr.bf16.mxu0 0
        %3789 = vmatpush1.bf16.msra.mxu0 %v3351
        %3790 = vmatprep.subr.bf16.mxu0 0
        %3791 = vmatpush1.bf16.msra.mxu0 %v3352
        %3792 = vmatprep.subr.bf16.mxu0 0
        %3793 = vmatpush1.bf16.msra.mxu0 %v3353
        %3794 = vmatprep.subr.bf16.mxu0 0
        %3795 = vmatpush1.bf16.msra.mxu0 %v3354
        %3796 = vmatprep.subr.bf16.mxu0 0
        %3797 = vmatpush1.bf16.msra.mxu0 %v3355
        %3798 = vmatprep.subr.bf16.mxu0 0
        %3799 = vmatpush1.bf16.msra.mxu0 %v3356
        %3800 = vmatprep.subr.bf16.mxu0 0
        %3801 = vmatpush1.bf16.msra.mxu0 %v3357
        %3802 = vmatprep.subr.bf16.mxu0 0
        %3803 = vmatpush1.bf16.msra.mxu0 %v3358
        %3804 = vmatprep.subr.bf16.mxu0 0
        %3805 = vmatpush1.bf16.msra.mxu0 %v3359
        %3806 = vmatprep.subr.bf16.mxu0 0
        %3807 = vmatpush1.bf16.msra.mxu0 %v3360
        %3808 = vmatprep.subr.bf16.mxu0 0
        %3809 = vmatpush1.bf16.msra.mxu0 %v3361
        %3810 = vmatprep.subr.bf16.mxu0 0
        %3811 = vmatpush1.bf16.msra.mxu0 %v3362
        %3812 = vmatprep.subr.bf16.mxu0 0
        %3813 = vmatpush1.bf16.msra.mxu0 %v3363
        %3814 = vmatprep.mubr.bf16.mxu0 %v2835
        %3815 = vmatmul.mubr.bf16.gmra.mrb[0].mxu0 %v2834
        %v3816 = vpop.f32.mrb[0].mxu0
        %v3817 = vadd.f32 %v3656, %v3816
        %v3818 = vpop.f32.mrb[0].mxu0
        %v3819 = vpop.f32.mrb[0].mxu0
        %v3820 = vadd.f32 %v3659, %v3819
        %v3821 = vpop.f32.mrb[0].mxu0
        %3822 = vmatprep.mubr.bf16.mxu0 %v2838
        %3823 = vmatmul.mubr.bf16.gmra.mrb[0].mxu0 %v2837
        %v3824 = vpop.f32.mrb[0].mxu0
        %v3825 = vadd.f32 %v3664, %v3824
        %v3826 = vpop.f32.mrb[0].mxu0
        %v3827 = vpop.f32.mrb[0].mxu0
        %v3828 = vadd.f32 %v3667, %v3827
        %v3829 = vpop.f32.mrb[0].mxu0
        %3830 = vmatprep.mubr.bf16.mxu0 %v2841
        %3831 = vmatmul.mubr.bf16.gmra.mrb[0].mxu0 %v2840
        %v3832 = vpop.f32.mrb[0].mxu0
        %v3833 = vadd.f32 %v3672, %v3832
        %v3834 = vpop.f32.mrb[0].mxu0
        %v3835 = vpop.f32.mrb[0].mxu0
        %v3836 = vadd.f32 %v3675, %v3835
        %v3837 = vpop.f32.mrb[0].mxu0
        %3838 = vmatprep.mubr.bf16.mxu0 %v2844
        %3839 = vmatmul.mubr.bf16.gmra.mrb[0].mxu0 %v2843
        %v3840 = vpop.f32.mrb[0].mxu0
        %v3841 = vadd.f32 %v3680, %v3840
        %v3842 = vpop.f32.mrb[0].mxu0
        %v3843 = vpop.f32.mrb[0].mxu0
        %v3844 = vadd.f32 %v3683, %v3843
        %v3845 = vpop.f32.mrb[0].mxu0
        %3846 = vmatprep.mubr.bf16.mxu0 %v2847
        %3847 = vmatmul.mubr.bf16.gmra.mrb[0].mxu0 %v2846
        %v3848 = vpop.f32.mrb[0].mxu0
        %v3849 = vadd.f32 %v3688, %v3848
        %v3850 = vpop.f32.mrb[0].mxu0
        %v3851 = vpop.f32.mrb[0].mxu0
        %v3852 = vadd.f32 %v3691, %v3851
        %v3853 = vpop.f32.mrb[0].mxu0
        %3854 = vmatprep.mubr.bf16.mxu0 %v2850
        %3855 = vmatmul.mubr.bf16.gmra.mrb[0].mxu0 %v2849
        %v3856 = vpop.f32.mrb[0].mxu0
        %v3857 = vadd.f32 %v3696, %v3856
        %v3858 = vpop.f32.mrb[0].mxu0
        %v3859 = vpop.f32.mrb[0].mxu0
        %v3860 = vadd.f32 %v3699, %v3859
        %v3861 = vpop.f32.mrb[0].mxu0
        %3862 = vmatprep.mubr.bf16.mxu0 %v2853
        %3863 = vmatmul.mubr.bf16.gmra.mrb[0].mxu0 %v2852
        %v3864 = vpop.f32.mrb[0].mxu0
        %v3865 = vadd.f32 %v3704, %v3864
        %v3866 = vpop.f32.mrb[0].mxu0
        %v3867 = vpop.f32.mrb[0].mxu0
        %v3868 = vadd.f32 %v3707, %v3867
        %v3869 = vpop.f32.mrb[0].mxu0
        %3870 = vmatprep.mubr.bf16.mxu0 %v2856
        %3871 = vmatmul.mubr.bf16.gmra.mrb[0].mxu0 %v2855
        %v3872 = vpop.f32.mrb[0].mxu0
        %v3873 = vadd.f32 %v3712, %v3872
        %v3874 = vpop.f32.mrb[0].mxu0
        %v3875 = vpop.f32.mrb[0].mxu0
        %v3876 = vadd.f32 %v3715, %v3875
        %v3877 = vpop.f32.mrb[0].mxu0
        %3878 = vmatprep.mubr.bf16.mxu0 %v2859
        %3879 = vmatmul.mubr.bf16.gmra.mrb[0].mxu0 %v2858
        %v3880 = vpop.f32.mrb[0].mxu0
        %v3881 = vadd.f32 %v3720, %v3880
        %v3882 = vpop.f32.mrb[0].mxu0
        %v3883 = vpop.f32.mrb[0].mxu0
        %v3884 = vadd.f32 %v3723, %v3883
        %v3885 = vpop.f32.mrb[0].mxu0
        %3886 = vmatprep.mubr.bf16.mxu0 %v2862
        %3887 = vmatmul.mubr.bf16.gmra.mrb[0].mxu0 %v2861
        %v3888 = vpop.f32.mrb[0].mxu0
        %v3889 = vadd.f32 %v3728, %v3888
        %v3890 = vpop.f32.mrb[0].mxu0
        %v3891 = vpop.f32.mrb[0].mxu0
        %v3892 = vadd.f32 %v3731, %v3891
        %v3893 = vpop.f32.mrb[0].mxu0
        %3894 = vmatprep.mubr.bf16.mxu0 %v2865
        %3895 = vmatmul.mubr.bf16.gmra.mrb[0].mxu0 %v2864
        %v3896 = vpop.f32.mrb[0].mxu0
        %v3897 = vadd.f32 %v3736, %v3896
        %v3898 = vpop.f32.mrb[0].mxu0
        %v3899 = vpop.f32.mrb[0].mxu0
        %v3900 = vadd.f32 %v3739, %v3899
        %v3901 = vpop.f32.mrb[0].mxu0
        %3902 = vmatprep.mubr.bf16.mxu0 %v2868
        %3903 = vmatmul.mubr.bf16.gmra.mrb[0].mxu0 %v2867
        %v3904 = vpop.f32.mrb[0].mxu0
        %v3905 = vadd.f32 %v3744, %v3904
        %v3906 = vpop.f32.mrb[0].mxu0
        %v3907 = vpop.f32.mrb[0].mxu0
        %v3908 = vadd.f32 %v3747, %v3907
        %v3909 = vpop.f32.mrb[0].mxu0
        %3910 = vmatprep.mubr.bf16.mxu0 %v2871
        %3911 = vmatmul.mubr.bf16.gmra.mrb[0].mxu0 %v2870
        %v3912 = vpop.f32.mrb[0].mxu0
        %v3913 = vadd.f32 %v3752, %v3912
        %v3914 = vpop.f32.mrb[0].mxu0
        %v3915 = vpop.f32.mrb[0].mxu0
        %v3916 = vadd.f32 %v3755, %v3915
        %v3917 = vpop.f32.mrb[0].mxu0
        %3918 = vmatprep.mubr.bf16.mxu0 %v2874
        %3919 = vmatmul.mubr.bf16.gmra.mrb[0].mxu0 %v2873
        %v3920 = vpop.f32.mrb[0].mxu0
        %v3921 = vadd.f32 %v3760, %v3920
        %v3922 = vpop.f32.mrb[0].mxu0
        %v3923 = vpop.f32.mrb[0].mxu0
        %v3924 = vadd.f32 %v3763, %v3923
        %v3925 = vpop.f32.mrb[0].mxu0
        %3926 = vmatprep.mubr.bf16.mxu0 %v2877
        %3927 = vmatmul.mubr.bf16.gmra.mrb[0].mxu0 %v2876
        %v3928 = vpop.f32.mrb[0].mxu0
        %v3929 = vadd.f32 %v3768, %v3928
        %v3930 = vpop.f32.mrb[0].mxu0
        %v3931 = vpop.f32.mrb[0].mxu0
        %v3932 = vadd.f32 %v3771, %v3931
        %v3933 = vpop.f32.mrb[0].mxu0
        %3934 = vmatprep.mubr.bf16.mxu0 %v2880
        %3935 = vmatmul.mubr.bf16.gmra.mrb[0].mxu0 %v2879
        %v3936 = vpop.f32.mrb[0].mxu0
        %v3937 = vadd.f32 %v3776, %v3936
        %v3938 = vpop.f32.mrb[0].mxu0
        %v3939 = vpop.f32.mrb[0].mxu0
        %v3940 = vadd.f32 %v3779, %v3939
        %v3941 = vpop.f32.mrb[0].mxu0
        %3942 = vdwg.mxu0
        %3943 = vmatprep.subr.bf16.mxu0 0
        %3944 = vmatpush1.bf16.msra.mxu0 %v3364
        %3945 = vmatprep.subr.bf16.mxu0 0
        %3946 = vmatpush1.bf16.msra.mxu0 %v3365
        %3947 = vmatprep.subr.bf16.mxu0 0
        %3948 = vmatpush1.bf16.msra.mxu0 %v3366
        %3949 = vmatprep.subr.bf16.mxu0 0
        %3950 = vmatpush1.bf16.msra.mxu0 %v3367
        %3951 = vmatprep.subr.bf16.mxu0 0
        %3952 = vmatpush1.bf16.msra.mxu0 %v3368
        %3953 = vmatprep.subr.bf16.mxu0 0
        %3954 = vmatpush1.bf16.msra.mxu0 %v3369
        %3955 = vmatprep.subr.bf16.mxu0 0
        %3956 = vmatpush1.bf16.msra.mxu0 %v3370
        %3957 = vmatprep.subr.bf16.mxu0 0
        %3958 = vmatpush1.bf16.msra.mxu0 %v3371
        %3959 = vmatprep.subr.bf16.mxu0 0
        %3960 = vmatpush1.bf16.msra.mxu0 %v3372
        %3961 = vmatprep.subr.bf16.mxu0 0
        %3962 = vmatpush1.bf16.msra.mxu0 %v3373
        %3963 = vmatprep.subr.bf16.mxu0 0
        %3964 = vmatpush1.bf16.msra.mxu0 %v3374
        %3965 = vmatprep.subr.bf16.mxu0 0
        %3966 = vmatpush1.bf16.msra.mxu0 %v3375
        %3967 = vmatprep.subr.bf16.mxu0 0
        %3968 = vmatpush1.bf16.msra.mxu0 %v3376
        %3969 = vmatprep.subr.bf16.mxu0 0
        %3970 = vmatpush1.bf16.msra.mxu0 %v3377
        %3971 = vmatprep.subr.bf16.mxu0 0
        %3972 = vmatpush1.bf16.msra.mxu0 %v3378
        %3973 = vmatprep.subr.bf16.mxu0 0
        %3974 = vmatpush1.bf16.msra.mxu0 %v3379
        %3975 = vmatprep.mubr.bf16.mxu0 %v2837
        %3976 = vmatmul.mubr.bf16.gmra.mrb[0].mxu0 %v2836
        %v3977 = vpop.f32.mrb[0].mxu0
        %v3978 = vadd.f32 %v3817, %v3977
        %v3979 = vpop.f32.mrb[0].mxu0
        %v3980 = vpop.f32.mrb[0].mxu0
        %v3981 = vadd.f32 %v3820, %v3980
        %v3982 = vpop.f32.mrb[0].mxu0
        %3983 = vmatprep.mubr.bf16.mxu0 %v2840
        %3984 = vmatmul.mubr.bf16.gmra.mrb[0].mxu0 %v2839
        %v3985 = vpop.f32.mrb[0].mxu0
        %v3986 = vadd.f32 %v3825, %v3985
        %v3987 = vpop.f32.mrb[0].mxu0
        %v3988 = vpop.f32.mrb[0].mxu0
        %v3989 = vadd.f32 %v3828, %v3988
        %v3990 = vpop.f32.mrb[0].mxu0
        %3991 = vmatprep.mubr.bf16.mxu0 %v2843
        %3992 = vmatmul.mubr.bf16.gmra.mrb[0].mxu0 %v2842
        %v3993 = vpop.f32.mrb[0].mxu0
        %v3994 = vadd.f32 %v3833, %v3993
        %v3995 = vpop.f32.mrb[0].mxu0
        %v3996 = vpop.f32.mrb[0].mxu0
        %v3997 = vadd.f32 %v3836, %v3996
        %v3998 = vpop.f32.mrb[0].mxu0
        %3999 = vmatprep.mubr.bf16.mxu0 %v2846
        %4000 = vmatmul.mubr.bf16.gmra.mrb[0].mxu0 %v2845
        %v4001 = vpop.f32.mrb[0].mxu0
        %v4002 = vadd.f32 %v3841, %v4001
        %v4003 = vpop.f32.mrb[0].mxu0
        %v4004 = vpop.f32.mrb[0].mxu0
        %v4005 = vadd.f32 %v3844, %v4004
        %v4006 = vpop.f32.mrb[0].mxu0
        %4007 = vmatprep.mubr.bf16.mxu0 %v2849
        %4008 = vmatmul.mubr.bf16.gmra.mrb[0].mxu0 %v2848
        %v4009 = vpop.f32.mrb[0].mxu0
        %v4010 = vadd.f32 %v3849, %v4009
        %v4011 = vpop.f32.mrb[0].mxu0
        %v4012 = vpop.f32.mrb[0].mxu0
        %v4013 = vadd.f32 %v3852, %v4012
        %v4014 = vpop.f32.mrb[0].mxu0
        %4015 = vmatprep.mubr.bf16.mxu0 %v2852
        %4016 = vmatmul.mubr.bf16.gmra.mrb[0].mxu0 %v2851
        %v4017 = vpop.f32.mrb[0].mxu0
        %v4018 = vadd.f32 %v3857, %v4017
        %v4019 = vpop.f32.mrb[0].mxu0
        %v4020 = vpop.f32.mrb[0].mxu0
        %v4021 = vadd.f32 %v3860, %v4020
        %v4022 = vpop.f32.mrb[0].mxu0
        %4023 = vmatprep.mubr.bf16.mxu0 %v2855
        %4024 = vmatmul.mubr.bf16.gmra.mrb[0].mxu0 %v2854
        %v4025 = vpop.f32.mrb[0].mxu0
        %v4026 = vadd.f32 %v3865, %v4025
        %v4027 = vpop.f32.mrb[0].mxu0
        %v4028 = vpop.f32.mrb[0].mxu0
        %v4029 = vadd.f32 %v3868, %v4028
        %v4030 = vpop.f32.mrb[0].mxu0
        %4031 = vmatprep.mubr.bf16.mxu0 %v2858
        %4032 = vmatmul.mubr.bf16.gmra.mrb[0].mxu0 %v2857
        %v4033 = vpop.f32.mrb[0].mxu0
        %v4034 = vadd.f32 %v3873, %v4033
        %v4035 = vpop.f32.mrb[0].mxu0
        %v4036 = vpop.f32.mrb[0].mxu0
        %v4037 = vadd.f32 %v3876, %v4036
        %v4038 = vpop.f32.mrb[0].mxu0
        %4039 = vmatprep.mubr.bf16.mxu0 %v2861
        %4040 = vmatmul.mubr.bf16.gmra.mrb[0].mxu0 %v2860
        %v4041 = vpop.f32.mrb[0].mxu0
        %v4042 = vadd.f32 %v3881, %v4041
        %v4043 = vpop.f32.mrb[0].mxu0
        %v4044 = vpop.f32.mrb[0].mxu0
        %v4045 = vadd.f32 %v3884, %v4044
        %v4046 = vpop.f32.mrb[0].mxu0
        %4047 = vmatprep.mubr.bf16.mxu0 %v2864
        %4048 = vmatmul.mubr.bf16.gmra.mrb[0].mxu0 %v2863
        %v4049 = vpop.f32.mrb[0].mxu0
        %v4050 = vadd.f32 %v3889, %v4049
        %v4051 = vpop.f32.mrb[0].mxu0
        %v4052 = vpop.f32.mrb[0].mxu0
        %v4053 = vadd.f32 %v3892, %v4052
        %v4054 = vpop.f32.mrb[0].mxu0
        %4055 = vmatprep.mubr.bf16.mxu0 %v2867
        %4056 = vmatmul.mubr.bf16.gmra.mrb[0].mxu0 %v2866
        %v4057 = vpop.f32.mrb[0].mxu0
        %v4058 = vadd.f32 %v3897, %v4057
        %v4059 = vpop.f32.mrb[0].mxu0
        %v4060 = vpop.f32.mrb[0].mxu0
        %v4061 = vadd.f32 %v3900, %v4060
        %v4062 = vpop.f32.mrb[0].mxu0
        %4063 = vmatprep.mubr.bf16.mxu0 %v2870
        %4064 = vmatmul.mubr.bf16.gmra.mrb[0].mxu0 %v2869
        %v4065 = vpop.f32.mrb[0].mxu0
        %v4066 = vadd.f32 %v3905, %v4065
        %v4067 = vpop.f32.mrb[0].mxu0
        %v4068 = vpop.f32.mrb[0].mxu0
        %v4069 = vadd.f32 %v3908, %v4068
        %v4070 = vpop.f32.mrb[0].mxu0
        %4071 = vmatprep.mubr.bf16.mxu0 %v2873
        %4072 = vmatmul.mubr.bf16.gmra.mrb[0].mxu0 %v2872
        %v4073 = vpop.f32.mrb[0].mxu0
        %v4074 = vadd.f32 %v3913, %v4073
        %v4075 = vpop.f32.mrb[0].mxu0
        %v4076 = vpop.f32.mrb[0].mxu0
        %v4077 = vadd.f32 %v3916, %v4076
        %v4078 = vpop.f32.mrb[0].mxu0
        %4079 = vmatprep.mubr.bf16.mxu0 %v2876
        %4080 = vmatmul.mubr.bf16.gmra.mrb[0].mxu0 %v2875
        %v4081 = vpop.f32.mrb[0].mxu0
        %v4082 = vadd.f32 %v3921, %v4081
        %v4083 = vpop.f32.mrb[0].mxu0
        %v4084 = vpop.f32.mrb[0].mxu0
        %v4085 = vadd.f32 %v3924, %v4084
        %v4086 = vpop.f32.mrb[0].mxu0
        %4087 = vmatprep.mubr.bf16.mxu0 %v2879
        %4088 = vmatmul.mubr.bf16.gmra.mrb[0].mxu0 %v2878
        %v4089 = vpop.f32.mrb[0].mxu0
        %v4090 = vadd.f32 %v3929, %v4089
        %v4091 = vpop.f32.mrb[0].mxu0
        %v4092 = vpop.f32.mrb[0].mxu0
        %v4093 = vadd.f32 %v3932, %v4092
        %v4094 = vpop.f32.mrb[0].mxu0
        %4095 = vmatprep.mubr.bf16.mxu0 %v2882
        %4096 = vmatmul.mubr.bf16.gmra.mrb[0].mxu0 %v2881
        %v4097 = vpop.f32.mrb[0].mxu0
        %v4098 = vadd.f32 %v3937, %v4097
        %v4099 = vpop.f32.mrb[0].mxu0
        %v4100 = vpop.f32.mrb[0].mxu0
        %v4101 = vadd.f32 %v3940, %v4100
        %v4102 = vpop.f32.mrb[0].mxu0
        %4103 = vdwg.mxu0
        %4104 = vmatprep.subr.bf16.mxu0 0
        %4105 = vmatpush1.bf16.msra.mxu0 %v3380
        %4106 = vmatprep.subr.bf16.mxu0 0
        %4107 = vmatpush1.bf16.msra.mxu0 %v3381
        %4108 = vmatprep.subr.bf16.mxu0 0
        %4109 = vmatpush1.bf16.msra.mxu0 %v3382
        %4110 = vmatprep.subr.bf16.mxu0 0
        %4111 = vmatpush1.bf16.msra.mxu0 %v3383
        %4112 = vmatprep.subr.bf16.mxu0 0
        %4113 = vmatpush1.bf16.msra.mxu0 %v3384
        %4114 = vmatprep.subr.bf16.mxu0 0
        %4115 = vmatpush1.bf16.msra.mxu0 %v3385
        %4116 = vmatprep.subr.bf16.mxu0 0
        %4117 = vmatpush1.bf16.msra.mxu0 %v3386
        %4118 = vmatprep.subr.bf16.mxu0 0
        %4119 = vmatpush1.bf16.msra.mxu0 %v3387
        %4120 = vmatprep.subr.bf16.mxu0 0
        %4121 = vmatpush1.bf16.msra.mxu0 0
        %4122 = vmatprep.subr.bf16.mxu0 0
        %4123 = vmatpush1.bf16.msra.mxu0 0
        %4124 = vmatprep.subr.bf16.mxu0 0
        %4125 = vmatpush1.bf16.msra.mxu0 0
        %4126 = vmatprep.subr.bf16.mxu0 0
        %4127 = vmatpush1.bf16.msra.mxu0 0
        %4128 = vmatprep.subr.bf16.mxu0 0
        %4129 = vmatpush1.bf16.msra.mxu0 0
        %4130 = vmatprep.subr.bf16.mxu0 0
        %4131 = vmatpush1.bf16.msra.mxu0 0
        %4132 = vmatprep.subr.bf16.mxu0 0
        %4133 = vmatpush1.bf16.msra.mxu0 0
        %4134 = vmatprep.subr.bf16.mxu0 0
        %4135 = vmatpush1.bf16.msra.mxu0 0
        %4136 = vmatprep.mubr.bf16.mxu0 0
        %4137 = vmatmul.mubr.bf16.gmra.mrb[0].mxu0 %v2838
        %v4138 = vpop.f32.mrb[0].mxu0
        %v4139 = vadd.f32 %v3978, %v4138
        %v4140 = vpop.f32.mrb[0].mxu0
        %v4141 = vpop.f32.mrb[0].mxu0
        %v4142 = vadd.f32 %v3981, %v4141
        %v4143 = vpop.f32.mrb[0].mxu0
        %4144 = vmatprep.mubr.bf16.mxu0 0
        %4145 = vmatmul.mubr.bf16.gmra.mrb[0].mxu0 %v2841
        %v4146 = vpop.f32.mrb[0].mxu0
        %v4147 = vadd.f32 %v3986, %v4146
        %v4148 = vpop.f32.mrb[0].mxu0
        %v4149 = vpop.f32.mrb[0].mxu0
        %v4150 = vadd.f32 %v3989, %v4149
        %v4151 = vpop.f32.mrb[0].mxu0
        %4152 = vmatprep.mubr.bf16.mxu0 0
        %4153 = vmatmul.mubr.bf16.gmra.mrb[0].mxu0 %v2844
        %v4154 = vpop.f32.mrb[0].mxu0
        %v4155 = vadd.f32 %v3994, %v4154
        %v4156 = vpop.f32.mrb[0].mxu0
        %v4157 = vpop.f32.mrb[0].mxu0
        %v4158 = vadd.f32 %v3997, %v4157
        %v4159 = vpop.f32.mrb[0].mxu0
        %4160 = vmatprep.mubr.bf16.mxu0 0
        %4161 = vmatmul.mubr.bf16.gmra.mrb[0].mxu0 %v2847
        %v4162 = vpop.f32.mrb[0].mxu0
        %v4163 = vadd.f32 %v4002, %v4162
        %v4164 = vpop.f32.mrb[0].mxu0
        %v4165 = vpop.f32.mrb[0].mxu0
        %v4166 = vadd.f32 %v4005, %v4165
        %v4167 = vpop.f32.mrb[0].mxu0
        %4168 = vmatprep.mubr.bf16.mxu0 0
        %4169 = vmatmul.mubr.bf16.gmra.mrb[0].mxu0 %v2850
        %v4170 = vpop.f32.mrb[0].mxu0
        %v4171 = vadd.f32 %v4010, %v4170
        %v4172 = vpop.f32.mrb[0].mxu0
        %v4173 = vpop.f32.mrb[0].mxu0
        %v4174 = vadd.f32 %v4013, %v4173
        %v4175 = vpop.f32.mrb[0].mxu0
        %4176 = vmatprep.mubr.bf16.mxu0 0
        %4177 = vmatmul.mubr.bf16.gmra.mrb[0].mxu0 %v2853
        %v4178 = vpop.f32.mrb[0].mxu0
        %v4179 = vadd.f32 %v4018, %v4178
        %v4180 = vpop.f32.mrb[0].mxu0
        %v4181 = vpop.f32.mrb[0].mxu0
        %v4182 = vadd.f32 %v4021, %v4181
        %v4183 = vpop.f32.mrb[0].mxu0
        %4184 = vmatprep.mubr.bf16.mxu0 0
        %4185 = vmatmul.mubr.bf16.gmra.mrb[0].mxu0 %v2856
        %v4186 = vpop.f32.mrb[0].mxu0
        %v4187 = vadd.f32 %v4026, %v4186
        %v4188 = vpop.f32.mrb[0].mxu0
        %v4189 = vpop.f32.mrb[0].mxu0
        %v4190 = vadd.f32 %v4029, %v4189
        %v4191 = vpop.f32.mrb[0].mxu0
        %4192 = vmatprep.mubr.bf16.mxu0 0
        %4193 = vmatmul.mubr.bf16.gmra.mrb[0].mxu0 %v2859
        %v4194 = vpop.f32.mrb[0].mxu0
        %v4195 = vadd.f32 %v4034, %v4194
        %v4196 = vpop.f32.mrb[0].mxu0
        %v4197 = vpop.f32.mrb[0].mxu0
        %v4198 = vadd.f32 %v4037, %v4197
        %v4199 = vpop.f32.mrb[0].mxu0
        %4200 = vmatprep.mubr.bf16.mxu0 0
        %4201 = vmatmul.mubr.bf16.gmra.mrb[0].mxu0 %v2862
        %v4202 = vpop.f32.mrb[0].mxu0
        %v4203 = vadd.f32 %v4042, %v4202
        %v4204 = vpop.f32.mrb[0].mxu0
        %v4205 = vpop.f32.mrb[0].mxu0
        %v4206 = vadd.f32 %v4045, %v4205
        %v4207 = vpop.f32.mrb[0].mxu0
        %4208 = vmatprep.mubr.bf16.mxu0 0
        %4209 = vmatmul.mubr.bf16.gmra.mrb[0].mxu0 %v2865
        %v4210 = vpop.f32.mrb[0].mxu0
        %v4211 = vadd.f32 %v4050, %v4210
        %v4212 = vpop.f32.mrb[0].mxu0
        %v4213 = vpop.f32.mrb[0].mxu0
        %v4214 = vadd.f32 %v4053, %v4213
        %v4215 = vpop.f32.mrb[0].mxu0
        %4216 = vmatprep.mubr.bf16.mxu0 0
        %4217 = vmatmul.mubr.bf16.gmra.mrb[0].mxu0 %v2868
        %v4218 = vpop.f32.mrb[0].mxu0
        %v4219 = vadd.f32 %v4058, %v4218
        %v4220 = vpop.f32.mrb[0].mxu0
        %v4221 = vpop.f32.mrb[0].mxu0
        %v4222 = vadd.f32 %v4061, %v4221
        %v4223 = vpop.f32.mrb[0].mxu0
        %4224 = vmatprep.mubr.bf16.mxu0 0
        %4225 = vmatmul.mubr.bf16.gmra.mrb[0].mxu0 %v2871
        %v4226 = vpop.f32.mrb[0].mxu0
        %v4227 = vadd.f32 %v4066, %v4226
        %v4228 = vpop.f32.mrb[0].mxu0
        %v4229 = vpop.f32.mrb[0].mxu0
        %v4230 = vadd.f32 %v4069, %v4229
        %v4231 = vpop.f32.mrb[0].mxu0
        %4232 = vmatprep.mubr.bf16.mxu0 0
        %4233 = vmatmul.mubr.bf16.gmra.mrb[0].mxu0 %v2874
        %v4234 = vpop.f32.mrb[0].mxu0
        %v4235 = vadd.f32 %v4074, %v4234
        %v4236 = vpop.f32.mrb[0].mxu0
        %v4237 = vpop.f32.mrb[0].mxu0
        %v4238 = vadd.f32 %v4077, %v4237
        %v4239 = vpop.f32.mrb[0].mxu0
        %4240 = vmatprep.mubr.bf16.mxu0 0
        %4241 = vmatmul.mubr.bf16.gmra.mrb[0].mxu0 %v2877
        %v4242 = vpop.f32.mrb[0].mxu0
        %v4243 = vadd.f32 %v4082, %v4242
        %v4244 = vpop.f32.mrb[0].mxu0
        %v4245 = vpop.f32.mrb[0].mxu0
        %v4246 = vadd.f32 %v4085, %v4245
        %v4247 = vpop.f32.mrb[0].mxu0
        %4248 = vmatprep.mubr.bf16.mxu0 0
        %4249 = vmatmul.mubr.bf16.gmra.mrb[0].mxu0 %v2880
        %v4250 = vpop.f32.mrb[0].mxu0
        %v4251 = vadd.f32 %v4090, %v4250
        %v4252 = vpop.f32.mrb[0].mxu0
        %v4253 = vpop.f32.mrb[0].mxu0
        %v4254 = vadd.f32 %v4093, %v4253
        %v4255 = vpop.f32.mrb[0].mxu0
        %4256 = vmatprep.mubr.bf16.mxu0 0
        %4257 = vmatmul.mubr.bf16.gmra.mrb[0].mxu0 %v2883
        %v4258 = vpop.f32.mrb[0].mxu0
        %v4259 = vadd.f32 %v4098, %v4258
        %v4260 = vpop.f32.mrb[0].mxu0
        %v4261 = vpop.f32.mrb[0].mxu0
        %v4262 = vadd.f32 %v4101, %v4261
        %v4263 = vpop.f32.mrb[0].mxu0
        %4264 = vdwg.mxu0
        %v4265 = vld [vmem:[%s4] sm:$0x1]
        %v4266 = vlaneseq
        %v4267 = vshrl.u32 %v4266, 7
        %v4268 = vsub.s32 0, %v4267
        %v4269 = vrot.slane %v4265, %v4268
        %v4270 = vmul.f32 %v4139, %v4269
        %v4271 = vmul.f32 %v4142, %v4269
        %v4272 = vmul.f32 %v4147, %v4269
        %v4273 = vmul.f32 %v4150, %v4269
        %v4274 = vmul.f32 %v4155, %v4269
        %v4275 = vmul.f32 %v4158, %v4269
        %v4276 = vmul.f32 %v4163, %v4269
        %v4277 = vmul.f32 %v4166, %v4269
        %v4278 = vmul.f32 %v4171, %v4269
        %v4279 = vmul.f32 %v4174, %v4269
        %v4280 = vmul.f32 %v4179, %v4269
        %v4281 = vmul.f32 %v4182, %v4269
        %v4282 = vmul.f32 %v4187, %v4269
        %v4283 = vmul.f32 %v4190, %v4269
        %v4284 = vmul.f32 %v4195, %v4269
        %v4285 = vmul.f32 %v4198, %v4269
        %v4286 = vmul.f32 %v4203, %v4269
        %v4287 = vmul.f32 %v4206, %v4269
        %v4288 = vmul.f32 %v4211, %v4269
        %v4289 = vmul.f32 %v4214, %v4269
        %v4290 = vmul.f32 %v4219, %v4269
        %v4291 = vmul.f32 %v4222, %v4269
        %v4292 = vmul.f32 %v4227, %v4269
        %v4293 = vmul.f32 %v4230, %v4269
        %v4294 = vmul.f32 %v4235, %v4269
        %v4295 = vmul.f32 %v4238, %v4269
        %v4296 = vmul.f32 %v4243, %v4269
        %v4297 = vmul.f32 %v4246, %v4269
        %v4298 = vmul.f32 %v4251, %v4269
        %v4299 = vmul.f32 %v4254, %v4269
        %v4300 = vmul.f32 %v4259, %v4269
        %v4301 = vmul.f32 %v4262, %v4269
        %v4302 = vld [vmem:[%s4 + $0x1] sm:$0x1]
        %v4303 = vlaneseq
        %v4304 = vshrl.u32 %v4303, 7
        %v4305 = vsub.s32 0, %v4304
        %v4306 = vrot.slane %v4302, %v4305
        %v4307 = vadd.f32 %v4270, %v4306
        %v4308 = vadd.f32 %v4271, %v4306
        %v4309 = vadd.f32 %v4272, %v4306
        %v4310 = vadd.f32 %v4273, %v4306
        %v4311 = vadd.f32 %v4274, %v4306
        %v4312 = vadd.f32 %v4275, %v4306
        %v4313 = vadd.f32 %v4276, %v4306
        %v4314 = vadd.f32 %v4277, %v4306
        %v4315 = vadd.f32 %v4278, %v4306
        %v4316 = vadd.f32 %v4279, %v4306
        %v4317 = vadd.f32 %v4280, %v4306
        %v4318 = vadd.f32 %v4281, %v4306
        %v4319 = vadd.f32 %v4282, %v4306
        %v4320 = vadd.f32 %v4283, %v4306
        %v4321 = vadd.f32 %v4284, %v4306
        %v4322 = vadd.f32 %v4285, %v4306
        %v4323 = vadd.f32 %v4286, %v4306
        %v4324 = vadd.f32 %v4287, %v4306
        %v4325 = vadd.f32 %v4288, %v4306
        %v4326 = vadd.f32 %v4289, %v4306
        %v4327 = vadd.f32 %v4290, %v4306
        %v4328 = vadd.f32 %v4291, %v4306
        %v4329 = vadd.f32 %v4292, %v4306
        %v4330 = vadd.f32 %v4293, %v4306
        %v4331 = vadd.f32 %v4294, %v4306
        %v4332 = vadd.f32 %v4295, %v4306
        %v4333 = vadd.f32 %v4296, %v4306
        %v4334 = vadd.f32 %v4297, %v4306
        %v4335 = vadd.f32 %v4298, %v4306
        %v4336 = vadd.f32 %v4299, %v4306
        %v4337 = vadd.f32 %v4300, %v4306
        %v4338 = vadd.f32 %v4301, %v4306
        %v4339 = vadd.f32 %v4307, %v334
        %v4340 = vadd.f32 %v4308, %v336
        %v4341 = vadd.f32 %v4309, %v339
        %v4342 = vadd.f32 %v4310, %v341
        %v4343 = vadd.f32 %v4311, %v344
        %v4344 = vadd.f32 %v4312, %v346
        %v4345 = vadd.f32 %v4313, %v349
        %v4346 = vadd.f32 %v4314, %v351
        %v4347 = vadd.f32 %v4315, %v354
        %v4348 = vadd.f32 %v4316, %v356
        %v4349 = vadd.f32 %v4317, %v359
        %v4350 = vadd.f32 %v4318, %v361
        %v4351 = vadd.f32 %v4319, %v364
        %v4352 = vadd.f32 %v4320, %v366
        %v4353 = vadd.f32 %v4321, %v369
        %v4354 = vadd.f32 %v4322, %v371
        %v4355 = vadd.f32 %v4323, %v374
        %v4356 = vadd.f32 %v4324, %v376
        %v4357 = vadd.f32 %v4325, %v379
        %v4358 = vadd.f32 %v4326, %v381
        %v4359 = vadd.f32 %v4327, %v384
        %v4360 = vadd.f32 %v4328, %v386
        %v4361 = vadd.f32 %v4329, %v389
        %v4362 = vadd.f32 %v4330, %v391
        %v4363 = vadd.f32 %v4331, %v394
        %v4364 = vadd.f32 %v4332, %v396
        %v4365 = vadd.f32 %v4333, %v399
        %v4366 = vadd.f32 %v4334, %v401
        %v4367 = vadd.f32 %v4335, %v404
        %v4368 = vadd.f32 %v4336, %v406
        %v4369 = vadd.f32 %v4337, %v557
        %v4370 = vadd.f32 %v4338, %v559
        %v4371 = vmul.f32 %v4339, 0.5
        %v4372 = vmul.f32 %v4340, 0.5
        %v4373 = vmul.f32 %v4341, 0.5
        %v4374 = vmul.f32 %v4342, 0.5
        %v4375 = vmul.f32 %v4343, 0.5
        %v4376 = vmul.f32 %v4344, 0.5
        %v4377 = vmul.f32 %v4345, 0.5
        %v4378 = vmul.f32 %v4346, 0.5
        %v4379 = vmul.f32 %v4347, 0.5
        %v4380 = vmul.f32 %v4348, 0.5
        %v4381 = vmul.f32 %v4349, 0.5
        %v4382 = vmul.f32 %v4350, 0.5
        %v4383 = vmul.f32 %v4351, 0.5
        %v4384 = vmul.f32 %v4352, 0.5
        %v4385 = vmul.f32 %v4353, 0.5
        %v4386 = vmul.f32 %v4354, 0.5
        %v4387 = vmul.f32 %v4355, 0.5
        %v4388 = vmul.f32 %v4356, 0.5
        %v4389 = vmul.f32 %v4357, 0.5
        %v4390 = vmul.f32 %v4358, 0.5
        %v4391 = vmul.f32 %v4359, 0.5
        %v4392 = vmul.f32 %v4360, 0.5
        %v4393 = vmul.f32 %v4361, 0.5
        %v4394 = vmul.f32 %v4362, 0.5
        %v4395 = vmul.f32 %v4363, 0.5
        %v4396 = vmul.f32 %v4364, 0.5
        %v4397 = vmul.f32 %v4365, 0.5
        %v4398 = vmul.f32 %v4366, 0.5
        %v4399 = vmul.f32 %v4367, 0.5
        %v4400 = vmul.f32 %v4368, 0.5
        %v4401 = vmul.f32 %v4369, 0.5
        %v4402 = vmul.f32 %v4370, 0.5
        %v4403 = vmul.f32 %v4339, 0.044715
        %v4404 = vmul.f32 %v4340, 0.044715
        %v4405 = vmul.f32 %v4341, 0.044715
        %v4406 = vmul.f32 %v4342, 0.044715
        %v4407 = vmul.f32 %v4343, 0.044715
        %v4408 = vmul.f32 %v4344, 0.044715
        %v4409 = vmul.f32 %v4345, 0.044715
        %v4410 = vmul.f32 %v4346, 0.044715
        %v4411 = vmul.f32 %v4347, 0.044715
        %v4412 = vmul.f32 %v4348, 0.044715
        %v4413 = vmul.f32 %v4349, 0.044715
        %v4414 = vmul.f32 %v4350, 0.044715
        %v4415 = vmul.f32 %v4351, 0.044715
        %v4416 = vmul.f32 %v4352, 0.044715
        %v4417 = vmul.f32 %v4353, 0.044715
        %v4418 = vmul.f32 %v4354, 0.044715
        %v4419 = vmul.f32 %v4355, 0.044715
        %v4420 = vmul.f32 %v4356, 0.044715
        %v4421 = vmul.f32 %v4357, 0.044715
        %v4422 = vmul.f32 %v4358, 0.044715
        %v4423 = vmul.f32 %v4359, 0.044715
        %v4424 = vmul.f32 %v4360, 0.044715
        %v4425 = vmul.f32 %v4361, 0.044715
        %v4426 = vmul.f32 %v4362, 0.044715
        %v4427 = vmul.f32 %v4363, 0.044715
        %v4428 = vmul.f32 %v4364, 0.044715
        %v4429 = vmul.f32 %v4365, 0.044715
        %v4430 = vmul.f32 %v4366, 0.044715
        %v4431 = vmul.f32 %v4367, 0.044715
        %v4432 = vmul.f32 %v4368, 0.044715
        %v4433 = vmul.f32 %v4369, 0.044715
        %v4434 = vmul.f32 %v4370, 0.044715
        %v4435 = vmul.f32 %v4403, %v4339
        %v4436 = vmul.f32 %v4404, %v4340
        %v4437 = vmul.f32 %v4405, %v4341
        %v4438 = vmul.f32 %v4406, %v4342
        %v4439 = vmul.f32 %v4407, %v4343
        %v4440 = vmul.f32 %v4408, %v4344
        %v4441 = vmul.f32 %v4409, %v4345
        %v4442 = vmul.f32 %v4410, %v4346
        %v4443 = vmul.f32 %v4411, %v4347
        %v4444 = vmul.f32 %v4412, %v4348
        %v4445 = vmul.f32 %v4413, %v4349
        %v4446 = vmul.f32 %v4414, %v4350
        %v4447 = vmul.f32 %v4415, %v4351
        %v4448 = vmul.f32 %v4416, %v4352
        %v4449 = vmul.f32 %v4417, %v4353
        %v4450 = vmul.f32 %v4418, %v4354
        %v4451 = vmul.f32 %v4419, %v4355
        %v4452 = vmul.f32 %v4420, %v4356
        %v4453 = vmul.f32 %v4421, %v4357
        %v4454 = vmul.f32 %v4422, %v4358
        %v4455 = vmul.f32 %v4423, %v4359
        %v4456 = vmul.f32 %v4424, %v4360
        %v4457 = vmul.f32 %v4425, %v4361
        %v4458 = vmul.f32 %v4426, %v4362
        %v4459 = vmul.f32 %v4427, %v4363
        %v4460 = vmul.f32 %v4428, %v4364
        %v4461 = vmul.f32 %v4429, %v4365
        %v4462 = vmul.f32 %v4430, %v4366
        %v4463 = vmul.f32 %v4431, %v4367
        %v4464 = vmul.f32 %v4432, %v4368
        %v4465 = vmul.f32 %v4433, %v4369
        %v4466 = vmul.f32 %v4434, %v4370
        %v4467 = vmul.f32 %v4435, %v4339
        %v4468 = vmul.f32 %v4436, %v4340
        %v4469 = vmul.f32 %v4437, %v4341
        %v4470 = vmul.f32 %v4438, %v4342
        %v4471 = vmul.f32 %v4439, %v4343
        %v4472 = vmul.f32 %v4440, %v4344
        %v4473 = vmul.f32 %v4441, %v4345
        %v4474 = vmul.f32 %v4442, %v4346
        %v4475 = vmul.f32 %v4443, %v4347
        %v4476 = vmul.f32 %v4444, %v4348
        %v4477 = vmul.f32 %v4445, %v4349
        %v4478 = vmul.f32 %v4446, %v4350
        %v4479 = vmul.f32 %v4447, %v4351
        %v4480 = vmul.f32 %v4448, %v4352
        %v4481 = vmul.f32 %v4449, %v4353
        %v4482 = vmul.f32 %v4450, %v4354
        %v4483 = vmul.f32 %v4451, %v4355
        %v4484 = vmul.f32 %v4452, %v4356
        %v4485 = vmul.f32 %v4453, %v4357
        %v4486 = vmul.f32 %v4454, %v4358
        %v4487 = vmul.f32 %v4455, %v4359
        %v4488 = vmul.f32 %v4456, %v4360
        %v4489 = vmul.f32 %v4457, %v4361
        %v4490 = vmul.f32 %v4458, %v4362
        %v4491 = vmul.f32 %v4459, %v4363
        %v4492 = vmul.f32 %v4460, %v4364
        %v4493 = vmul.f32 %v4461, %v4365
        %v4494 = vmul.f32 %v4462, %v4366
        %v4495 = vmul.f32 %v4463, %v4367
        %v4496 = vmul.f32 %v4464, %v4368
        %v4497 = vmul.f32 %v4465, %v4369
        %v4498 = vmul.f32 %v4466, %v4370
        %v4499 = vadd.f32 %v4339, %v4467
        %v4500 = vadd.f32 %v4340, %v4468
        %v4501 = vadd.f32 %v4341, %v4469
        %v4502 = vadd.f32 %v4342, %v4470
        %v4503 = vadd.f32 %v4343, %v4471
        %v4504 = vadd.f32 %v4344, %v4472
        %v4505 = vadd.f32 %v4345, %v4473
        %v4506 = vadd.f32 %v4346, %v4474
        %v4507 = vadd.f32 %v4347, %v4475
        %v4508 = vadd.f32 %v4348, %v4476
        %v4509 = vadd.f32 %v4349, %v4477
        %v4510 = vadd.f32 %v4350, %v4478
        %v4511 = vadd.f32 %v4351, %v4479
        %v4512 = vadd.f32 %v4352, %v4480
        %v4513 = vadd.f32 %v4353, %v4481
        %v4514 = vadd.f32 %v4354, %v4482
        %v4515 = vadd.f32 %v4355, %v4483
        %v4516 = vadd.f32 %v4356, %v4484
        %v4517 = vadd.f32 %v4357, %v4485
        %v4518 = vadd.f32 %v4358, %v4486
        %v4519 = vadd.f32 %v4359, %v4487
        %v4520 = vadd.f32 %v4360, %v4488
        %v4521 = vadd.f32 %v4361, %v4489
        %v4522 = vadd.f32 %v4362, %v4490
        %v4523 = vadd.f32 %v4363, %v4491
        %v4524 = vadd.f32 %v4364, %v4492
        %v4525 = vadd.f32 %v4365, %v4493
        %v4526 = vadd.f32 %v4366, %v4494
        %v4527 = vadd.f32 %v4367, %v4495
        %v4528 = vadd.f32 %v4368, %v4496
        %v4529 = vadd.f32 %v4369, %v4497
        %v4530 = vadd.f32 %v4370, %v4498
        %v4531 = vmul.f32 %v4499, 0.7978846
        %v4532 = vmul.f32 %v4500, 0.7978846
        %v4533 = vmul.f32 %v4501, 0.7978846
        %v4534 = vmul.f32 %v4502, 0.7978846
        %v4535 = vmul.f32 %v4503, 0.7978846
        %v4536 = vmul.f32 %v4504, 0.7978846
        %v4537 = vmul.f32 %v4505, 0.7978846
        %v4538 = vmul.f32 %v4506, 0.7978846
        %v4539 = vmul.f32 %v4507, 0.7978846
        %v4540 = vmul.f32 %v4508, 0.7978846
        %v4541 = vmul.f32 %v4509, 0.7978846
        %v4542 = vmul.f32 %v4510, 0.7978846
        %v4543 = vmul.f32 %v4511, 0.7978846
        %v4544 = vmul.f32 %v4512, 0.7978846
        %v4545 = vmul.f32 %v4513, 0.7978846
        %v4546 = vmul.f32 %v4514, 0.7978846
        %v4547 = vmul.f32 %v4515, 0.7978846
        %v4548 = vmul.f32 %v4516, 0.7978846
        %v4549 = vmul.f32 %v4517, 0.7978846
        %v4550 = vmul.f32 %v4518, 0.7978846
        %v4551 = vmul.f32 %v4519, 0.7978846
        %v4552 = vmul.f32 %v4520, 0.7978846
        %v4553 = vmul.f32 %v4521, 0.7978846
        %v4554 = vmul.f32 %v4522, 0.7978846
        %v4555 = vmul.f32 %v4523, 0.7978846
        %v4556 = vmul.f32 %v4524, 0.7978846
        %v4557 = vmul.f32 %v4525, 0.7978846
        %v4558 = vmul.f32 %v4526, 0.7978846
        %v4559 = vmul.f32 %v4527, 0.7978846
        %v4560 = vmul.f32 %v4528, 0.7978846
        %v4561 = vmul.f32 %v4529, 0.7978846
        %v4562 = vmul.f32 %v4530, 0.7978846
        %v4563 = vtanh.pop %v4531
        %v4564 = vtanh.pop %v4532
        %v4565 = vtanh.pop %v4533
        %v4566 = vtanh.pop %v4534
        %v4567 = vtanh.pop %v4535
        %v4568 = vtanh.pop %v4536
        %v4569 = vtanh.pop %v4537
        %v4570 = vtanh.pop %v4538
        %v4571 = vtanh.pop %v4539
        %v4572 = vtanh.pop %v4540
        %v4573 = vtanh.pop %v4541
        %v4574 = vtanh.pop %v4542
        %v4575 = vtanh.pop %v4543
        %v4576 = vtanh.pop %v4544
        %v4577 = vtanh.pop %v4545
        %v4578 = vtanh.pop %v4546
        %v4579 = vtanh.pop %v4547
        %v4580 = vtanh.pop %v4548
        %v4581 = vtanh.pop %v4549
        %v4582 = vtanh.pop %v4550
        %v4583 = vtanh.pop %v4551
        %v4584 = vtanh.pop %v4552
        %v4585 = vtanh.pop %v4553
        %v4586 = vtanh.pop %v4554
        %v4587 = vtanh.pop %v4555
        %v4588 = vtanh.pop %v4556
        %v4589 = vtanh.pop %v4557
        %v4590 = vtanh.pop %v4558
        %v4591 = vtanh.pop %v4559
        %v4592 = vtanh.pop %v4560
        %v4593 = vtanh.pop %v4561
        %v4594 = vtanh.pop %v4562
        %v4595 = vadd.f32 %v4563, 1.0
        %v4596 = vadd.f32 %v4564, 1.0
        %v4597 = vadd.f32 %v4565, 1.0
        %v4598 = vadd.f32 %v4566, 1.0
        %v4599 = vadd.f32 %v4567, 1.0
        %v4600 = vadd.f32 %v4568, 1.0
        %v4601 = vadd.f32 %v4569, 1.0
        %v4602 = vadd.f32 %v4570, 1.0
        %v4603 = vadd.f32 %v4571, 1.0
        %v4604 = vadd.f32 %v4572, 1.0
        %v4605 = vadd.f32 %v4573, 1.0
        %v4606 = vadd.f32 %v4574, 1.0
        %v4607 = vadd.f32 %v4575, 1.0
        %v4608 = vadd.f32 %v4576, 1.0
        %v4609 = vadd.f32 %v4577, 1.0
        %v4610 = vadd.f32 %v4578, 1.0
        %v4611 = vadd.f32 %v4579, 1.0
        %v4612 = vadd.f32 %v4580, 1.0
        %v4613 = vadd.f32 %v4581, 1.0
        %v4614 = vadd.f32 %v4582, 1.0
        %v4615 = vadd.f32 %v4583, 1.0
        %v4616 = vadd.f32 %v4584, 1.0
        %v4617 = vadd.f32 %v4585, 1.0
        %v4618 = vadd.f32 %v4586, 1.0
        %v4619 = vadd.f32 %v4587, 1.0
        %v4620 = vadd.f32 %v4588, 1.0
        %v4621 = vadd.f32 %v4589, 1.0
        %v4622 = vadd.f32 %v4590, 1.0
        %v4623 = vadd.f32 %v4591, 1.0
        %v4624 = vadd.f32 %v4592, 1.0
        %v4625 = vadd.f32 %v4593, 1.0
        %v4626 = vadd.f32 %v4594, 1.0
        %v4627 = vmul.f32 %v4371, %v4595
        %v4628 = vmul.f32 %v4372, %v4596
        %v4629 = vmul.f32 %v4373, %v4597
        %v4630 = vmul.f32 %v4374, %v4598
        %v4631 = vmul.f32 %v4375, %v4599
        %v4632 = vmul.f32 %v4376, %v4600
        %v4633 = vmul.f32 %v4377, %v4601
        %v4634 = vmul.f32 %v4378, %v4602
        %v4635 = vmul.f32 %v4379, %v4603
        %v4636 = vmul.f32 %v4380, %v4604
        %v4637 = vmul.f32 %v4381, %v4605
        %v4638 = vmul.f32 %v4382, %v4606
        %v4639 = vmul.f32 %v4383, %v4607
        %v4640 = vmul.f32 %v4384, %v4608
        %v4641 = vmul.f32 %v4385, %v4609
        %v4642 = vmul.f32 %v4386, %v4610
        %v4643 = vmul.f32 %v4387, %v4611
        %v4644 = vmul.f32 %v4388, %v4612
        %v4645 = vmul.f32 %v4389, %v4613
        %v4646 = vmul.f32 %v4390, %v4614
        %v4647 = vmul.f32 %v4391, %v4615
        %v4648 = vmul.f32 %v4392, %v4616
        %v4649 = vmul.f32 %v4393, %v4617
        %v4650 = vmul.f32 %v4394, %v4618
        %v4651 = vmul.f32 %v4395, %v4619
        %v4652 = vmul.f32 %v4396, %v4620
        %v4653 = vmul.f32 %v4397, %v4621
        %v4654 = vmul.f32 %v4398, %v4622
        %v4655 = vmul.f32 %v4399, %v4623
        %v4656 = vmul.f32 %v4400, %v4624
        %v4657 = vmul.f32 %v4401, %v4625
        %v4658 = vmul.f32 %v4402, %v4626
        %4659 = vst [vmem:[%s217] sm:$0xff] %v4627
        %4660 = vst [vmem:[%s217 + $0x8] sm:$0xff] %v4628
        %4661 = vst [vmem:[%s217 + $0x10] sm:$0xff] %v4629
        %4662 = vst [vmem:[%s217 + $0x18] sm:$0xff] %v4630
        %4663 = vst [vmem:[%s217 + $0x20] sm:$0xff] %v4631
        %4664 = vst [vmem:[%s217 + $0x28] sm:$0xff] %v4632
        %4665 = vst [vmem:[%s217 + $0x30] sm:$0xff] %v4633
        %4666 = vst [vmem:[%s217 + $0x38] sm:$0xff] %v4634
        %4667 = vst [vmem:[%s217 + $0x40] sm:$0xff] %v4635
        %4668 = vst [vmem:[%s217 + $0x48] sm:$0xff] %v4636
        %4669 = vst [vmem:[%s217 + $0x50] sm:$0xff] %v4637
        %4670 = vst [vmem:[%s217 + $0x58] sm:$0xff] %v4638
        %4671 = vst [vmem:[%s217 + $0x60] sm:$0xff] %v4639
        %4672 = vst [vmem:[%s217 + $0x68] sm:$0xff] %v4640
        %4673 = vst [vmem:[%s217 + $0x70] sm:$0xff] %v4641
        %4674 = vst [vmem:[%s217 + $0x78] sm:$0xff] %v4642
        %4675 = vst [vmem:[%s217 + $0x80] sm:$0xff] %v4643
        %4676 = vst [vmem:[%s217 + $0x88] sm:$0xff] %v4644
        %4677 = vst [vmem:[%s217 + $0x90] sm:$0xff] %v4645
        %4678 = vst [vmem:[%s217 + $0x98] sm:$0xff] %v4646
        %4679 = vst [vmem:[%s217 + $0xa0] sm:$0xff] %v4647
        %4680 = vst [vmem:[%s217 + $0xa8] sm:$0xff] %v4648
        %4681 = vst [vmem:[%s217 + $0xb0] sm:$0xff] %v4649
        %4682 = vst [vmem:[%s217 + $0xb8] sm:$0xff] %v4650
        %4683 = vst [vmem:[%s217 + $0xc0] sm:$0xff] %v4651
        %4684 = vst [vmem:[%s217 + $0xc8] sm:$0xff] %v4652
        %4685 = vst [vmem:[%s217 + $0xd0] sm:$0xff] %v4653
        %4686 = vst [vmem:[%s217 + $0xd8] sm:$0xff] %v4654
        %4687 = vst [vmem:[%s217 + $0xe0] sm:$0xff] %v4655
        %4688 = vst [vmem:[%s217 + $0xe8] sm:$0xff] %v4656
        %4689 = vst [vmem:[%s217 + $0xf0] sm:$0xff] %v4657
        %4690 = vst [vmem:[%s217 + $0xf8] sm:$0xff] %v4658
        %s4691 = sand.u32 %s137, 1
        %s4692 = scalar_lea.sflag [#allocation4], %s4691
        %s4693 = sand.u32 %s137, 1
        %s4694 = smul.addr %s4693, 256
        %s4695 = scalar_lea.vmem [#allocation3], %s4694
        // Predicated region
        $region41: #{basicmodule_apply.1} parent=39 // pred_check
          %p4696 = pneg %p147
        $region42: #{basicmodule_apply.1} parent=39 // pred_check_branch
          %4698 = sbr.rel (%p4696) target = $region44
        $region43: #{basicmodule_apply.1} parent=39 // pred_region
          %s4700 = ssub.s32 4096, 4096
          %4701 = vsyncadd %s4692, %s4700
          %s4702 = smul.addr %s19, 32
          %s4703 = smul.addr %s4702, 128
          %s4704 = scalar_lea.hbm %s5, %s4703
          %s4705 = sshll.u32 %s4695, 4
          %s4706 = int_to_ptr.vmem [resolvable:$true] %s4705
          %4711 = dma.vmem_to_hbm [thread:$0]  %s4706, 4096, %s4704, %s4692, 128, 128, 8
        $region44: #{basicmodule_apply.1} parent=39 // pred_fallthru
          _
      $region40: #{basicmodule_apply.1} parent=5 // pred_fallthru
        _
      %p4712 = scmp.le.s32.totalorder 2, %s14
      // Predicated region
      $region45: #{basicmodule_apply.1} parent=5 // pred_check
        %p4713 = pneg %p4712
      $region46: #{basicmodule_apply.1} parent=5 // pred_check_branch
        %4715 = sbr.rel (%p4713) target = $region48
      $region47: #{basicmodule_apply.1} parent=5 // pred_region
        %s4716 = ssub.s32 %s14, 2
        // Predicated region
        $region49: #{basicmodule_apply.1} parent=47 // pred_check
          %p4717 = pneg %p153
        $region50: #{basicmodule_apply.1} parent=47 // pred_check_branch
          %4719 = sbr.rel (%p4717) target = $region52
        $region51: #{basicmodule_apply.1} parent=47 // pred_region
          %s4720 = sand.u32 %s138, 1
          %s4721 = scalar_lea.sflag [#allocation4], %s4720
          %s4722 = sand.u32 %s138, 1
          %s4723 = smul.addr %s4722, 256
          %s4724 = scalar_lea.vmem [#allocation3], %s4723
          %4725 = dma.done %s4721, 4096
        $region52: #{basicmodule_apply.1} parent=47 // pred_fallthru
          _
      $region48: #{basicmodule_apply.1} parent=5 // pred_fallthru
        _
    $region6: #{basicmodule_apply.1} parent=1 // loop_footer
      %s18 = sadd.s32 1, %s14
    $region7: #{basicmodule_apply.1} parent=1 // loop_footer_branch
      %13 = sbr.rel target = $region3
    $region8: #{basicmodule_apply.1} parent=1 // loop_exit
      _
    %4726 = vsyncpa [#allocation4], 1
    %s4727 = scalar_lea.sflag [#allocation4], 1
    %4728 = vsyncpa %s4727, 1

</llo_original>
